<compile_context>
chip_gen: v6e
topology: v6e:2x2x1
jax: 0.10.0
libtpu: 0.0.40
codegen_flags: <defaults>
</compile_context>

<pallas_src>
import functools
import math

import jax
import jax.numpy as jnp
from jax.experimental import pallas as pl
from jax.experimental.pallas import tpu as pltpu

_INV_LN2 = 1.4426950408889634  # log2(x) = log(x) * (1/ln 2)


def _actor_kernel(static_ref, dyn0_ref, As_ref, Ad_ref, c_ref, out_ref, *,
                  n_steps, block_b, num_cars):
    """One grid step == `block_b` batch elements; full time recurrence runs in-kernel.

    Row layout: R = block_b * num_cars rows ordered (batch-in-block, car).  The static
    input / folded static head rows are additionally time-major: row = t*R + b*N + n.
    """
    f32 = jnp.float32
    T, Bb, N = n_steps, block_b, num_cars
    R = Bb * N
    Fs = static_ref.shape[-1]
    K = c_ref.shape[-1]                                     # 11 = 9 (quant) + 2 (b)

    # ---- hoisted static path: fully folded head for ALL time steps at once.
    #      Fs is tiny -> VPU outer products, no tiny-K MXU matmul in the kernel.
    s_all = static_ref[0]                                   # (T*R, Fs)
    heads_s_all = jnp.broadcast_to(c_ref[...], (T * R, K))
    for f in range(Fs):
        heads_s_all = heads_s_all + s_all[:, f:f + 1] * As_ref[f:f + 1, :]

    # hoisted loop invariants (JAX does not CSE slices/broadcasts inside the loop)
    Ad0 = Ad_ref[0:1, :]                                    # (1, 11)
    Ad1 = Ad_ref[1:2, :]
    Ad2 = Ad_ref[2:3, :]
    col9 = jax.lax.broadcasted_iota(jnp.int32, (R, 9), 1).astype(f32)
    big = jnp.full((R, 9), 1e9, f32)

    dyn = dyn0_ref[0]                                       # (R, 3) state at t = 0
    d0 = dyn[:, 0:1]
    d1 = dyn[:, 1:2]
    d2 = dyn[:, 2:3]

    def seg_sum(x):        # per-batch sum over cars, broadcast back to all rows
        parts = []
        for b in range(Bb):
            s = jnp.sum(x[b * N:(b + 1) * N, :], axis=0, keepdims=True)
            parts.append(jnp.broadcast_to(s, (N, 1)))
        return parts[0] if Bb == 1 else jnp.concatenate(parts, axis=0)

    def seg_max(x):        # per-batch max over cars, broadcast back to all rows
        parts = []
        for b in range(Bb):
            m = jnp.max(x[b * N:(b + 1) * N, :], axis=0, keepdims=True)
            parts.append(jnp.broadcast_to(m, (N, 1)))
        return parts[0] if Bb == 1 else jnp.concatenate(parts, axis=0)

    ptr_cols, bdw_cols, logq_cols = [], [], []

    for t in range(T):                                      # unrolled in-kernel recurrence
        s_t = s_all[t * R:(t + 1) * R, :]                   # (R, Fs) raw static features
        # dynamic half of the fused head: pure VPU outer products
        heads = (heads_s_all[t * R:(t + 1) * R, :]
                 + d0 * Ad0 + d1 * Ad1 + d2 * Ad2)          # (R, 11)
        quant = heads[:, 0:9]
        b0 = heads[:, 9:10]
        b1 = heads[:, 10:11]

        # quant: greedy (first) argmax and the log-prob of the max softmax entry
        qmax = jnp.max(quant, axis=1, keepdims=True)
        sumexp = jnp.sum(jnp.exp(quant - qmax), axis=1, keepdims=True)
        log_quant = -jnp.log(sumexp)                        # == log(max softmax prob)
        ptr_f = jnp.min(jnp.where(quant >= qmax, col9, big),
                        axis=1, keepdims=True) + 8.0        # (R, 1)

        # actor3_b: 2-way softmax column 1 == sigmoid(b1 - b0); then softmax over cars
        bdw_before = 1.0 / (1.0 + jnp.exp(b0 - b1))
        e = jnp.exp(bdw_before)                             # values in (0,1): safe
        bdw = e / seg_sum(e)                                # exact division

        # ---- dynamics update (the torch.no_grad block; produces state for t+1) ----
        s0 = s_t[:, 0:1]
        s2 = s_t[:, 2:3]
        dyn2 = d1 + 0.05 * s2
        dyn2 = jnp.sqrt((dyn2 - 500.0) ** 2 + 100.0)
        rate = bdw * 10.0 * (jnp.log(1.0 + 1.0e7 * s0 / (dyn2 * dyn2)) * _INV_LN2)
        val = 0.05 + ptr_f * (1.0 / 32.0) / rate            # exact: feeds carried state
        d0 = seg_max(val)
        d1 = d0 * s2 + d1
        d2 = dyn2

        ptr_cols.append(ptr_f)
        bdw_cols.append(bdw)
        logq_cols.append(log_quant)

    # single writeback: columns laid out as [ptr(0..T-1) | bdw(0..T-1) | logq(0..T-1)]
    out_ref[0] = jnp.concatenate(ptr_cols + bdw_cols + logq_cols, axis=1)


def actor_forward_pallas(static, dynamic, params, *, iteration, block_b=None):
    """static: (B, N, Fs, T>=iteration), dynamic: (B, N, 3, T>=iteration+1)."""
    f32 = jnp.float32
    B, N, Fs, Ts = static.shape
    _, _, Fd, Td = dynamic.shape
    assert Fd == 3 and Ts >= iteration and Td >= iteration + 1 and Fs >= 3
    H = params['sW'].shape[1]
    T = iteration
    eps = 1e-5

    if block_b is None:
        # Fill sublanes while keeping >= 2 grid steps (for v7x's two TCs) when possible.
        divisors = [d for d in (8, 4, 2, 1) if B % d == 0]
        with_two = [d for d in divisors if B // d >= 2]
        block_b = with_two[0] if with_two else divisors[0]
    assert B % block_b == 0
    nb = B // block_b
    R = block_b * N

    # ---- full linear fold: BN (eval) -> encoders -> fused (quant|b) head ----
    sscale = params['sbn_gamma'] / jnp.sqrt(params['sbn_var'] + eps)
    sshift = params['sbn_beta'] - params['sbn_mean'] * sscale
    dscale = params['dbn_gamma'] / jnp.sqrt(params['dbn_var'] + eps)
    dshift = params['dbn_beta'] - params['dbn_mean'] * dscale
    sWf = sscale[:, None] * params['sW']                    # BN folded into encoders
    sbf = sshift @ params['sW'] + params['sb']
    dWf = dscale[:, None] * params['dW']
    dbf = dshift @ params['dW'] + params['db']
    Whs = jnp.concatenate([params['qW'][:H], params['bW'][:H]], axis=1)   # (H, 11)
    Whd = jnp.concatenate([params['qW'][H:], params['bW'][H:]], axis=1)   # (H, 11)
    hb = jnp.concatenate([params['qb'], params['bb']], axis=0)            # (11,)
    A_s = (sWf @ Whs).astype(f32)                           # (Fs, 11)
    A_d = (dWf @ Whd).astype(f32)                           # (3, 11)
    c = (sbf @ Whs + dbf @ Whd + hb).reshape(1, 11).astype(f32)

    # static: (B, N, Fs, T) -> (nb, T*R, Fs), rows ordered (t, batch-in-block, car)
    st = static[:, :, :, :T].astype(f32).reshape(nb, block_b, N, Fs, T)
    st = jnp.transpose(st, (0, 4, 1, 2, 3)).reshape(nb, T * R, Fs)
    dyn0 = dynamic[:, :, :, 0].astype(f32).reshape(nb, R, Fd)

    kernel = functools.partial(_actor_kernel, n_steps=T, block_b=block_b, num_cars=N)
    grid_spec = pltpu.PrefetchScalarGridSpec(
        num_scalar_prefetch=0,
        grid=(nb,),
        in_specs=[
            pl.BlockSpec((1, T * R, Fs), lambda g: (g, 0, 0)),   # static (this block)
            pl.BlockSpec((1, R, Fd), lambda g: (g, 0, 0)),       # dynamic[..., 0]
            pl.BlockSpec((Fs, 11), lambda g: (0, 0)),            # folded static weights
            pl.BlockSpec((Fd, 11), lambda g: (0, 0)),            # folded dynamic weights
            pl.BlockSpec((1, 11), lambda g: (0, 0)),             # folded bias
        ],
        out_specs=pl.BlockSpec((1, R, 3 * T), lambda g: (g, 0, 0)),
    )
    out = pl.pallas_call(
        kernel,
        grid_spec=grid_spec,
        out_shape=jax.ShapeDtypeStruct((nb, R, 3 * T), f32),
        compiler_params=pltpu.CompilerParams(dimension_semantics=("parallel",)),
    )(st, dyn0, A_s, A_d, c)

    out = out.reshape(B, N, 3, T)                 # channels: [ptr_quant, bdw, log_quant]
    ptr_q = out[:, :, 0, :]
    bdw = out[:, :, 1, :]
    log_q = out[:, :, 2, :]
    zeros = jnp.zeros_like(ptr_q)
    # eval-mode whether_select: softmax(ones) -> argmax index 0 with prob 0.5 (constants)
    action = jnp.stack([zeros, ptr_q, bdw], axis=2)
    action_logp = jnp.stack([jnp.full_like(ptr_q, math.log(0.5)), log_q, bdw], axis=2)
    return action, action_logp


def actor_forward_ref(static, dynamic, params, *, iteration):
    """Pure-JAX reference mirroring the PyTorch eval-mode forward."""
    B, N, Fs, _ = static.shape
    eps = 1e-5
    sscale = params['sbn_gamma'] / jnp.sqrt(params['sbn_var'] + eps)
    sshift = params['sbn_beta'] - params['sbn_mean'] * sscale
    dscale = params['dbn_gamma'] / jnp.sqrt(params['dbn_var'] + eps)
    dshift = params['dbn_beta'] - params['dbn_mean'] * dscale

    d_prev = dynamic[:, :, :, 0].astype(jnp.float32)
    actions, logps = [], []
    for step in range(iteration):
        s_t = static[:, :, :, step].astype(jnp.float32)
        d_t = d_prev
        s_n = s_t * sscale + sshift
        d_n = d_t * dscale + dshift
        s_h = jnp.einsum('bnf,fh->bnh', s_n, params['sW']) + params['sb']
        d_h = jnp.einsum('bnf,fh->bnh', d_n, params['dW']) + params['db']
        state = jnp.concatenate([s_h, d_h], axis=2)
        quant = jnp.einsum('bnh,hk->bnk', state, params['qW']) + params['qb']
        blog = jnp.einsum('bnh,hk->bnk', state, params['bW']) + params['bb']
        bdw = jax.nn.softmax(jax.nn.softmax(blog, axis=2)[:, :, 1], axis=1)
        qprob = jax.nn.softmax(quant, axis=2)
        prob_quant = jnp.max(qprob, axis=2)
        ptr_quant = jnp.argmax(qprob, axis=2) + 8
        log_quant = jnp.log(prob_quant)
        t_comp = 0.05
        dyn2 = d_t[:, :, 1] + t_comp * s_t[:, :, 2]
        dyn2 = jnp.sqrt((dyn2 - 500.0) ** 2 + 100.0)
        rate = bdw * 10.0 * (jnp.log(1.0 + 1.0e7 * s_t[:, :, 0] / (dyn2 * dyn2)) * _INV_LN2)
        val = t_comp + ptr_quant.astype(jnp.float32) / 32.0 / rate
        dyn0 = jnp.broadcast_to(jnp.max(val, axis=1, keepdims=True), (B, N))
        dyn1 = dyn0 * s_t[:, :, 2] + d_t[:, :, 1]
        d_prev = jnp.stack([dyn0, dyn1, dyn2], axis=2)
        ptr_select = jnp.zeros((B, N), jnp.float32)
        logp_select = jnp.full((B, N), math.log(0.5), jnp.float32)
        actions.append(jnp.stack([ptr_select, ptr_quant.astype(jnp.float32), bdw], axis=2))
        logps.append(jnp.stack([logp_select, log_quant, bdw], axis=2))
    return jnp.stack(actions, axis=3), jnp.stack(logps, axis=3)


def init_params(key, static_size, dynamic_size, hidden_size):
    ks = jax.random.split(key, 8)

    def xavier(k, shape):
        a = math.sqrt(6.0 / (shape[0] + shape[1]))
        return jax.random.uniform(k, shape, jnp.float32, -a, a)

    def bias(k, fan_in, n):
        a = 1.0 / math.sqrt(fan_in)
        return jax.random.uniform(k, (n,), jnp.float32, -a, a)

    H = hidden_size
    return {
        'sW': xavier(ks[0], (static_size, H)), 'sb': bias(ks[1], static_size, H),
        'dW': xavier(ks[2], (dynamic_size, H)), 'db': bias(ks[3], dynamic_size, H),
        'qW': xavier(ks[4], (2 * H, 9)), 'qb': bias(ks[5], 2 * H, 9),
        'bW': xavier(ks[6], (2 * H, 2)), 'bb': bias(ks[7], 2 * H, 2),
        # BatchNorm1d parameters/buffers at their PyTorch init values (eval mode)
        'sbn_gamma': jnp.ones((static_size,), jnp.float32),
        'sbn_beta': jnp.zeros((static_size,), jnp.float32),
        'sbn_mean': jnp.zeros((static_size,), jnp.float32),
        'sbn_var': jnp.ones((static_size,), jnp.float32),
        'dbn_gamma': jnp.ones((dynamic_size,), jnp.float32),
        'dbn_beta': jnp.zeros((dynamic_size,), jnp.float32),
        'dbn_mean': jnp.zeros((dynamic_size,), jnp.float32),
        'dbn_var': jnp.ones((dynamic_size,), jnp.float32),
    }


if __name__ == "__main__":
    B, N = 4, 8                       # batch, num_cars
    static_size, dynamic_size, hidden_size = 4, 3, 32
    iteration = 8

    key = jax.random.PRNGKey(0)
    k1, k2, k3, k4, k5, k6, k7, k8, k9, k10, k11 = jax.random.split(key, 11)
    # static: feature 0 = channel gain (>0), feature 2 = speed, others arbitrary
    static = jnp.concatenate([
        jax.random.uniform(k1, (B, N, 1, iteration), jnp.float32, 0.5, 1.5),
        jax.random.uniform(k2, (B, N, 1, iteration), jnp.float32, -1.0, 1.0),
        jax.random.uniform(k3, (B, N, 1, iteration), jnp.float32, 0.0, 20.0),
        jax.random.uniform(k4, (B, N, static_size - 3, iteration), jnp.float32, -1.0, 1.0),
    ], axis=2)
    # dynamic: feature 1 = position (near 0..1000); needs iteration+1 time slots
    dynamic = jnp.concatenate([
        jax.random.uniform(k5, (B, N, 1, iteration + 1), jnp.float32, 0.0, 1.0),
        jax.random.uniform(k6, (B, N, 1, iteration + 1), jnp.float32, 0.0, 1000.0),
        jax.random.uniform(k7, (B, N, 1, iteration + 1), jnp.float32, 0.0, 1.0),
    ], axis=2)

    params = init_params(jax.random.PRNGKey(42), static_size, dynamic_size, hidden_size)
    # Realistic (non-identity) BatchNorm running stats / affine params: exercises the
    # BN folding non-trivially and keeps encoder activations O(1), so the float32
    # comparison against the pure-JAX reference stays well-conditioned across the
    # 8-step recurrence (the previous revision drifted on action_logp).
    params.update({
        'sbn_gamma': jax.random.uniform(k8, (static_size,), jnp.float32, 0.8, 1.2),
        'sbn_beta': jax.random.uniform(k9, (static_size,), jnp.float32, -0.2, 0.2),
        'sbn_mean': jnp.array([1.0, 0.0, 10.0, 0.0], jnp.float32),
        'sbn_var': jnp.array([0.09, 0.34, 34.0, 0.34], jnp.float32),
        'dbn_gamma': jax.random.uniform(k10, (dynamic_size,), jnp.float32, 0.8, 1.2),
        'dbn_beta': jax.random.uniform(k11, (dynamic_size,), jnp.float32, -0.2, 0.2),
        'dbn_mean': jnp.array([0.2, 500.0, 150.0], jnp.float32),
        'dbn_var': jnp.array([0.1, 85000.0, 40000.0], jnp.float32),
    })

    action, action_logp = actor_forward_pallas(static, dynamic, params, iteration=iteration)
    action = jax.block_until_ready(action)
    action_logp = jax.block_until_ready(action_logp)

    ref_action, ref_logp = actor_forward_ref(static, dynamic, params, iteration=iteration)
    assert action.shape == (B, N, 3, iteration)
    assert action_logp.shape == (B, N, 3, iteration)
    assert jnp.allclose(action, ref_action, rtol=1e-3, atol=2e-3), \
        float(jnp.max(jnp.abs(action - ref_action)))
    assert jnp.allclose(action_logp, ref_logp, rtol=1e-3, atol=2e-3), \
        float(jnp.max(jnp.abs(action_logp - ref_logp)))
    print("KERNEL_OK")
</pallas_src>

<mosaic_0001>
module attributes {stable_mosaic.version = 11 : i64} {
  func.func @_actor_kernel(%arg0: i32, %arg1: memref<1x128x4xf32, #tpu.memory_space<vmem>>, %arg2: memref<1x16x3xf32, #tpu.memory_space<vmem>>, %arg3: memref<4x11xf32, #tpu.memory_space<vmem>>, %arg4: memref<3x11xf32, #tpu.memory_space<vmem>>, %arg5: memref<1x11xf32, #tpu.memory_space<vmem>>, %arg6: memref<1x16x24xf32, #tpu.memory_space<vmem>>) attributes {dimension_semantics = [#tpu.dimension_semantics<parallel>], iteration_bounds = array<i64: 2>, scalar_prefetch = 0 : i64, scratch_operands = 0 : i64, tpu.core_type = #tpu.core_type<tc>, window_params = [{transform_indices = @transform_0, window_bounds = array<i64: 1, 128, 4>}, {transform_indices = @transform_1, window_bounds = array<i64: 1, 16, 3>}, {pipeline_mode = #tpu.pipeline_mode<synchronous>, transform_indices = @transform_2, window_bounds = array<i64: 4, 11>}, {pipeline_mode = #tpu.pipeline_mode<synchronous>, transform_indices = @transform_3, window_bounds = array<i64: 3, 11>}, {pipeline_mode = #tpu.pipeline_mode<synchronous>, transform_indices = @transform_4, window_bounds = array<i64: 1, 11>}, {transform_indices = @transform_5, window_bounds = array<i64: 1, 16, 24>}]} {
    %c0 = arith.constant 0 : index
    %c0_0 = arith.constant 0 : index
    %c0_1 = arith.constant 0 : index
    %0 = vector.load %arg1[%c0, %c0_0, %c0_1] : memref<1x128x4xf32, #tpu.memory_space<vmem>>, vector<1x128x4xf32>
    %1 = vector.shape_cast %0 : vector<1x128x4xf32> to vector<128x4xf32>
    %c0_2 = arith.constant 0 : index
    %c0_3 = arith.constant 0 : index
    %2 = vector.load %arg5[%c0_2, %c0_3] : memref<1x11xf32, #tpu.memory_space<vmem>>, vector<1x11xf32>
    %3 = vector.shape_cast %2 : vector<1x11xf32> to vector<1x11xf32>
    %4 = vector.broadcast %3 : vector<1x11xf32> to vector<128x11xf32>
    %5 = vector.extract_strided_slice %1 {offsets = [0, 0], sizes = [128, 1], strides = [1, 1]} : vector<128x4xf32> to vector<128x1xf32>
    %c0_4 = arith.constant 0 : index
    %c0_5 = arith.constant 0 : index
    %6 = vector.load %arg3[%c0_4, %c0_5] : memref<4x11xf32, #tpu.memory_space<vmem>>, vector<1x11xf32>
    %7 = vector.broadcast %5 : vector<128x1xf32> to vector<128x11xf32>
    %8 = vector.broadcast %6 : vector<1x11xf32> to vector<128x11xf32>
    %9 = arith.mulf %7, %8 : vector<128x11xf32>
    %10 = arith.addf %4, %9 : vector<128x11xf32>
    %11 = vector.extract_strided_slice %1 {offsets = [0, 1], sizes = [128, 1], strides = [1, 1]} : vector<128x4xf32> to vector<128x1xf32>
    %c1 = arith.constant 1 : index
    %c0_6 = arith.constant 0 : index
    %12 = vector.load %arg3[%c1, %c0_6] : memref<4x11xf32, #tpu.memory_space<vmem>>, vector<1x11xf32>
    %13 = vector.broadcast %11 : vector<128x1xf32> to vector<128x11xf32>
    %14 = vector.broadcast %12 : vector<1x11xf32> to vector<128x11xf32>
    %15 = arith.mulf %13, %14 : vector<128x11xf32>
    %16 = arith.addf %10, %15 : vector<128x11xf32>
    %17 = vector.extract_strided_slice %1 {offsets = [0, 2], sizes = [128, 1], strides = [1, 1]} : vector<128x4xf32> to vector<128x1xf32>
    %c2 = arith.constant 2 : index
    %c0_7 = arith.constant 0 : index
    %18 = vector.load %arg3[%c2, %c0_7] : memref<4x11xf32, #tpu.memory_space<vmem>>, vector<1x11xf32>
    %19 = vector.broadcast %17 : vector<128x1xf32> to vector<128x11xf32>
    %20 = vector.broadcast %18 : vector<1x11xf32> to vector<128x11xf32>
    %21 = arith.mulf %19, %20 : vector<128x11xf32>
    %22 = arith.addf %16, %21 : vector<128x11xf32>
    %23 = vector.extract_strided_slice %1 {offsets = [0, 3], sizes = [128, 1], strides = [1, 1]} : vector<128x4xf32> to vector<128x1xf32>
    %c3 = arith.constant 3 : index
    %c0_8 = arith.constant 0 : index
    %24 = vector.load %arg3[%c3, %c0_8] : memref<4x11xf32, #tpu.memory_space<vmem>>, vector<1x11xf32>
    %25 = vector.broadcast %23 : vector<128x1xf32> to vector<128x11xf32>
    %26 = vector.broadcast %24 : vector<1x11xf32> to vector<128x11xf32>
    %27 = arith.mulf %25, %26 : vector<128x11xf32>
    %28 = arith.addf %22, %27 : vector<128x11xf32>
    %c0_9 = arith.constant 0 : index
    %c0_10 = arith.constant 0 : index
    %29 = vector.load %arg4[%c0_9, %c0_10] : memref<3x11xf32, #tpu.memory_space<vmem>>, vector<1x11xf32>
    %c1_11 = arith.constant 1 : index
    %c0_12 = arith.constant 0 : index
    %30 = vector.load %arg4[%c1_11, %c0_12] : memref<3x11xf32, #tpu.memory_space<vmem>>, vector<1x11xf32>
    %c2_13 = arith.constant 2 : index
    %c0_14 = arith.constant 0 : index
    %31 = vector.load %arg4[%c2_13, %c0_14] : memref<3x11xf32, #tpu.memory_space<vmem>>, vector<1x11xf32>
    %32 = tpu.iota {dimensions = array<i32: 1>} : vector<16x9xi32>
    %33 = arith.sitofp %32 : vector<16x9xi32> to vector<16x9xf32>
    %cst = arith.constant 1.000000e+09 : f32
    %34 = vector.broadcast %cst : f32 to vector<16x9xf32>
    %c0_15 = arith.constant 0 : index
    %c0_16 = arith.constant 0 : index
    %c0_17 = arith.constant 0 : index
    %35 = vector.load %arg2[%c0_15, %c0_16, %c0_17] : memref<1x16x3xf32, #tpu.memory_space<vmem>>, vector<1x16x3xf32>
    %36 = vector.shape_cast %35 : vector<1x16x3xf32> to vector<16x3xf32>
    %37 = vector.extract_strided_slice %36 {offsets = [0, 0], sizes = [16, 1], strides = [1, 1]} : vector<16x3xf32> to vector<16x1xf32>
    %38 = vector.extract_strided_slice %36 {offsets = [0, 1], sizes = [16, 1], strides = [1, 1]} : vector<16x3xf32> to vector<16x1xf32>
    %39 = vector.extract_strided_slice %36 {offsets = [0, 2], sizes = [16, 1], strides = [1, 1]} : vector<16x3xf32> to vector<16x1xf32>
    %40 = vector.extract_strided_slice %1 {offsets = [0, 0], sizes = [16, 4], strides = [1, 1]} : vector<128x4xf32> to vector<16x4xf32>
    %41 = vector.extract_strided_slice %28 {offsets = [0, 0], sizes = [16, 11], strides = [1, 1]} : vector<128x11xf32> to vector<16x11xf32>
    %42 = vector.broadcast %37 : vector<16x1xf32> to vector<16x11xf32>
    %43 = vector.broadcast %29 : vector<1x11xf32> to vector<16x11xf32>
    %44 = arith.mulf %42, %43 : vector<16x11xf32>
    %45 = arith.addf %41, %44 : vector<16x11xf32>
    %46 = vector.broadcast %38 : vector<16x1xf32> to vector<16x11xf32>
    %47 = vector.broadcast %30 : vector<1x11xf32> to vector<16x11xf32>
    %48 = arith.mulf %46, %47 : vector<16x11xf32>
    %49 = arith.addf %45, %48 : vector<16x11xf32>
    %50 = vector.broadcast %39 : vector<16x1xf32> to vector<16x11xf32>
    %51 = vector.broadcast %31 : vector<1x11xf32> to vector<16x11xf32>
    %52 = arith.mulf %50, %51 : vector<16x11xf32>
    %53 = arith.addf %49, %52 : vector<16x11xf32>
    %54 = vector.extract_strided_slice %53 {offsets = [0, 0], sizes = [16, 9], strides = [1, 1]} : vector<16x11xf32> to vector<16x9xf32>
    %55 = vector.extract_strided_slice %53 {offsets = [0, 9], sizes = [16, 1], strides = [1, 1]} : vector<16x11xf32> to vector<16x1xf32>
    %56 = vector.extract_strided_slice %53 {offsets = [0, 10], sizes = [16, 1], strides = [1, 1]} : vector<16x11xf32> to vector<16x1xf32>
    %cst_18 = arith.constant dense<0xFF800000> : vector<16xf32>
    %57 = vector.multi_reduction <maximumf>, %54, %cst_18 [1] : vector<16x9xf32> to vector<16xf32>
    %58 = vector.shape_cast %57 : vector<16xf32> to vector<16x1xf32>
    %59 = vector.broadcast %58 : vector<16x1xf32> to vector<16x9xf32>
    %60 = arith.subf %54, %59 : vector<16x9xf32>
    %61 = math.exp %60 : vector<16x9xf32>
    %cst_19 = arith.constant dense<0.000000e+00> : vector<16xf32>
    %62 = vector.multi_reduction <add>, %61, %cst_19 [1] : vector<16x9xf32> to vector<16xf32>
    %63 = vector.shape_cast %62 : vector<16xf32> to vector<16x1xf32>
    %64 = math.log %63 : vector<16x1xf32>
    %cst_20 = arith.constant 0.000000e+00 : f32
    %65 = vector.broadcast %cst_20 : f32 to vector<16x1xf32>
    %66 = arith.subf %65, %64 : vector<16x1xf32>
    %67 = vector.broadcast %58 : vector<16x1xf32> to vector<16x9xf32>
    %68 = arith.cmpf oge, %54, %67 : vector<16x9xf32>
    %69 = arith.select %68, %33, %34 : vector<16x9xi1>, vector<16x9xf32>
    %cst_21 = arith.constant dense<0x7F800000> : vector<16xf32>
    %70 = vector.multi_reduction <minimumf>, %69, %cst_21 [1] : vector<16x9xf32> to vector<16xf32>
    %71 = vector.shape_cast %70 : vector<16xf32> to vector<16x1xf32>
    %cst_22 = arith.constant 8.000000e+00 : f32
    %72 = vector.broadcast %cst_22 : f32 to vector<16x1xf32>
    %73 = arith.addf %71, %72 : vector<16x1xf32>
    %74 = arith.subf %55, %56 : vector<16x1xf32>
    %75 = math.exp %74 : vector<16x1xf32>
    %cst_23 = arith.constant 1.000000e+00 : f32
    %76 = vector.broadcast %cst_23 : f32 to vector<16x1xf32>
    %77 = arith.addf %76, %75 : vector<16x1xf32>
    %cst_24 = arith.constant 1.000000e+00 : f32
    %78 = vector.broadcast %cst_24 : f32 to vector<16x1xf32>
    %79 = arith.divf %78, %77 : vector<16x1xf32>
    %80 = math.exp %79 : vector<16x1xf32>
    %81 = vector.extract_strided_slice %80 {offsets = [0, 0], sizes = [8, 1], strides = [1, 1]} : vector<16x1xf32> to vector<8x1xf32>
    %cst_25 = arith.constant dense<0.000000e+00> : vector<1xf32>
    %82 = vector.multi_reduction <add>, %81, %cst_25 [0] : vector<8x1xf32> to vector<1xf32>
    %83 = vector.shape_cast %82 : vector<1xf32> to vector<1x1xf32>
    %84 = vector.shape_cast %83 : vector<1x1xf32> to vector<1x1xf32>
    %85 = vector.broadcast %84 : vector<1x1xf32> to vector<8x1xf32>
    %86 = vector.extract_strided_slice %80 {offsets = [8, 0], sizes = [8, 1], strides = [1, 1]} : vector<16x1xf32> to vector<8x1xf32>
    %cst_26 = arith.constant dense<0.000000e+00> : vector<1xf32>
    %87 = vector.multi_reduction <add>, %86, %cst_26 [0] : vector<8x1xf32> to vector<1xf32>
    %88 = vector.shape_cast %87 : vector<1xf32> to vector<1x1xf32>
    %89 = vector.shape_cast %88 : vector<1x1xf32> to vector<1x1xf32>
    %90 = vector.broadcast %89 : vector<1x1xf32> to vector<8x1xf32>
    %91 = tpu.concatenate %85, %90 in 0 : vector<8x1xf32>, vector<8x1xf32> -> vector<16x1xf32>
    %92 = arith.divf %80, %91 : vector<16x1xf32>
    %93 = vector.extract_strided_slice %40 {offsets = [0, 0], sizes = [16, 1], strides = [1, 1]} : vector<16x4xf32> to vector<16x1xf32>
    %94 = vector.extract_strided_slice %40 {offsets = [0, 2], sizes = [16, 1], strides = [1, 1]} : vector<16x4xf32> to vector<16x1xf32>
    %cst_27 = arith.constant 5.000000e-02 : f32
    %95 = vector.broadcast %cst_27 : f32 to vector<16x1xf32>
    %96 = arith.mulf %95, %94 : vector<16x1xf32>
    %97 = arith.addf %38, %96 : vector<16x1xf32>
    %cst_28 = arith.constant 5.000000e+02 : f32
    %98 = vector.broadcast %cst_28 : f32 to vector<16x1xf32>
    %99 = arith.subf %97, %98 : vector<16x1xf32>
    %100 = arith.mulf %99, %99 : vector<16x1xf32>
    %cst_29 = arith.constant 1.000000e+02 : f32
    %101 = vector.broadcast %cst_29 : f32 to vector<16x1xf32>
    %102 = arith.addf %100, %101 : vector<16x1xf32>
    %103 = math.sqrt %102 : vector<16x1xf32>
    %cst_30 = arith.constant 1.000000e+01 : f32
    %104 = vector.broadcast %cst_30 : f32 to vector<16x1xf32>
    %105 = arith.mulf %92, %104 : vector<16x1xf32>
    %cst_31 = arith.constant 1.000000e+07 : f32
    %106 = vector.broadcast %cst_31 : f32 to vector<16x1xf32>
    %107 = arith.mulf %106, %93 : vector<16x1xf32>
    %108 = arith.mulf %103, %103 : vector<16x1xf32>
    %109 = arith.divf %107, %108 : vector<16x1xf32>
    %cst_32 = arith.constant 1.000000e+00 : f32
    %110 = vector.broadcast %cst_32 : f32 to vector<16x1xf32>
    %111 = arith.addf %110, %109 : vector<16x1xf32>
    %112 = math.log %111 : vector<16x1xf32>
    %cst_33 = arith.constant 1.44269502 : f32
    %113 = vector.broadcast %cst_33 : f32 to vector<16x1xf32>
    %114 = arith.mulf %112, %113 : vector<16x1xf32>
    %115 = arith.mulf %105, %114 : vector<16x1xf32>
    %cst_34 = arith.constant 3.125000e-02 : f32
    %116 = vector.broadcast %cst_34 : f32 to vector<16x1xf32>
    %117 = arith.mulf %73, %116 : vector<16x1xf32>
    %118 = arith.divf %117, %115 : vector<16x1xf32>
    %cst_35 = arith.constant 5.000000e-02 : f32
    %119 = vector.broadcast %cst_35 : f32 to vector<16x1xf32>
    %120 = arith.addf %119, %118 : vector<16x1xf32>
    %121 = vector.extract_strided_slice %120 {offsets = [0, 0], sizes = [8, 1], strides = [1, 1]} : vector<16x1xf32> to vector<8x1xf32>
    %cst_36 = arith.constant dense<0xFF800000> : vector<1xf32>
    %122 = vector.multi_reduction <maximumf>, %121, %cst_36 [0] : vector<8x1xf32> to vector<1xf32>
    %123 = vector.shape_cast %122 : vector<1xf32> to vector<1x1xf32>
    %124 = vector.shape_cast %123 : vector<1x1xf32> to vector<1x1xf32>
    %125 = vector.broadcast %124 : vector<1x1xf32> to vector<8x1xf32>
    %126 = vector.extract_strided_slice %120 {offsets = [8, 0], sizes = [8, 1], strides = [1, 1]} : vector<16x1xf32> to vector<8x1xf32>
    %cst_37 = arith.constant dense<0xFF800000> : vector<1xf32>
    %127 = vector.multi_reduction <maximumf>, %126, %cst_37 [0] : vector<8x1xf32> to vector<1xf32>
    %128 = vector.shape_cast %127 : vector<1xf32> to vector<1x1xf32>
    %129 = vector.shape_cast %128 : vector<1x1xf32> to vector<1x1xf32>
    %130 = vector.broadcast %129 : vector<1x1xf32> to vector<8x1xf32>
    %131 = tpu.concatenate %125, %130 in 0 : vector<8x1xf32>, vector<8x1xf32> -> vector<16x1xf32>
    %132 = arith.mulf %131, %94 : vector<16x1xf32>
    %133 = arith.addf %132, %38 : vector<16x1xf32>
    %134 = vector.extract_strided_slice %1 {offsets = [16, 0], sizes = [16, 4], strides = [1, 1]} : vector<128x4xf32> to vector<16x4xf32>
    %135 = vector.extract_strided_slice %28 {offsets = [16, 0], sizes = [16, 11], strides = [1, 1]} : vector<128x11xf32> to vector<16x11xf32>
    %136 = vector.broadcast %131 : vector<16x1xf32> to vector<16x11xf32>
    %137 = vector.broadcast %29 : vector<1x11xf32> to vector<16x11xf32>
    %138 = arith.mulf %136, %137 : vector<16x11xf32>
    %139 = arith.addf %135, %138 : vector<16x11xf32>
    %140 = vector.broadcast %133 : vector<16x1xf32> to vector<16x11xf32>
    %141 = vector.broadcast %30 : vector<1x11xf32> to vector<16x11xf32>
    %142 = arith.mulf %140, %141 : vector<16x11xf32>
    %143 = arith.addf %139, %142 : vector<16x11xf32>
    %144 = vector.broadcast %103 : vector<16x1xf32> to vector<16x11xf32>
    %145 = vector.broadcast %31 : vector<1x11xf32> to vector<16x11xf32>
    %146 = arith.mulf %144, %145 : vector<16x11xf32>
    %147 = arith.addf %143, %146 : vector<16x11xf32>
    %148 = vector.extract_strided_slice %147 {offsets = [0, 0], sizes = [16, 9], strides = [1, 1]} : vector<16x11xf32> to vector<16x9xf32>
    %149 = vector.extract_strided_slice %147 {offsets = [0, 9], sizes = [16, 1], strides = [1, 1]} : vector<16x11xf32> to vector<16x1xf32>
    %150 = vector.extract_strided_slice %147 {offsets = [0, 10], sizes = [16, 1], strides = [1, 1]} : vector<16x11xf32> to vector<16x1xf32>
    %cst_38 = arith.constant dense<0xFF800000> : vector<16xf32>
    %151 = vector.multi_reduction <maximumf>, %148, %cst_38 [1] : vector<16x9xf32> to vector<16xf32>
    %152 = vector.shape_cast %151 : vector<16xf32> to vector<16x1xf32>
    %153 = vector.broadcast %152 : vector<16x1xf32> to vector<16x9xf32>
    %154 = arith.subf %148, %153 : vector<16x9xf32>
    %155 = math.exp %154 : vector<16x9xf32>
    %cst_39 = arith.constant dense<0.000000e+00> : vector<16xf32>
    %156 = vector.multi_reduction <add>, %155, %cst_39 [1] : vector<16x9xf32> to vector<16xf32>
    %157 = vector.shape_cast %156 : vector<16xf32> to vector<16x1xf32>
    %158 = math.log %157 : vector<16x1xf32>
    %cst_40 = arith.constant 0.000000e+00 : f32
    %159 = vector.broadcast %cst_40 : f32 to vector<16x1xf32>
    %160 = arith.subf %159, %158 : vector<16x1xf32>
    %161 = vector.broadcast %152 : vector<16x1xf32> to vector<16x9xf32>
    %162 = arith.cmpf oge, %148, %161 : vector<16x9xf32>
    %163 = arith.select %162, %33, %34 : vector<16x9xi1>, vector<16x9xf32>
    %cst_41 = arith.constant dense<0x7F800000> : vector<16xf32>
    %164 = vector.multi_reduction <minimumf>, %163, %cst_41 [1] : vector<16x9xf32> to vector<16xf32>
    %165 = vector.shape_cast %164 : vector<16xf32> to vector<16x1xf32>
    %cst_42 = arith.constant 8.000000e+00 : f32
    %166 = vector.broadcast %cst_42 : f32 to vector<16x1xf32>
    %167 = arith.addf %165, %166 : vector<16x1xf32>
    %168 = arith.subf %149, %150 : vector<16x1xf32>
    %169 = math.exp %168 : vector<16x1xf32>
    %cst_43 = arith.constant 1.000000e+00 : f32
    %170 = vector.broadcast %cst_43 : f32 to vector<16x1xf32>
    %171 = arith.addf %170, %169 : vector<16x1xf32>
    %cst_44 = arith.constant 1.000000e+00 : f32
    %172 = vector.broadcast %cst_44 : f32 to vector<16x1xf32>
    %173 = arith.divf %172, %171 : vector<16x1xf32>
    %174 = math.exp %173 : vector<16x1xf32>
    %175 = vector.extract_strided_slice %174 {offsets = [0, 0], sizes = [8, 1], strides = [1, 1]} : vector<16x1xf32> to vector<8x1xf32>
    %cst_45 = arith.constant dense<0.000000e+00> : vector<1xf32>
    %176 = vector.multi_reduction <add>, %175, %cst_45 [0] : vector<8x1xf32> to vector<1xf32>
    %177 = vector.shape_cast %176 : vector<1xf32> to vector<1x1xf32>
    %178 = vector.shape_cast %177 : vector<1x1xf32> to vector<1x1xf32>
    %179 = vector.broadcast %178 : vector<1x1xf32> to vector<8x1xf32>
    %180 = vector.extract_strided_slice %174 {offsets = [8, 0], sizes = [8, 1], strides = [1, 1]} : vector<16x1xf32> to vector<8x1xf32>
    %cst_46 = arith.constant dense<0.000000e+00> : vector<1xf32>
    %181 = vector.multi_reduction <add>, %180, %cst_46 [0] : vector<8x1xf32> to vector<1xf32>
    %182 = vector.shape_cast %181 : vector<1xf32> to vector<1x1xf32>
    %183 = vector.shape_cast %182 : vector<1x1xf32> to vector<1x1xf32>
    %184 = vector.broadcast %183 : vector<1x1xf32> to vector<8x1xf32>
    %185 = tpu.concatenate %179, %184 in 0 : vector<8x1xf32>, vector<8x1xf32> -> vector<16x1xf32>
    %186 = arith.divf %174, %185 : vector<16x1xf32>
    %187 = vector.extract_strided_slice %134 {offsets = [0, 0], sizes = [16, 1], strides = [1, 1]} : vector<16x4xf32> to vector<16x1xf32>
    %188 = vector.extract_strided_slice %134 {offsets = [0, 2], sizes = [16, 1], strides = [1, 1]} : vector<16x4xf32> to vector<16x1xf32>
    %cst_47 = arith.constant 5.000000e-02 : f32
    %189 = vector.broadcast %cst_47 : f32 to vector<16x1xf32>
    %190 = arith.mulf %189, %188 : vector<16x1xf32>
    %191 = arith.addf %133, %190 : vector<16x1xf32>
    %cst_48 = arith.constant 5.000000e+02 : f32
    %192 = vector.broadcast %cst_48 : f32 to vector<16x1xf32>
    %193 = arith.subf %191, %192 : vector<16x1xf32>
    %194 = arith.mulf %193, %193 : vector<16x1xf32>
    %cst_49 = arith.constant 1.000000e+02 : f32
    %195 = vector.broadcast %cst_49 : f32 to vector<16x1xf32>
    %196 = arith.addf %194, %195 : vector<16x1xf32>
    %197 = math.sqrt %196 : vector<16x1xf32>
    %cst_50 = arith.constant 1.000000e+01 : f32
    %198 = vector.broadcast %cst_50 : f32 to vector<16x1xf32>
    %199 = arith.mulf %186, %198 : vector<16x1xf32>
    %cst_51 = arith.constant 1.000000e+07 : f32
    %200 = vector.broadcast %cst_51 : f32 to vector<16x1xf32>
    %201 = arith.mulf %200, %187 : vector<16x1xf32>
    %202 = arith.mulf %197, %197 : vector<16x1xf32>
    %203 = arith.divf %201, %202 : vector<16x1xf32>
    %cst_52 = arith.constant 1.000000e+00 : f32
    %204 = vector.broadcast %cst_52 : f32 to vector<16x1xf32>
    %205 = arith.addf %204, %203 : vector<16x1xf32>
    %206 = math.log %205 : vector<16x1xf32>
    %cst_53 = arith.constant 1.44269502 : f32
    %207 = vector.broadcast %cst_53 : f32 to vector<16x1xf32>
    %208 = arith.mulf %206, %207 : vector<16x1xf32>
    %209 = arith.mulf %199, %208 : vector<16x1xf32>
    %cst_54 = arith.constant 3.125000e-02 : f32
    %210 = vector.broadcast %cst_54 : f32 to vector<16x1xf32>
    %211 = arith.mulf %167, %210 : vector<16x1xf32>
    %212 = arith.divf %211, %209 : vector<16x1xf32>
    %cst_55 = arith.constant 5.000000e-02 : f32
    %213 = vector.broadcast %cst_55 : f32 to vector<16x1xf32>
    %214 = arith.addf %213, %212 : vector<16x1xf32>
    %215 = vector.extract_strided_slice %214 {offsets = [0, 0], sizes = [8, 1], strides = [1, 1]} : vector<16x1xf32> to vector<8x1xf32>
    %cst_56 = arith.constant dense<0xFF800000> : vector<1xf32>
    %216 = vector.multi_reduction <maximumf>, %215, %cst_56 [0] : vector<8x1xf32> to vector<1xf32>
    %217 = vector.shape_cast %216 : vector<1xf32> to vector<1x1xf32>
    %218 = vector.shape_cast %217 : vector<1x1xf32> to vector<1x1xf32>
    %219 = vector.broadcast %218 : vector<1x1xf32> to vector<8x1xf32>
    %220 = vector.extract_strided_slice %214 {offsets = [8, 0], sizes = [8, 1], strides = [1, 1]} : vector<16x1xf32> to vector<8x1xf32>
    %cst_57 = arith.constant dense<0xFF800000> : vector<1xf32>
    %221 = vector.multi_reduction <maximumf>, %220, %cst_57 [0] : vector<8x1xf32> to vector<1xf32>
    %222 = vector.shape_cast %221 : vector<1xf32> to vector<1x1xf32>
    %223 = vector.shape_cast %222 : vector<1x1xf32> to vector<1x1xf32>
    %224 = vector.broadcast %223 : vector<1x1xf32> to vector<8x1xf32>
    %225 = tpu.concatenate %219, %224 in 0 : vector<8x1xf32>, vector<8x1xf32> -> vector<16x1xf32>
    %226 = arith.mulf %225, %188 : vector<16x1xf32>
    %227 = arith.addf %226, %133 : vector<16x1xf32>
    %228 = vector.extract_strided_slice %1 {offsets = [32, 0], sizes = [16, 4], strides = [1, 1]} : vector<128x4xf32> to vector<16x4xf32>
    %229 = vector.extract_strided_slice %28 {offsets = [32, 0], sizes = [16, 11], strides = [1, 1]} : vector<128x11xf32> to vector<16x11xf32>
    %230 = vector.broadcast %225 : vector<16x1xf32> to vector<16x11xf32>
    %231 = vector.broadcast %29 : vector<1x11xf32> to vector<16x11xf32>
    %232 = arith.mulf %230, %231 : vector<16x11xf32>
    %233 = arith.addf %229, %232 : vector<16x11xf32>
    %234 = vector.broadcast %227 : vector<16x1xf32> to vector<16x11xf32>
    %235 = vector.broadcast %30 : vector<1x11xf32> to vector<16x11xf32>
    %236 = arith.mulf %234, %235 : vector<16x11xf32>
    %237 = arith.addf %233, %236 : vector<16x11xf32>
    %238 = vector.broadcast %197 : vector<16x1xf32> to vector<16x11xf32>
    %239 = vector.broadcast %31 : vector<1x11xf32> to vector<16x11xf32>
    %240 = arith.mulf %238, %239 : vector<16x11xf32>
    %241 = arith.addf %237, %240 : vector<16x11xf32>
    %242 = vector.extract_strided_slice %241 {offsets = [0, 0], sizes = [16, 9], strides = [1, 1]} : vector<16x11xf32> to vector<16x9xf32>
    %243 = vector.extract_strided_slice %241 {offsets = [0, 9], sizes = [16, 1], strides = [1, 1]} : vector<16x11xf32> to vector<16x1xf32>
    %244 = vector.extract_strided_slice %241 {offsets = [0, 10], sizes = [16, 1], strides = [1, 1]} : vector<16x11xf32> to vector<16x1xf32>
    %cst_58 = arith.constant dense<0xFF800000> : vector<16xf32>
    %245 = vector.multi_reduction <maximumf>, %242, %cst_58 [1] : vector<16x9xf32> to vector<16xf32>
    %246 = vector.shape_cast %245 : vector<16xf32> to vector<16x1xf32>
    %247 = vector.broadcast %246 : vector<16x1xf32> to vector<16x9xf32>
    %248 = arith.subf %242, %247 : vector<16x9xf32>
    %249 = math.exp %248 : vector<16x9xf32>
    %cst_59 = arith.constant dense<0.000000e+00> : vector<16xf32>
    %250 = vector.multi_reduction <add>, %249, %cst_59 [1] : vector<16x9xf32> to vector<16xf32>
    %251 = vector.shape_cast %250 : vector<16xf32> to vector<16x1xf32>
    %252 = math.log %251 : vector<16x1xf32>
    %cst_60 = arith.constant 0.000000e+00 : f32
    %253 = vector.broadcast %cst_60 : f32 to vector<16x1xf32>
    %254 = arith.subf %253, %252 : vector<16x1xf32>
    %255 = vector.broadcast %246 : vector<16x1xf32> to vector<16x9xf32>
    %256 = arith.cmpf oge, %242, %255 : vector<16x9xf32>
    %257 = arith.select %256, %33, %34 : vector<16x9xi1>, vector<16x9xf32>
    %cst_61 = arith.constant dense<0x7F800000> : vector<16xf32>
    %258 = vector.multi_reduction <minimumf>, %257, %cst_61 [1] : vector<16x9xf32> to vector<16xf32>
    %259 = vector.shape_cast %258 : vector<16xf32> to vector<16x1xf32>
    %cst_62 = arith.constant 8.000000e+00 : f32
    %260 = vector.broadcast %cst_62 : f32 to vector<16x1xf32>
    %261 = arith.addf %259, %260 : vector<16x1xf32>
    %262 = arith.subf %243, %244 : vector<16x1xf32>
    %263 = math.exp %262 : vector<16x1xf32>
    %cst_63 = arith.constant 1.000000e+00 : f32
    %264 = vector.broadcast %cst_63 : f32 to vector<16x1xf32>
    %265 = arith.addf %264, %263 : vector<16x1xf32>
    %cst_64 = arith.constant 1.000000e+00 : f32
    %266 = vector.broadcast %cst_64 : f32 to vector<16x1xf32>
    %267 = arith.divf %266, %265 : vector<16x1xf32>
    %268 = math.exp %267 : vector<16x1xf32>
    %269 = vector.extract_strided_slice %268 {offsets = [0, 0], sizes = [8, 1], strides = [1, 1]} : vector<16x1xf32> to vector<8x1xf32>
    %cst_65 = arith.constant dense<0.000000e+00> : vector<1xf32>
    %270 = vector.multi_reduction <add>, %269, %cst_65 [0] : vector<8x1xf32> to vector<1xf32>
    %271 = vector.shape_cast %270 : vector<1xf32> to vector<1x1xf32>
    %272 = vector.shape_cast %271 : vector<1x1xf32> to vector<1x1xf32>
    %273 = vector.broadcast %272 : vector<1x1xf32> to vector<8x1xf32>
    %274 = vector.extract_strided_slice %268 {offsets = [8, 0], sizes = [8, 1], strides = [1, 1]} : vector<16x1xf32> to vector<8x1xf32>
    %cst_66 = arith.constant dense<0.000000e+00> : vector<1xf32>
    %275 = vector.multi_reduction <add>, %274, %cst_66 [0] : vector<8x1xf32> to vector<1xf32>
    %276 = vector.shape_cast %275 : vector<1xf32> to vector<1x1xf32>
    %277 = vector.shape_cast %276 : vector<1x1xf32> to vector<1x1xf32>
    %278 = vector.broadcast %277 : vector<1x1xf32> to vector<8x1xf32>
    %279 = tpu.concatenate %273, %278 in 0 : vector<8x1xf32>, vector<8x1xf32> -> vector<16x1xf32>
    %280 = arith.divf %268, %279 : vector<16x1xf32>
    %281 = vector.extract_strided_slice %228 {offsets = [0, 0], sizes = [16, 1], strides = [1, 1]} : vector<16x4xf32> to vector<16x1xf32>
    %282 = vector.extract_strided_slice %228 {offsets = [0, 2], sizes = [16, 1], strides = [1, 1]} : vector<16x4xf32> to vector<16x1xf32>
    %cst_67 = arith.constant 5.000000e-02 : f32
    %283 = vector.broadcast %cst_67 : f32 to vector<16x1xf32>
    %284 = arith.mulf %283, %282 : vector<16x1xf32>
    %285 = arith.addf %227, %284 : vector<16x1xf32>
    %cst_68 = arith.constant 5.000000e+02 : f32
    %286 = vector.broadcast %cst_68 : f32 to vector<16x1xf32>
    %287 = arith.subf %285, %286 : vector<16x1xf32>
    %288 = arith.mulf %287, %287 : vector<16x1xf32>
    %cst_69 = arith.constant 1.000000e+02 : f32
    %289 = vector.broadcast %cst_69 : f32 to vector<16x1xf32>
    %290 = arith.addf %288, %289 : vector<16x1xf32>
    %291 = math.sqrt %290 : vector<16x1xf32>
    %cst_70 = arith.constant 1.000000e+01 : f32
    %292 = vector.broadcast %cst_70 : f32 to vector<16x1xf32>
    %293 = arith.mulf %280, %292 : vector<16x1xf32>
    %cst_71 = arith.constant 1.000000e+07 : f32
    %294 = vector.broadcast %cst_71 : f32 to vector<16x1xf32>
    %295 = arith.mulf %294, %281 : vector<16x1xf32>
    %296 = arith.mulf %291, %291 : vector<16x1xf32>
    %297 = arith.divf %295, %296 : vector<16x1xf32>
    %cst_72 = arith.constant 1.000000e+00 : f32
    %298 = vector.broadcast %cst_72 : f32 to vector<16x1xf32>
    %299 = arith.addf %298, %297 : vector<16x1xf32>
    %300 = math.log %299 : vector<16x1xf32>
    %cst_73 = arith.constant 1.44269502 : f32
    %301 = vector.broadcast %cst_73 : f32 to vector<16x1xf32>
    %302 = arith.mulf %300, %301 : vector<16x1xf32>
    %303 = arith.mulf %293, %302 : vector<16x1xf32>
    %cst_74 = arith.constant 3.125000e-02 : f32
    %304 = vector.broadcast %cst_74 : f32 to vector<16x1xf32>
    %305 = arith.mulf %261, %304 : vector<16x1xf32>
    %306 = arith.divf %305, %303 : vector<16x1xf32>
    %cst_75 = arith.constant 5.000000e-02 : f32
    %307 = vector.broadcast %cst_75 : f32 to vector<16x1xf32>
    %308 = arith.addf %307, %306 : vector<16x1xf32>
    %309 = vector.extract_strided_slice %308 {offsets = [0, 0], sizes = [8, 1], strides = [1, 1]} : vector<16x1xf32> to vector<8x1xf32>
    %cst_76 = arith.constant dense<0xFF800000> : vector<1xf32>
    %310 = vector.multi_reduction <maximumf>, %309, %cst_76 [0] : vector<8x1xf32> to vector<1xf32>
    %311 = vector.shape_cast %310 : vector<1xf32> to vector<1x1xf32>
    %312 = vector.shape_cast %311 : vector<1x1xf32> to vector<1x1xf32>
    %313 = vector.broadcast %312 : vector<1x1xf32> to vector<8x1xf32>
    %314 = vector.extract_strided_slice %308 {offsets = [8, 0], sizes = [8, 1], strides = [1, 1]} : vector<16x1xf32> to vector<8x1xf32>
    %cst_77 = arith.constant dense<0xFF800000> : vector<1xf32>
    %315 = vector.multi_reduction <maximumf>, %314, %cst_77 [0] : vector<8x1xf32> to vector<1xf32>
    %316 = vector.shape_cast %315 : vector<1xf32> to vector<1x1xf32>
    %317 = vector.shape_cast %316 : vector<1x1xf32> to vector<1x1xf32>
    %318 = vector.broadcast %317 : vector<1x1xf32> to vector<8x1xf32>
    %319 = tpu.concatenate %313, %318 in 0 : vector<8x1xf32>, vector<8x1xf32> -> vector<16x1xf32>
    %320 = arith.mulf %319, %282 : vector<16x1xf32>
    %321 = arith.addf %320, %227 : vector<16x1xf32>
    %322 = vector.extract_strided_slice %1 {offsets = [48, 0], sizes = [16, 4], strides = [1, 1]} : vector<128x4xf32> to vector<16x4xf32>
    %323 = vector.extract_strided_slice %28 {offsets = [48, 0], sizes = [16, 11], strides = [1, 1]} : vector<128x11xf32> to vector<16x11xf32>
    %324 = vector.broadcast %319 : vector<16x1xf32> to vector<16x11xf32>
    %325 = vector.broadcast %29 : vector<1x11xf32> to vector<16x11xf32>
    %326 = arith.mulf %324, %325 : vector<16x11xf32>
    %327 = arith.addf %323, %326 : vector<16x11xf32>
    %328 = vector.broadcast %321 : vector<16x1xf32> to vector<16x11xf32>
    %329 = vector.broadcast %30 : vector<1x11xf32> to vector<16x11xf32>
    %330 = arith.mulf %328, %329 : vector<16x11xf32>
    %331 = arith.addf %327, %330 : vector<16x11xf32>
    %332 = vector.broadcast %291 : vector<16x1xf32> to vector<16x11xf32>
    %333 = vector.broadcast %31 : vector<1x11xf32> to vector<16x11xf32>
    %334 = arith.mulf %332, %333 : vector<16x11xf32>
    %335 = arith.addf %331, %334 : vector<16x11xf32>
    %336 = vector.extract_strided_slice %335 {offsets = [0, 0], sizes = [16, 9], strides = [1, 1]} : vector<16x11xf32> to vector<16x9xf32>
    %337 = vector.extract_strided_slice %335 {offsets = [0, 9], sizes = [16, 1], strides = [1, 1]} : vector<16x11xf32> to vector<16x1xf32>
    %338 = vector.extract_strided_slice %335 {offsets = [0, 10], sizes = [16, 1], strides = [1, 1]} : vector<16x11xf32> to vector<16x1xf32>
    %cst_78 = arith.constant dense<0xFF800000> : vector<16xf32>
    %339 = vector.multi_reduction <maximumf>, %336, %cst_78 [1] : vector<16x9xf32> to vector<16xf32>
    %340 = vector.shape_cast %339 : vector<16xf32> to vector<16x1xf32>
    %341 = vector.broadcast %340 : vector<16x1xf32> to vector<16x9xf32>
    %342 = arith.subf %336, %341 : vector<16x9xf32>
    %343 = math.exp %342 : vector<16x9xf32>
    %cst_79 = arith.constant dense<0.000000e+00> : vector<16xf32>
    %344 = vector.multi_reduction <add>, %343, %cst_79 [1] : vector<16x9xf32> to vector<16xf32>
    %345 = vector.shape_cast %344 : vector<16xf32> to vector<16x1xf32>
    %346 = math.log %345 : vector<16x1xf32>
    %cst_80 = arith.constant 0.000000e+00 : f32
    %347 = vector.broadcast %cst_80 : f32 to vector<16x1xf32>
    %348 = arith.subf %347, %346 : vector<16x1xf32>
    %349 = vector.broadcast %340 : vector<16x1xf32> to vector<16x9xf32>
    %350 = arith.cmpf oge, %336, %349 : vector<16x9xf32>
    %351 = arith.select %350, %33, %34 : vector<16x9xi1>, vector<16x9xf32>
    %cst_81 = arith.constant dense<0x7F800000> : vector<16xf32>
    %352 = vector.multi_reduction <minimumf>, %351, %cst_81 [1] : vector<16x9xf32> to vector<16xf32>
    %353 = vector.shape_cast %352 : vector<16xf32> to vector<16x1xf32>
    %cst_82 = arith.constant 8.000000e+00 : f32
    %354 = vector.broadcast %cst_82 : f32 to vector<16x1xf32>
    %355 = arith.addf %353, %354 : vector<16x1xf32>
    %356 = arith.subf %337, %338 : vector<16x1xf32>
    %357 = math.exp %356 : vector<16x1xf32>
    %cst_83 = arith.constant 1.000000e+00 : f32
    %358 = vector.broadcast %cst_83 : f32 to vector<16x1xf32>
    %359 = arith.addf %358, %357 : vector<16x1xf32>
    %cst_84 = arith.constant 1.000000e+00 : f32
    %360 = vector.broadcast %cst_84 : f32 to vector<16x1xf32>
    %361 = arith.divf %360, %359 : vector<16x1xf32>
    %362 = math.exp %361 : vector<16x1xf32>
    %363 = vector.extract_strided_slice %362 {offsets = [0, 0], sizes = [8, 1], strides = [1, 1]} : vector<16x1xf32> to vector<8x1xf32>
    %cst_85 = arith.constant dense<0.000000e+00> : vector<1xf32>
    %364 = vector.multi_reduction <add>, %363, %cst_85 [0] : vector<8x1xf32> to vector<1xf32>
    %365 = vector.shape_cast %364 : vector<1xf32> to vector<1x1xf32>
    %366 = vector.shape_cast %365 : vector<1x1xf32> to vector<1x1xf32>
    %367 = vector.broadcast %366 : vector<1x1xf32> to vector<8x1xf32>
    %368 = vector.extract_strided_slice %362 {offsets = [8, 0], sizes = [8, 1], strides = [1, 1]} : vector<16x1xf32> to vector<8x1xf32>
    %cst_86 = arith.constant dense<0.000000e+00> : vector<1xf32>
    %369 = vector.multi_reduction <add>, %368, %cst_86 [0] : vector<8x1xf32> to vector<1xf32>
    %370 = vector.shape_cast %369 : vector<1xf32> to vector<1x1xf32>
    %371 = vector.shape_cast %370 : vector<1x1xf32> to vector<1x1xf32>
    %372 = vector.broadcast %371 : vector<1x1xf32> to vector<8x1xf32>
    %373 = tpu.concatenate %367, %372 in 0 : vector<8x1xf32>, vector<8x1xf32> -> vector<16x1xf32>
    %374 = arith.divf %362, %373 : vector<16x1xf32>
    %375 = vector.extract_strided_slice %322 {offsets = [0, 0], sizes = [16, 1], strides = [1, 1]} : vector<16x4xf32> to vector<16x1xf32>
    %376 = vector.extract_strided_slice %322 {offsets = [0, 2], sizes = [16, 1], strides = [1, 1]} : vector<16x4xf32> to vector<16x1xf32>
    %cst_87 = arith.constant 5.000000e-02 : f32
    %377 = vector.broadcast %cst_87 : f32 to vector<16x1xf32>
    %378 = arith.mulf %377, %376 : vector<16x1xf32>
    %379 = arith.addf %321, %378 : vector<16x1xf32>
    %cst_88 = arith.constant 5.000000e+02 : f32
    %380 = vector.broadcast %cst_88 : f32 to vector<16x1xf32>
    %381 = arith.subf %379, %380 : vector<16x1xf32>
    %382 = arith.mulf %381, %381 : vector<16x1xf32>
    %cst_89 = arith.constant 1.000000e+02 : f32
    %383 = vector.broadcast %cst_89 : f32 to vector<16x1xf32>
    %384 = arith.addf %382, %383 : vector<16x1xf32>
    %385 = math.sqrt %384 : vector<16x1xf32>
    %cst_90 = arith.constant 1.000000e+01 : f32
    %386 = vector.broadcast %cst_90 : f32 to vector<16x1xf32>
    %387 = arith.mulf %374, %386 : vector<16x1xf32>
    %cst_91 = arith.constant 1.000000e+07 : f32
    %388 = vector.broadcast %cst_91 : f32 to vector<16x1xf32>
    %389 = arith.mulf %388, %375 : vector<16x1xf32>
    %390 = arith.mulf %385, %385 : vector<16x1xf32>
    %391 = arith.divf %389, %390 : vector<16x1xf32>
    %cst_92 = arith.constant 1.000000e+00 : f32
    %392 = vector.broadcast %cst_92 : f32 to vector<16x1xf32>
    %393 = arith.addf %392, %391 : vector<16x1xf32>
    %394 = math.log %393 : vector<16x1xf32>
    %cst_93 = arith.constant 1.44269502 : f32
    %395 = vector.broadcast %cst_93 : f32 to vector<16x1xf32>
    %396 = arith.mulf %394, %395 : vector<16x1xf32>
    %397 = arith.mulf %387, %396 : vector<16x1xf32>
    %cst_94 = arith.constant 3.125000e-02 : f32
    %398 = vector.broadcast %cst_94 : f32 to vector<16x1xf32>
    %399 = arith.mulf %355, %398 : vector<16x1xf32>
    %400 = arith.divf %399, %397 : vector<16x1xf32>
    %cst_95 = arith.constant 5.000000e-02 : f32
    %401 = vector.broadcast %cst_95 : f32 to vector<16x1xf32>
    %402 = arith.addf %401, %400 : vector<16x1xf32>
    %403 = vector.extract_strided_slice %402 {offsets = [0, 0], sizes = [8, 1], strides = [1, 1]} : vector<16x1xf32> to vector<8x1xf32>
    %cst_96 = arith.constant dense<0xFF800000> : vector<1xf32>
    %404 = vector.multi_reduction <maximumf>, %403, %cst_96 [0] : vector<8x1xf32> to vector<1xf32>
    %405 = vector.shape_cast %404 : vector<1xf32> to vector<1x1xf32>
    %406 = vector.shape_cast %405 : vector<1x1xf32> to vector<1x1xf32>
    %407 = vector.broadcast %406 : vector<1x1xf32> to vector<8x1xf32>
    %408 = vector.extract_strided_slice %402 {offsets = [8, 0], sizes = [8, 1], strides = [1, 1]} : vector<16x1xf32> to vector<8x1xf32>
    %cst_97 = arith.constant dense<0xFF800000> : vector<1xf32>
    %409 = vector.multi_reduction <maximumf>, %408, %cst_97 [0] : vector<8x1xf32> to vector<1xf32>
    %410 = vector.shape_cast %409 : vector<1xf32> to vector<1x1xf32>
    %411 = vector.shape_cast %410 : vector<1x1xf32> to vector<1x1xf32>
    %412 = vector.broadcast %411 : vector<1x1xf32> to vector<8x1xf32>
    %413 = tpu.concatenate %407, %412 in 0 : vector<8x1xf32>, vector<8x1xf32> -> vector<16x1xf32>
    %414 = arith.mulf %413, %376 : vector<16x1xf32>
    %415 = arith.addf %414, %321 : vector<16x1xf32>
    %416 = vector.extract_strided_slice %1 {offsets = [64, 0], sizes = [16, 4], strides = [1, 1]} : vector<128x4xf32> to vector<16x4xf32>
    %417 = vector.extract_strided_slice %28 {offsets = [64, 0], sizes = [16, 11], strides = [1, 1]} : vector<128x11xf32> to vector<16x11xf32>
    %418 = vector.broadcast %413 : vector<16x1xf32> to vector<16x11xf32>
    %419 = vector.broadcast %29 : vector<1x11xf32> to vector<16x11xf32>
    %420 = arith.mulf %418, %419 : vector<16x11xf32>
    %421 = arith.addf %417, %420 : vector<16x11xf32>
    %422 = vector.broadcast %415 : vector<16x1xf32> to vector<16x11xf32>
    %423 = vector.broadcast %30 : vector<1x11xf32> to vector<16x11xf32>
    %424 = arith.mulf %422, %423 : vector<16x11xf32>
    %425 = arith.addf %421, %424 : vector<16x11xf32>
    %426 = vector.broadcast %385 : vector<16x1xf32> to vector<16x11xf32>
    %427 = vector.broadcast %31 : vector<1x11xf32> to vector<16x11xf32>
    %428 = arith.mulf %426, %427 : vector<16x11xf32>
    %429 = arith.addf %425, %428 : vector<16x11xf32>
    %430 = vector.extract_strided_slice %429 {offsets = [0, 0], sizes = [16, 9], strides = [1, 1]} : vector<16x11xf32> to vector<16x9xf32>
    %431 = vector.extract_strided_slice %429 {offsets = [0, 9], sizes = [16, 1], strides = [1, 1]} : vector<16x11xf32> to vector<16x1xf32>
    %432 = vector.extract_strided_slice %429 {offsets = [0, 10], sizes = [16, 1], strides = [1, 1]} : vector<16x11xf32> to vector<16x1xf32>
    %cst_98 = arith.constant dense<0xFF800000> : vector<16xf32>
    %433 = vector.multi_reduction <maximumf>, %430, %cst_98 [1] : vector<16x9xf32> to vector<16xf32>
    %434 = vector.shape_cast %433 : vector<16xf32> to vector<16x1xf32>
    %435 = vector.broadcast %434 : vector<16x1xf32> to vector<16x9xf32>
    %436 = arith.subf %430, %435 : vector<16x9xf32>
    %437 = math.exp %436 : vector<16x9xf32>
    %cst_99 = arith.constant dense<0.000000e+00> : vector<16xf32>
    %438 = vector.multi_reduction <add>, %437, %cst_99 [1] : vector<16x9xf32> to vector<16xf32>
    %439 = vector.shape_cast %438 : vector<16xf32> to vector<16x1xf32>
    %440 = math.log %439 : vector<16x1xf32>
    %cst_100 = arith.constant 0.000000e+00 : f32
    %441 = vector.broadcast %cst_100 : f32 to vector<16x1xf32>
    %442 = arith.subf %441, %440 : vector<16x1xf32>
    %443 = vector.broadcast %434 : vector<16x1xf32> to vector<16x9xf32>
    %444 = arith.cmpf oge, %430, %443 : vector<16x9xf32>
    %445 = arith.select %444, %33, %34 : vector<16x9xi1>, vector<16x9xf32>
    %cst_101 = arith.constant dense<0x7F800000> : vector<16xf32>
    %446 = vector.multi_reduction <minimumf>, %445, %cst_101 [1] : vector<16x9xf32> to vector<16xf32>
    %447 = vector.shape_cast %446 : vector<16xf32> to vector<16x1xf32>
    %cst_102 = arith.constant 8.000000e+00 : f32
    %448 = vector.broadcast %cst_102 : f32 to vector<16x1xf32>
    %449 = arith.addf %447, %448 : vector<16x1xf32>
    %450 = arith.subf %431, %432 : vector<16x1xf32>
    %451 = math.exp %450 : vector<16x1xf32>
    %cst_103 = arith.constant 1.000000e+00 : f32
    %452 = vector.broadcast %cst_103 : f32 to vector<16x1xf32>
    %453 = arith.addf %452, %451 : vector<16x1xf32>
    %cst_104 = arith.constant 1.000000e+00 : f32
    %454 = vector.broadcast %cst_104 : f32 to vector<16x1xf32>
    %455 = arith.divf %454, %453 : vector<16x1xf32>
    %456 = math.exp %455 : vector<16x1xf32>
    %457 = vector.extract_strided_slice %456 {offsets = [0, 0], sizes = [8, 1], strides = [1, 1]} : vector<16x1xf32> to vector<8x1xf32>
    %cst_105 = arith.constant dense<0.000000e+00> : vector<1xf32>
    %458 = vector.multi_reduction <add>, %457, %cst_105 [0] : vector<8x1xf32> to vector<1xf32>
    %459 = vector.shape_cast %458 : vector<1xf32> to vector<1x1xf32>
    %460 = vector.shape_cast %459 : vector<1x1xf32> to vector<1x1xf32>
    %461 = vector.broadcast %460 : vector<1x1xf32> to vector<8x1xf32>
    %462 = vector.extract_strided_slice %456 {offsets = [8, 0], sizes = [8, 1], strides = [1, 1]} : vector<16x1xf32> to vector<8x1xf32>
    %cst_106 = arith.constant dense<0.000000e+00> : vector<1xf32>
    %463 = vector.multi_reduction <add>, %462, %cst_106 [0] : vector<8x1xf32> to vector<1xf32>
    %464 = vector.shape_cast %463 : vector<1xf32> to vector<1x1xf32>
    %465 = vector.shape_cast %464 : vector<1x1xf32> to vector<1x1xf32>
    %466 = vector.broadcast %465 : vector<1x1xf32> to vector<8x1xf32>
    %467 = tpu.concatenate %461, %466 in 0 : vector<8x1xf32>, vector<8x1xf32> -> vector<16x1xf32>
    %468 = arith.divf %456, %467 : vector<16x1xf32>
    %469 = vector.extract_strided_slice %416 {offsets = [0, 0], sizes = [16, 1], strides = [1, 1]} : vector<16x4xf32> to vector<16x1xf32>
    %470 = vector.extract_strided_slice %416 {offsets = [0, 2], sizes = [16, 1], strides = [1, 1]} : vector<16x4xf32> to vector<16x1xf32>
    %cst_107 = arith.constant 5.000000e-02 : f32
    %471 = vector.broadcast %cst_107 : f32 to vector<16x1xf32>
    %472 = arith.mulf %471, %470 : vector<16x1xf32>
    %473 = arith.addf %415, %472 : vector<16x1xf32>
    %cst_108 = arith.constant 5.000000e+02 : f32
    %474 = vector.broadcast %cst_108 : f32 to vector<16x1xf32>
    %475 = arith.subf %473, %474 : vector<16x1xf32>
    %476 = arith.mulf %475, %475 : vector<16x1xf32>
    %cst_109 = arith.constant 1.000000e+02 : f32
    %477 = vector.broadcast %cst_109 : f32 to vector<16x1xf32>
    %478 = arith.addf %476, %477 : vector<16x1xf32>
    %479 = math.sqrt %478 : vector<16x1xf32>
    %cst_110 = arith.constant 1.000000e+01 : f32
    %480 = vector.broadcast %cst_110 : f32 to vector<16x1xf32>
    %481 = arith.mulf %468, %480 : vector<16x1xf32>
    %cst_111 = arith.constant 1.000000e+07 : f32
    %482 = vector.broadcast %cst_111 : f32 to vector<16x1xf32>
    %483 = arith.mulf %482, %469 : vector<16x1xf32>
    %484 = arith.mulf %479, %479 : vector<16x1xf32>
    %485 = arith.divf %483, %484 : vector<16x1xf32>
    %cst_112 = arith.constant 1.000000e+00 : f32
    %486 = vector.broadcast %cst_112 : f32 to vector<16x1xf32>
    %487 = arith.addf %486, %485 : vector<16x1xf32>
    %488 = math.log %487 : vector<16x1xf32>
    %cst_113 = arith.constant 1.44269502 : f32
    %489 = vector.broadcast %cst_113 : f32 to vector<16x1xf32>
    %490 = arith.mulf %488, %489 : vector<16x1xf32>
    %491 = arith.mulf %481, %490 : vector<16x1xf32>
    %cst_114 = arith.constant 3.125000e-02 : f32
    %492 = vector.broadcast %cst_114 : f32 to vector<16x1xf32>
    %493 = arith.mulf %449, %492 : vector<16x1xf32>
    %494 = arith.divf %493, %491 : vector<16x1xf32>
    %cst_115 = arith.constant 5.000000e-02 : f32
    %495 = vector.broadcast %cst_115 : f32 to vector<16x1xf32>
    %496 = arith.addf %495, %494 : vector<16x1xf32>
    %497 = vector.extract_strided_slice %496 {offsets = [0, 0], sizes = [8, 1], strides = [1, 1]} : vector<16x1xf32> to vector<8x1xf32>
    %cst_116 = arith.constant dense<0xFF800000> : vector<1xf32>
    %498 = vector.multi_reduction <maximumf>, %497, %cst_116 [0] : vector<8x1xf32> to vector<1xf32>
    %499 = vector.shape_cast %498 : vector<1xf32> to vector<1x1xf32>
    %500 = vector.shape_cast %499 : vector<1x1xf32> to vector<1x1xf32>
    %501 = vector.broadcast %500 : vector<1x1xf32> to vector<8x1xf32>
    %502 = vector.extract_strided_slice %496 {offsets = [8, 0], sizes = [8, 1], strides = [1, 1]} : vector<16x1xf32> to vector<8x1xf32>
    %cst_117 = arith.constant dense<0xFF800000> : vector<1xf32>
    %503 = vector.multi_reduction <maximumf>, %502, %cst_117 [0] : vector<8x1xf32> to vector<1xf32>
    %504 = vector.shape_cast %503 : vector<1xf32> to vector<1x1xf32>
    %505 = vector.shape_cast %504 : vector<1x1xf32> to vector<1x1xf32>
    %506 = vector.broadcast %505 : vector<1x1xf32> to vector<8x1xf32>
    %507 = tpu.concatenate %501, %506 in 0 : vector<8x1xf32>, vector<8x1xf32> -> vector<16x1xf32>
    %508 = arith.mulf %507, %470 : vector<16x1xf32>
    %509 = arith.addf %508, %415 : vector<16x1xf32>
    %510 = vector.extract_strided_slice %1 {offsets = [80, 0], sizes = [16, 4], strides = [1, 1]} : vector<128x4xf32> to vector<16x4xf32>
    %511 = vector.extract_strided_slice %28 {offsets = [80, 0], sizes = [16, 11], strides = [1, 1]} : vector<128x11xf32> to vector<16x11xf32>
    %512 = vector.broadcast %507 : vector<16x1xf32> to vector<16x11xf32>
    %513 = vector.broadcast %29 : vector<1x11xf32> to vector<16x11xf32>
    %514 = arith.mulf %512, %513 : vector<16x11xf32>
    %515 = arith.addf %511, %514 : vector<16x11xf32>
    %516 = vector.broadcast %509 : vector<16x1xf32> to vector<16x11xf32>
    %517 = vector.broadcast %30 : vector<1x11xf32> to vector<16x11xf32>
    %518 = arith.mulf %516, %517 : vector<16x11xf32>
    %519 = arith.addf %515, %518 : vector<16x11xf32>
    %520 = vector.broadcast %479 : vector<16x1xf32> to vector<16x11xf32>
    %521 = vector.broadcast %31 : vector<1x11xf32> to vector<16x11xf32>
    %522 = arith.mulf %520, %521 : vector<16x11xf32>
    %523 = arith.addf %519, %522 : vector<16x11xf32>
    %524 = vector.extract_strided_slice %523 {offsets = [0, 0], sizes = [16, 9], strides = [1, 1]} : vector<16x11xf32> to vector<16x9xf32>
    %525 = vector.extract_strided_slice %523 {offsets = [0, 9], sizes = [16, 1], strides = [1, 1]} : vector<16x11xf32> to vector<16x1xf32>
    %526 = vector.extract_strided_slice %523 {offsets = [0, 10], sizes = [16, 1], strides = [1, 1]} : vector<16x11xf32> to vector<16x1xf32>
    %cst_118 = arith.constant dense<0xFF800000> : vector<16xf32>
    %527 = vector.multi_reduction <maximumf>, %524, %cst_118 [1] : vector<16x9xf32> to vector<16xf32>
    %528 = vector.shape_cast %527 : vector<16xf32> to vector<16x1xf32>
    %529 = vector.broadcast %528 : vector<16x1xf32> to vector<16x9xf32>
    %530 = arith.subf %524, %529 : vector<16x9xf32>
    %531 = math.exp %530 : vector<16x9xf32>
    %cst_119 = arith.constant dense<0.000000e+00> : vector<16xf32>
    %532 = vector.multi_reduction <add>, %531, %cst_119 [1] : vector<16x9xf32> to vector<16xf32>
    %533 = vector.shape_cast %532 : vector<16xf32> to vector<16x1xf32>
    %534 = math.log %533 : vector<16x1xf32>
    %cst_120 = arith.constant 0.000000e+00 : f32
    %535 = vector.broadcast %cst_120 : f32 to vector<16x1xf32>
    %536 = arith.subf %535, %534 : vector<16x1xf32>
    %537 = vector.broadcast %528 : vector<16x1xf32> to vector<16x9xf32>
    %538 = arith.cmpf oge, %524, %537 : vector<16x9xf32>
    %539 = arith.select %538, %33, %34 : vector<16x9xi1>, vector<16x9xf32>
    %cst_121 = arith.constant dense<0x7F800000> : vector<16xf32>
    %540 = vector.multi_reduction <minimumf>, %539, %cst_121 [1] : vector<16x9xf32> to vector<16xf32>
    %541 = vector.shape_cast %540 : vector<16xf32> to vector<16x1xf32>
    %cst_122 = arith.constant 8.000000e+00 : f32
    %542 = vector.broadcast %cst_122 : f32 to vector<16x1xf32>
    %543 = arith.addf %541, %542 : vector<16x1xf32>
    %544 = arith.subf %525, %526 : vector<16x1xf32>
    %545 = math.exp %544 : vector<16x1xf32>
    %cst_123 = arith.constant 1.000000e+00 : f32
    %546 = vector.broadcast %cst_123 : f32 to vector<16x1xf32>
    %547 = arith.addf %546, %545 : vector<16x1xf32>
    %cst_124 = arith.constant 1.000000e+00 : f32
    %548 = vector.broadcast %cst_124 : f32 to vector<16x1xf32>
    %549 = arith.divf %548, %547 : vector<16x1xf32>
    %550 = math.exp %549 : vector<16x1xf32>
    %551 = vector.extract_strided_slice %550 {offsets = [0, 0], sizes = [8, 1], strides = [1, 1]} : vector<16x1xf32> to vector<8x1xf32>
    %cst_125 = arith.constant dense<0.000000e+00> : vector<1xf32>
    %552 = vector.multi_reduction <add>, %551, %cst_125 [0] : vector<8x1xf32> to vector<1xf32>
    %553 = vector.shape_cast %552 : vector<1xf32> to vector<1x1xf32>
    %554 = vector.shape_cast %553 : vector<1x1xf32> to vector<1x1xf32>
    %555 = vector.broadcast %554 : vector<1x1xf32> to vector<8x1xf32>
    %556 = vector.extract_strided_slice %550 {offsets = [8, 0], sizes = [8, 1], strides = [1, 1]} : vector<16x1xf32> to vector<8x1xf32>
    %cst_126 = arith.constant dense<0.000000e+00> : vector<1xf32>
    %557 = vector.multi_reduction <add>, %556, %cst_126 [0] : vector<8x1xf32> to vector<1xf32>
    %558 = vector.shape_cast %557 : vector<1xf32> to vector<1x1xf32>
    %559 = vector.shape_cast %558 : vector<1x1xf32> to vector<1x1xf32>
    %560 = vector.broadcast %559 : vector<1x1xf32> to vector<8x1xf32>
    %561 = tpu.concatenate %555, %560 in 0 : vector<8x1xf32>, vector<8x1xf32> -> vector<16x1xf32>
    %562 = arith.divf %550, %561 : vector<16x1xf32>
    %563 = vector.extract_strided_slice %510 {offsets = [0, 0], sizes = [16, 1], strides = [1, 1]} : vector<16x4xf32> to vector<16x1xf32>
    %564 = vector.extract_strided_slice %510 {offsets = [0, 2], sizes = [16, 1], strides = [1, 1]} : vector<16x4xf32> to vector<16x1xf32>
    %cst_127 = arith.constant 5.000000e-02 : f32
    %565 = vector.broadcast %cst_127 : f32 to vector<16x1xf32>
    %566 = arith.mulf %565, %564 : vector<16x1xf32>
    %567 = arith.addf %509, %566 : vector<16x1xf32>
    %cst_128 = arith.constant 5.000000e+02 : f32
    %568 = vector.broadcast %cst_128 : f32 to vector<16x1xf32>
    %569 = arith.subf %567, %568 : vector<16x1xf32>
    %570 = arith.mulf %569, %569 : vector<16x1xf32>
    %cst_129 = arith.constant 1.000000e+02 : f32
    %571 = vector.broadcast %cst_129 : f32 to vector<16x1xf32>
    %572 = arith.addf %570, %571 : vector<16x1xf32>
    %573 = math.sqrt %572 : vector<16x1xf32>
    %cst_130 = arith.constant 1.000000e+01 : f32
    %574 = vector.broadcast %cst_130 : f32 to vector<16x1xf32>
    %575 = arith.mulf %562, %574 : vector<16x1xf32>
    %cst_131 = arith.constant 1.000000e+07 : f32
    %576 = vector.broadcast %cst_131 : f32 to vector<16x1xf32>
    %577 = arith.mulf %576, %563 : vector<16x1xf32>
    %578 = arith.mulf %573, %573 : vector<16x1xf32>
    %579 = arith.divf %577, %578 : vector<16x1xf32>
    %cst_132 = arith.constant 1.000000e+00 : f32
    %580 = vector.broadcast %cst_132 : f32 to vector<16x1xf32>
    %581 = arith.addf %580, %579 : vector<16x1xf32>
    %582 = math.log %581 : vector<16x1xf32>
    %cst_133 = arith.constant 1.44269502 : f32
    %583 = vector.broadcast %cst_133 : f32 to vector<16x1xf32>
    %584 = arith.mulf %582, %583 : vector<16x1xf32>
    %585 = arith.mulf %575, %584 : vector<16x1xf32>
    %cst_134 = arith.constant 3.125000e-02 : f32
    %586 = vector.broadcast %cst_134 : f32 to vector<16x1xf32>
    %587 = arith.mulf %543, %586 : vector<16x1xf32>
    %588 = arith.divf %587, %585 : vector<16x1xf32>
    %cst_135 = arith.constant 5.000000e-02 : f32
    %589 = vector.broadcast %cst_135 : f32 to vector<16x1xf32>
    %590 = arith.addf %589, %588 : vector<16x1xf32>
    %591 = vector.extract_strided_slice %590 {offsets = [0, 0], sizes = [8, 1], strides = [1, 1]} : vector<16x1xf32> to vector<8x1xf32>
    %cst_136 = arith.constant dense<0xFF800000> : vector<1xf32>
    %592 = vector.multi_reduction <maximumf>, %591, %cst_136 [0] : vector<8x1xf32> to vector<1xf32>
    %593 = vector.shape_cast %592 : vector<1xf32> to vector<1x1xf32>
    %594 = vector.shape_cast %593 : vector<1x1xf32> to vector<1x1xf32>
    %595 = vector.broadcast %594 : vector<1x1xf32> to vector<8x1xf32>
    %596 = vector.extract_strided_slice %590 {offsets = [8, 0], sizes = [8, 1], strides = [1, 1]} : vector<16x1xf32> to vector<8x1xf32>
    %cst_137 = arith.constant dense<0xFF800000> : vector<1xf32>
    %597 = vector.multi_reduction <maximumf>, %596, %cst_137 [0] : vector<8x1xf32> to vector<1xf32>
    %598 = vector.shape_cast %597 : vector<1xf32> to vector<1x1xf32>
    %599 = vector.shape_cast %598 : vector<1x1xf32> to vector<1x1xf32>
    %600 = vector.broadcast %599 : vector<1x1xf32> to vector<8x1xf32>
    %601 = tpu.concatenate %595, %600 in 0 : vector<8x1xf32>, vector<8x1xf32> -> vector<16x1xf32>
    %602 = arith.mulf %601, %564 : vector<16x1xf32>
    %603 = arith.addf %602, %509 : vector<16x1xf32>
    %604 = vector.extract_strided_slice %1 {offsets = [96, 0], sizes = [16, 4], strides = [1, 1]} : vector<128x4xf32> to vector<16x4xf32>
    %605 = vector.extract_strided_slice %28 {offsets = [96, 0], sizes = [16, 11], strides = [1, 1]} : vector<128x11xf32> to vector<16x11xf32>
    %606 = vector.broadcast %601 : vector<16x1xf32> to vector<16x11xf32>
    %607 = vector.broadcast %29 : vector<1x11xf32> to vector<16x11xf32>
    %608 = arith.mulf %606, %607 : vector<16x11xf32>
    %609 = arith.addf %605, %608 : vector<16x11xf32>
    %610 = vector.broadcast %603 : vector<16x1xf32> to vector<16x11xf32>
    %611 = vector.broadcast %30 : vector<1x11xf32> to vector<16x11xf32>
    %612 = arith.mulf %610, %611 : vector<16x11xf32>
    %613 = arith.addf %609, %612 : vector<16x11xf32>
    %614 = vector.broadcast %573 : vector<16x1xf32> to vector<16x11xf32>
    %615 = vector.broadcast %31 : vector<1x11xf32> to vector<16x11xf32>
    %616 = arith.mulf %614, %615 : vector<16x11xf32>
    %617 = arith.addf %613, %616 : vector<16x11xf32>
    %618 = vector.extract_strided_slice %617 {offsets = [0, 0], sizes = [16, 9], strides = [1, 1]} : vector<16x11xf32> to vector<16x9xf32>
    %619 = vector.extract_strided_slice %617 {offsets = [0, 9], sizes = [16, 1], strides = [1, 1]} : vector<16x11xf32> to vector<16x1xf32>
    %620 = vector.extract_strided_slice %617 {offsets = [0, 10], sizes = [16, 1], strides = [1, 1]} : vector<16x11xf32> to vector<16x1xf32>
    %cst_138 = arith.constant dense<0xFF800000> : vector<16xf32>
    %621 = vector.multi_reduction <maximumf>, %618, %cst_138 [1] : vector<16x9xf32> to vector<16xf32>
    %622 = vector.shape_cast %621 : vector<16xf32> to vector<16x1xf32>
    %623 = vector.broadcast %622 : vector<16x1xf32> to vector<16x9xf32>
    %624 = arith.subf %618, %623 : vector<16x9xf32>
    %625 = math.exp %624 : vector<16x9xf32>
    %cst_139 = arith.constant dense<0.000000e+00> : vector<16xf32>
    %626 = vector.multi_reduction <add>, %625, %cst_139 [1] : vector<16x9xf32> to vector<16xf32>
    %627 = vector.shape_cast %626 : vector<16xf32> to vector<16x1xf32>
    %628 = math.log %627 : vector<16x1xf32>
    %cst_140 = arith.constant 0.000000e+00 : f32
    %629 = vector.broadcast %cst_140 : f32 to vector<16x1xf32>
    %630 = arith.subf %629, %628 : vector<16x1xf32>
    %631 = vector.broadcast %622 : vector<16x1xf32> to vector<16x9xf32>
    %632 = arith.cmpf oge, %618, %631 : vector<16x9xf32>
    %633 = arith.select %632, %33, %34 : vector<16x9xi1>, vector<16x9xf32>
    %cst_141 = arith.constant dense<0x7F800000> : vector<16xf32>
    %634 = vector.multi_reduction <minimumf>, %633, %cst_141 [1] : vector<16x9xf32> to vector<16xf32>
    %635 = vector.shape_cast %634 : vector<16xf32> to vector<16x1xf32>
    %cst_142 = arith.constant 8.000000e+00 : f32
    %636 = vector.broadcast %cst_142 : f32 to vector<16x1xf32>
    %637 = arith.addf %635, %636 : vector<16x1xf32>
    %638 = arith.subf %619, %620 : vector<16x1xf32>
    %639 = math.exp %638 : vector<16x1xf32>
    %cst_143 = arith.constant 1.000000e+00 : f32
    %640 = vector.broadcast %cst_143 : f32 to vector<16x1xf32>
    %641 = arith.addf %640, %639 : vector<16x1xf32>
    %cst_144 = arith.constant 1.000000e+00 : f32
    %642 = vector.broadcast %cst_144 : f32 to vector<16x1xf32>
    %643 = arith.divf %642, %641 : vector<16x1xf32>
    %644 = math.exp %643 : vector<16x1xf32>
    %645 = vector.extract_strided_slice %644 {offsets = [0, 0], sizes = [8, 1], strides = [1, 1]} : vector<16x1xf32> to vector<8x1xf32>
    %cst_145 = arith.constant dense<0.000000e+00> : vector<1xf32>
    %646 = vector.multi_reduction <add>, %645, %cst_145 [0] : vector<8x1xf32> to vector<1xf32>
    %647 = vector.shape_cast %646 : vector<1xf32> to vector<1x1xf32>
    %648 = vector.shape_cast %647 : vector<1x1xf32> to vector<1x1xf32>
    %649 = vector.broadcast %648 : vector<1x1xf32> to vector<8x1xf32>
    %650 = vector.extract_strided_slice %644 {offsets = [8, 0], sizes = [8, 1], strides = [1, 1]} : vector<16x1xf32> to vector<8x1xf32>
    %cst_146 = arith.constant dense<0.000000e+00> : vector<1xf32>
    %651 = vector.multi_reduction <add>, %650, %cst_146 [0] : vector<8x1xf32> to vector<1xf32>
    %652 = vector.shape_cast %651 : vector<1xf32> to vector<1x1xf32>
    %653 = vector.shape_cast %652 : vector<1x1xf32> to vector<1x1xf32>
    %654 = vector.broadcast %653 : vector<1x1xf32> to vector<8x1xf32>
    %655 = tpu.concatenate %649, %654 in 0 : vector<8x1xf32>, vector<8x1xf32> -> vector<16x1xf32>
    %656 = arith.divf %644, %655 : vector<16x1xf32>
    %657 = vector.extract_strided_slice %604 {offsets = [0, 0], sizes = [16, 1], strides = [1, 1]} : vector<16x4xf32> to vector<16x1xf32>
    %658 = vector.extract_strided_slice %604 {offsets = [0, 2], sizes = [16, 1], strides = [1, 1]} : vector<16x4xf32> to vector<16x1xf32>
    %cst_147 = arith.constant 5.000000e-02 : f32
    %659 = vector.broadcast %cst_147 : f32 to vector<16x1xf32>
    %660 = arith.mulf %659, %658 : vector<16x1xf32>
    %661 = arith.addf %603, %660 : vector<16x1xf32>
    %cst_148 = arith.constant 5.000000e+02 : f32
    %662 = vector.broadcast %cst_148 : f32 to vector<16x1xf32>
    %663 = arith.subf %661, %662 : vector<16x1xf32>
    %664 = arith.mulf %663, %663 : vector<16x1xf32>
    %cst_149 = arith.constant 1.000000e+02 : f32
    %665 = vector.broadcast %cst_149 : f32 to vector<16x1xf32>
    %666 = arith.addf %664, %665 : vector<16x1xf32>
    %667 = math.sqrt %666 : vector<16x1xf32>
    %cst_150 = arith.constant 1.000000e+01 : f32
    %668 = vector.broadcast %cst_150 : f32 to vector<16x1xf32>
    %669 = arith.mulf %656, %668 : vector<16x1xf32>
    %cst_151 = arith.constant 1.000000e+07 : f32
    %670 = vector.broadcast %cst_151 : f32 to vector<16x1xf32>
    %671 = arith.mulf %670, %657 : vector<16x1xf32>
    %672 = arith.mulf %667, %667 : vector<16x1xf32>
    %673 = arith.divf %671, %672 : vector<16x1xf32>
    %cst_152 = arith.constant 1.000000e+00 : f32
    %674 = vector.broadcast %cst_152 : f32 to vector<16x1xf32>
    %675 = arith.addf %674, %673 : vector<16x1xf32>
    %676 = math.log %675 : vector<16x1xf32>
    %cst_153 = arith.constant 1.44269502 : f32
    %677 = vector.broadcast %cst_153 : f32 to vector<16x1xf32>
    %678 = arith.mulf %676, %677 : vector<16x1xf32>
    %679 = arith.mulf %669, %678 : vector<16x1xf32>
    %cst_154 = arith.constant 3.125000e-02 : f32
    %680 = vector.broadcast %cst_154 : f32 to vector<16x1xf32>
    %681 = arith.mulf %637, %680 : vector<16x1xf32>
    %682 = arith.divf %681, %679 : vector<16x1xf32>
    %cst_155 = arith.constant 5.000000e-02 : f32
    %683 = vector.broadcast %cst_155 : f32 to vector<16x1xf32>
    %684 = arith.addf %683, %682 : vector<16x1xf32>
    %685 = vector.extract_strided_slice %684 {offsets = [0, 0], sizes = [8, 1], strides = [1, 1]} : vector<16x1xf32> to vector<8x1xf32>
    %cst_156 = arith.constant dense<0xFF800000> : vector<1xf32>
    %686 = vector.multi_reduction <maximumf>, %685, %cst_156 [0] : vector<8x1xf32> to vector<1xf32>
    %687 = vector.shape_cast %686 : vector<1xf32> to vector<1x1xf32>
    %688 = vector.shape_cast %687 : vector<1x1xf32> to vector<1x1xf32>
    %689 = vector.broadcast %688 : vector<1x1xf32> to vector<8x1xf32>
    %690 = vector.extract_strided_slice %684 {offsets = [8, 0], sizes = [8, 1], strides = [1, 1]} : vector<16x1xf32> to vector<8x1xf32>
    %cst_157 = arith.constant dense<0xFF800000> : vector<1xf32>
    %691 = vector.multi_reduction <maximumf>, %690, %cst_157 [0] : vector<8x1xf32> to vector<1xf32>
    %692 = vector.shape_cast %691 : vector<1xf32> to vector<1x1xf32>
    %693 = vector.shape_cast %692 : vector<1x1xf32> to vector<1x1xf32>
    %694 = vector.broadcast %693 : vector<1x1xf32> to vector<8x1xf32>
    %695 = tpu.concatenate %689, %694 in 0 : vector<8x1xf32>, vector<8x1xf32> -> vector<16x1xf32>
    %696 = arith.mulf %695, %658 : vector<16x1xf32>
    %697 = arith.addf %696, %603 : vector<16x1xf32>
    %698 = vector.extract_strided_slice %28 {offsets = [112, 0], sizes = [16, 11], strides = [1, 1]} : vector<128x11xf32> to vector<16x11xf32>
    %699 = vector.broadcast %695 : vector<16x1xf32> to vector<16x11xf32>
    %700 = vector.broadcast %29 : vector<1x11xf32> to vector<16x11xf32>
    %701 = arith.mulf %699, %700 : vector<16x11xf32>
    %702 = arith.addf %698, %701 : vector<16x11xf32>
    %703 = vector.broadcast %697 : vector<16x1xf32> to vector<16x11xf32>
    %704 = vector.broadcast %30 : vector<1x11xf32> to vector<16x11xf32>
    %705 = arith.mulf %703, %704 : vector<16x11xf32>
    %706 = arith.addf %702, %705 : vector<16x11xf32>
    %707 = vector.broadcast %667 : vector<16x1xf32> to vector<16x11xf32>
    %708 = vector.broadcast %31 : vector<1x11xf32> to vector<16x11xf32>
    %709 = arith.mulf %707, %708 : vector<16x11xf32>
    %710 = arith.addf %706, %709 : vector<16x11xf32>
    %711 = vector.extract_strided_slice %710 {offsets = [0, 0], sizes = [16, 9], strides = [1, 1]} : vector<16x11xf32> to vector<16x9xf32>
    %712 = vector.extract_strided_slice %710 {offsets = [0, 9], sizes = [16, 1], strides = [1, 1]} : vector<16x11xf32> to vector<16x1xf32>
    %713 = vector.extract_strided_slice %710 {offsets = [0, 10], sizes = [16, 1], strides = [1, 1]} : vector<16x11xf32> to vector<16x1xf32>
    %cst_158 = arith.constant dense<0xFF800000> : vector<16xf32>
    %714 = vector.multi_reduction <maximumf>, %711, %cst_158 [1] : vector<16x9xf32> to vector<16xf32>
    %715 = vector.shape_cast %714 : vector<16xf32> to vector<16x1xf32>
    %716 = vector.broadcast %715 : vector<16x1xf32> to vector<16x9xf32>
    %717 = arith.subf %711, %716 : vector<16x9xf32>
    %718 = math.exp %717 : vector<16x9xf32>
    %cst_159 = arith.constant dense<0.000000e+00> : vector<16xf32>
    %719 = vector.multi_reduction <add>, %718, %cst_159 [1] : vector<16x9xf32> to vector<16xf32>
    %720 = vector.shape_cast %719 : vector<16xf32> to vector<16x1xf32>
    %721 = math.log %720 : vector<16x1xf32>
    %cst_160 = arith.constant 0.000000e+00 : f32
    %722 = vector.broadcast %cst_160 : f32 to vector<16x1xf32>
    %723 = arith.subf %722, %721 : vector<16x1xf32>
    %724 = vector.broadcast %715 : vector<16x1xf32> to vector<16x9xf32>
    %725 = arith.cmpf oge, %711, %724 : vector<16x9xf32>
    %726 = arith.select %725, %33, %34 : vector<16x9xi1>, vector<16x9xf32>
    %cst_161 = arith.constant dense<0x7F800000> : vector<16xf32>
    %727 = vector.multi_reduction <minimumf>, %726, %cst_161 [1] : vector<16x9xf32> to vector<16xf32>
    %728 = vector.shape_cast %727 : vector<16xf32> to vector<16x1xf32>
    %cst_162 = arith.constant 8.000000e+00 : f32
    %729 = vector.broadcast %cst_162 : f32 to vector<16x1xf32>
    %730 = arith.addf %728, %729 : vector<16x1xf32>
    %731 = arith.subf %712, %713 : vector<16x1xf32>
    %732 = math.exp %731 : vector<16x1xf32>
    %cst_163 = arith.constant 1.000000e+00 : f32
    %733 = vector.broadcast %cst_163 : f32 to vector<16x1xf32>
    %734 = arith.addf %733, %732 : vector<16x1xf32>
    %cst_164 = arith.constant 1.000000e+00 : f32
    %735 = vector.broadcast %cst_164 : f32 to vector<16x1xf32>
    %736 = arith.divf %735, %734 : vector<16x1xf32>
    %737 = math.exp %736 : vector<16x1xf32>
    %738 = vector.extract_strided_slice %737 {offsets = [0, 0], sizes = [8, 1], strides = [1, 1]} : vector<16x1xf32> to vector<8x1xf32>
    %cst_165 = arith.constant dense<0.000000e+00> : vector<1xf32>
    %739 = vector.multi_reduction <add>, %738, %cst_165 [0] : vector<8x1xf32> to vector<1xf32>
    %740 = vector.shape_cast %739 : vector<1xf32> to vector<1x1xf32>
    %741 = vector.shape_cast %740 : vector<1x1xf32> to vector<1x1xf32>
    %742 = vector.broadcast %741 : vector<1x1xf32> to vector<8x1xf32>
    %743 = vector.extract_strided_slice %737 {offsets = [8, 0], sizes = [8, 1], strides = [1, 1]} : vector<16x1xf32> to vector<8x1xf32>
    %cst_166 = arith.constant dense<0.000000e+00> : vector<1xf32>
    %744 = vector.multi_reduction <add>, %743, %cst_166 [0] : vector<8x1xf32> to vector<1xf32>
    %745 = vector.shape_cast %744 : vector<1xf32> to vector<1x1xf32>
    %746 = vector.shape_cast %745 : vector<1x1xf32> to vector<1x1xf32>
    %747 = vector.broadcast %746 : vector<1x1xf32> to vector<8x1xf32>
    %748 = tpu.concatenate %742, %747 in 0 : vector<8x1xf32>, vector<8x1xf32> -> vector<16x1xf32>
    %749 = arith.divf %737, %748 : vector<16x1xf32>
    %750 = tpu.concatenate %73, %167, %261, %355, %449, %543, %637, %730, %92, %186, %280, %374, %468, %562, %656, %749 in 1 : vector<16x1xf32>, vector<16x1xf32>, vector<16x1xf32>, vector<16x1xf32>, vector<16x1xf32>, vector<16x1xf32>, vector<16x1xf32>, vector<16x1xf32>, vector<16x1xf32>, vector<16x1xf32>, vector<16x1xf32>, vector<16x1xf32>, vector<16x1xf32>, vector<16x1xf32>, vector<16x1xf32>, vector<16x1xf32> -> vector<16x16xf32>
    %751 = tpu.concatenate %66, %160, %254, %348, %442, %536, %630, %723 in 1 : vector<16x1xf32>, vector<16x1xf32>, vector<16x1xf32>, vector<16x1xf32>, vector<16x1xf32>, vector<16x1xf32>, vector<16x1xf32>, vector<16x1xf32> -> vector<16x8xf32>
    %752 = tpu.concatenate %750, %751 in 1 : vector<16x16xf32>, vector<16x8xf32> -> vector<16x24xf32>
    %c0_167 = arith.constant 0 : index
    %c0_168 = arith.constant 0 : index
    %c0_169 = arith.constant 0 : index
    %753 = vector.load %arg6[%c0_167, %c0_168, %c0_169] : memref<1x16x24xf32, #tpu.memory_space<vmem>>, vector<1x16x24xf32>
    %754 = vector.shape_cast %753 : vector<1x16x24xf32> to vector<16x24xf32>
    %755 = vector.shape_cast %752 : vector<16x24xf32> to vector<1x16x24xf32>
    tpu.vector_store %arg6[%c0_167, %c0_168, %c0_169], %755 {strides = array<i32>} : memref<1x16x24xf32, #tpu.memory_space<vmem>>, vector<1x16x24xf32>,
    return
  }
  func.func @transform_0(%arg0: i32) -> (i32, i32, i32) {
    %c0_i32 = arith.constant 0 : i32
    %c0_i32_0 = arith.constant 0 : i32
    %c0_i32_1 = arith.constant 0 : i32
    return %arg0, %c0_i32, %c0_i32_0 : i32, i32, i32
  }
  func.func @transform_1(%arg0: i32) -> (i32, i32, i32) {
    %c0_i32 = arith.constant 0 : i32
    %c0_i32_0 = arith.constant 0 : i32
    %c0_i32_1 = arith.constant 0 : i32
    return %arg0, %c0_i32, %c0_i32_0 : i32, i32, i32
  }
  func.func @transform_2(%arg0: i32) -> (i32, i32) {
    %c0_i32 = arith.constant 0 : i32
    %c0_i32_0 = arith.constant 0 : i32
    %c0_i32_1 = arith.constant 0 : i32
    return %c0_i32, %c0_i32_0 : i32, i32
  }
  func.func @transform_3(%arg0: i32) -> (i32, i32) {
    %c0_i32 = arith.constant 0 : i32
    %c0_i32_0 = arith.constant 0 : i32
    %c0_i32_1 = arith.constant 0 : i32
    return %c0_i32, %c0_i32_0 : i32, i32
  }
  func.func @transform_4(%arg0: i32) -> (i32, i32) {
    %c0_i32 = arith.constant 0 : i32
    %c0_i32_0 = arith.constant 0 : i32
    %c0_i32_1 = arith.constant 0 : i32
    return %c0_i32, %c0_i32_0 : i32, i32
  }
  func.func @transform_5(%arg0: i32) -> (i32, i32, i32) {
    %c0_i32 = arith.constant 0 : i32
    %c0_i32_0 = arith.constant 0 : i32
    %c0_i32_1 = arith.constant 0 : i32
    return %arg0, %c0_i32, %c0_i32_0 : i32, i32, i32
  }
}

</mosaic_0001>

<llo_original>
// kernel: tpu_custom_call.1
$region0: #{tpu_custom_call.1}
  #allocation0 [shape = 'u32[]', space=smem, size = 0x4, offset = 0x4, fixed_abs, tag = 'smem constant byte address 0x4 - core index']
  #allocation1 [shape = 'u32[144,128]{1,0:T(1,128)}', space=vmem, size = 0x12000, scoped, tag = 'internal scratch']
  %s0 = inlined_call_operand.vmem [shape: f32[2,128,4], index: 0, kind: input, shape index: {}]
  %s1 = inlined_call_operand.vmem [shape: f32[2,16,3], index: 1, kind: input, shape index: {}]
  %s2 = inlined_call_operand.vmem [shape: f32[4,11], index: 2, kind: input, shape index: {}]
  %s3 = inlined_call_operand.vmem [shape: f32[3,11], index: 3, kind: input, shape index: {}]
  %s4 = inlined_call_operand.vmem [shape: f32[1,11], index: 4, kind: input, shape index: {}]
  %s5 = inlined_call_operand.hbm [shape: f32[2,16,24], index: 5, kind: output, shape index: {}]
  %s6 = sld [smem:[#allocation0]]
  $region53: #{tpu_custom_call.1} parent=0
    _
  %s8 = ssub.s32 1, %s6
  %s9 = scalar_select 0, %s8, %s6
  $region1: #{tpu_custom_call.1} parent=0
    #allocation2 [shape = 'u8[16384]{0}', space=vmem, size = 0x4000, scoped, tag = 'output window, operand 0']
    #allocation3 [shape = 's32[2]{0}', space=sflag, size = 0x8, scoped, tag = 'scoped memory for tpu_custom_call.1']
    %10 = vsyncpa [#allocation3], 0
    %s11 = scalar_lea.sflag [#allocation3], 1
    %12 = vsyncpa %s11, 0
    loop: start=0, step=1, limit=4
    $region2: #{tpu_custom_call.1} parent=1 // loop_pre_header
      _
    $region3: #{tpu_custom_call.1} parent=1 // loop_header
      %s14 = sphi 0, %s18
      %p15 = scmp.ge.s32.totalorder %s14, 4
      %s24 = sphi 0, %s26
      %s27 = sphi 0, %s24
      %s28 = sphi 0, %s27
      %s44 = sphi 0, %s28
      %s50 = sphi 0, %s52
      %s53 = sphi 0, %s50
      %s54 = sphi 0, %s53
      %s70 = sphi 0, %s54
      %s74 = sphi 0, %s74
      %s76 = sphi 0, %s74
      %s77 = sphi 0, %s76
      %s91 = sphi 0, %s77
      %s95 = sphi 0, %s95
      %s97 = sphi 0, %s95
      %s98 = sphi 0, %s97
      %s112 = sphi 0, %s98
      %s116 = sphi 0, %s116
      %s118 = sphi 0, %s116
      %s119 = sphi 0, %s118
      %s133 = sphi 0, %s119
      %s139 = sphi 0, %s141
      %s142 = sphi 0, %s139
      %s143 = sphi 0, %s142
      %s159 = sphi 0, %s143
    $region4: #{tpu_custom_call.1} parent=1 // loop_header_branch
      %17 = sbr.rel (%p15) target = $region8
    $region5: #{tpu_custom_call.1} parent=1 // loop_body
      %s19 = ssub.s32 %s14, 1
      %s20 = ssub.s32 %s14, 2
      %s21 = sadd.s32 %s14, 1
      %s22 = ssub.s32 %s14, %s21
      %p23 = scmp.eq.s32.totalorder %s22, 0
      %s25 = sadd.s32 %s24, 1
      %s26 = scalar_select %p23, %s24, %s25
      %p29 = pneg %p23
      %p30 = scmp.eq.s32.totalorder %s14, 1
      %p31 = por %p29, %p30
      %p32 = scmp.ne.s32.totalorder %s24, %s27
      %p33 = scmp.eq.s32.totalorder %s14, 0
      %p34 = por %p32, %p33
      %p35 = scmp.ne.s32.totalorder %s24, %s27
      %p36 = scmp.eq.s32.totalorder %s19, 1
      %p37 = por %p35, %p36
      %p38 = scmp.ne.s32.totalorder %s27, %s28
      %p39 = scmp.eq.s32.totalorder %s19, 0
      %p40 = por %p38, %p39
      %p41 = scmp.ne.s32.totalorder %s27, %s28
      %p42 = scmp.eq.s32.totalorder %s20, 1
      %p43 = por %p41, %p42
      %p45 = scmp.ne.s32.totalorder %s28, %s44
      %p46 = scmp.eq.s32.totalorder %s20, 0
      %p47 = por %p45, %p46
      %s48 = ssub.s32 %s14, %s21
      %p49 = scmp.eq.s32.totalorder %s48, 0
      %s51 = sadd.s32 %s50, 1
      %s52 = scalar_select %p49, %s50, %s51
      %p55 = pneg %p49
      %p56 = scmp.eq.s32.totalorder %s14, 1
      %p57 = por %p55, %p56
      %p58 = scmp.ne.s32.totalorder %s50, %s53
      %p59 = scmp.eq.s32.totalorder %s14, 0
      %p60 = por %p58, %p59
      %p61 = scmp.ne.s32.totalorder %s50, %s53
      %p62 = scmp.eq.s32.totalorder %s19, 1
      %p63 = por %p61, %p62
      %p64 = scmp.ne.s32.totalorder %s53, %s54
      %p65 = scmp.eq.s32.totalorder %s19, 0
      %p66 = por %p64, %p65
      %p67 = scmp.ne.s32.totalorder %s53, %s54
      %p68 = scmp.eq.s32.totalorder %s20, 1
      %p69 = por %p67, %p68
      %p71 = scmp.ne.s32.totalorder %s54, %s70
      %p72 = scmp.eq.s32.totalorder %s20, 0
      %p73 = por %p71, %p72
      %s75 = sadd.s32 %s74, 1
      %p78 = scmp.eq.s32.totalorder %s14, 1
      %p79 = scmp.ne.s32.totalorder %s74, %s76
      %p80 = scmp.eq.s32.totalorder %s14, 0
      %p81 = por %p79, %p80
      %p82 = scmp.ne.s32.totalorder %s74, %s76
      %p83 = scmp.eq.s32.totalorder %s19, 1
      %p84 = por %p82, %p83
      %p85 = scmp.ne.s32.totalorder %s76, %s77
      %p86 = scmp.eq.s32.totalorder %s19, 0
      %p87 = por %p85, %p86
      %p88 = scmp.ne.s32.totalorder %s76, %s77
      %p89 = scmp.eq.s32.totalorder %s20, 1
      %p90 = por %p88, %p89
      %p92 = scmp.ne.s32.totalorder %s77, %s91
      %p93 = scmp.eq.s32.totalorder %s20, 0
      %p94 = por %p92, %p93
      %s96 = sadd.s32 %s95, 1
      %p99 = scmp.eq.s32.totalorder %s14, 1
      %p100 = scmp.ne.s32.totalorder %s95, %s97
      %p101 = scmp.eq.s32.totalorder %s14, 0
      %p102 = por %p100, %p101
      %p103 = scmp.ne.s32.totalorder %s95, %s97
      %p104 = scmp.eq.s32.totalorder %s19, 1
      %p105 = por %p103, %p104
      %p106 = scmp.ne.s32.totalorder %s97, %s98
      %p107 = scmp.eq.s32.totalorder %s19, 0
      %p108 = por %p106, %p107
      %p109 = scmp.ne.s32.totalorder %s97, %s98
      %p110 = scmp.eq.s32.totalorder %s20, 1
      %p111 = por %p109, %p110
      %p113 = scmp.ne.s32.totalorder %s98, %s112
      %p114 = scmp.eq.s32.totalorder %s20, 0
      %p115 = por %p113, %p114
      %s117 = sadd.s32 %s116, 1
      %p120 = scmp.eq.s32.totalorder %s14, 1
      %p121 = scmp.ne.s32.totalorder %s116, %s118
      %p122 = scmp.eq.s32.totalorder %s14, 0
      %p123 = por %p121, %p122
      %p124 = scmp.ne.s32.totalorder %s116, %s118
      %p125 = scmp.eq.s32.totalorder %s19, 1
      %p126 = por %p124, %p125
      %p127 = scmp.ne.s32.totalorder %s118, %s119
      %p128 = scmp.eq.s32.totalorder %s19, 0
      %p129 = por %p127, %p128
      %p130 = scmp.ne.s32.totalorder %s118, %s119
      %p131 = scmp.eq.s32.totalorder %s20, 1
      %p132 = por %p130, %p131
      %p134 = scmp.ne.s32.totalorder %s119, %s133
      %p135 = scmp.eq.s32.totalorder %s20, 0
      %p136 = por %p134, %p135
      %s137 = ssub.s32 %s14, %s21
      %p138 = scmp.eq.s32.totalorder %s137, 0
      %s140 = sadd.s32 %s139, 1
      %s141 = scalar_select %p138, %s139, %s140
      %p144 = pneg %p138
      %p145 = scmp.eq.s32.totalorder %s14, 1
      %p146 = por %p144, %p145
      %p147 = scmp.ne.s32.totalorder %s139, %s142
      %p148 = scmp.eq.s32.totalorder %s14, 0
      %p149 = por %p147, %p148
      %p150 = scmp.ne.s32.totalorder %s139, %s142
      %p151 = scmp.eq.s32.totalorder %s19, 1
      %p152 = por %p150, %p151
      %p153 = scmp.ne.s32.totalorder %s142, %s143
      %p154 = scmp.eq.s32.totalorder %s19, 0
      %p155 = por %p153, %p154
      %p156 = scmp.ne.s32.totalorder %s142, %s143
      %p157 = scmp.eq.s32.totalorder %s20, 1
      %p158 = por %p156, %p157
      %p160 = scmp.ne.s32.totalorder %s143, %s159
      %p161 = scmp.eq.s32.totalorder %s20, 0
      %p162 = por %p160, %p161
      %p163 = scmp.le.s32.totalorder 1, %s14
      %p164 = scmp.lt.s32.totalorder %s14, 3
      %p165 = pnand %p163, %p164
      %p166 = pneg %p165
      // Predicated region
      $region9: #{tpu_custom_call.1} parent=5 // pred_check
        _
      $region10: #{tpu_custom_call.1} parent=5 // pred_check_branch
        %168 = sbr.rel (%p165) target = $region12
      $region11: #{tpu_custom_call.1} parent=5 // pred_region
        %s169 = ssub.s32 %s14, 1
        // Predicated region
        $region13: #{tpu_custom_call.1} parent=11 // pred_check
          %p170 = pneg %p87
        $region14: #{tpu_custom_call.1} parent=11 // pred_check_branch
          %172 = sbr.rel (%p170) target = $region16
        $region15: #{tpu_custom_call.1} parent=11 // pred_region
          _
        $region16: #{tpu_custom_call.1} parent=11 // pred_fallthru
          _
        // Predicated region
        $region17: #{tpu_custom_call.1} parent=11 // pred_check
          %p173 = pneg %p108
        $region18: #{tpu_custom_call.1} parent=11 // pred_check_branch
          %175 = sbr.rel (%p173) target = $region20
        $region19: #{tpu_custom_call.1} parent=11 // pred_region
          _
        $region20: #{tpu_custom_call.1} parent=11 // pred_fallthru
          _
        // Predicated region
        $region21: #{tpu_custom_call.1} parent=11 // pred_check
          %p176 = pneg %p129
        $region22: #{tpu_custom_call.1} parent=11 // pred_check_branch
          %178 = sbr.rel (%p176) target = $region24
        $region23: #{tpu_custom_call.1} parent=11 // pred_region
          _
        $region24: #{tpu_custom_call.1} parent=11 // pred_fallthru
          _
      $region12: #{tpu_custom_call.1} parent=5 // pred_fallthru
        _
      %p179 = scmp.lt.s32.totalorder %s14, 2
      // Predicated region
      $region25: #{tpu_custom_call.1} parent=5 // pred_check
        %p180 = pneg %p179
      $region26: #{tpu_custom_call.1} parent=5 // pred_check_branch
        %182 = sbr.rel (%p180) target = $region28
      $region27: #{tpu_custom_call.1} parent=5 // pred_region
        // Predicated region
        $region29: #{tpu_custom_call.1} parent=27 // pred_check
          %p183 = pneg %p34
        $region30: #{tpu_custom_call.1} parent=27 // pred_check_branch
          %185 = sbr.rel (%p183) target = $region32
        $region31: #{tpu_custom_call.1} parent=27 // pred_region
          %p186 = scmp.lt.s32.totalorder %s14, 1
          %s187 = scalar_select %p186, %s14, 1
          %s188 = smul.addr %s187, 16
          %s189 = smul.addr %s188, 8
          %s190 = scalar_lea.vmem %s0, %s189
        $region32: #{tpu_custom_call.1} parent=27 // pred_fallthru
          _
        // Predicated region
        $region33: #{tpu_custom_call.1} parent=27 // pred_check
          %p191 = pneg %p60
        $region34: #{tpu_custom_call.1} parent=27 // pred_check_branch
          %193 = sbr.rel (%p191) target = $region36
        $region35: #{tpu_custom_call.1} parent=27 // pred_region
          %p194 = scmp.lt.s32.totalorder %s14, 1
          %s195 = scalar_select %p194, %s14, 1
          %s196 = smul.addr %s195, 2
          %s197 = smul.addr %s196, 8
          %s198 = scalar_lea.vmem %s1, %s197
        $region36: #{tpu_custom_call.1} parent=27 // pred_fallthru
          _
      $region28: #{tpu_custom_call.1} parent=5 // pred_fallthru
        _
      %p199 = scmp.le.s32.totalorder 1, %s14
      %p200 = scmp.lt.s32.totalorder %s14, 3
      %p201 = pnand %p199, %p200
      %p202 = pneg %p201
      // Predicated region
      $region37: #{tpu_custom_call.1} parent=5 // pred_check
        _
      $region38: #{tpu_custom_call.1} parent=5 // pred_check_branch
        %204 = sbr.rel (%p201) target = $region40
      $region39: #{tpu_custom_call.1} parent=5 // pred_region
        %s205 = ssub.s32 %s14, 1
        %p206 = scmp.lt.s32.totalorder %s19, 1
        %s207 = scalar_select %p206, %s19, 1
        %s208 = smul.addr %s207, 16
        %s209 = smul.addr %s208, 8
        %s210 = scalar_lea.vmem %s0, %s209
        %p211 = pneg %p40
        %p212 = pneg %p37
        %p213 = scmp.lt.s32.totalorder %s19, 1
        %s214 = scalar_select %p213, %s19, 1
        %s215 = smul.addr %s214, 2
        %s216 = smul.addr %s215, 8
        %s217 = scalar_lea.vmem %s1, %s216
        %p218 = pneg %p66
        %p219 = pneg %p63
        %p220 = pneg %p87
        %p221 = pneg %p84
        %p222 = pneg %p108
        %p223 = pneg %p105
        %p224 = pneg %p129
        %p225 = pneg %p126
        %p226 = pneg %p155
        %p227 = pneg %p152
        %s228 = sand.u32 %s142, 1
        %s229 = scalar_lea.sflag [#allocation3], %s228
        %s230 = sand.u32 %s142, 1
        %s231 = smul.addr %s230, 16
        %s232 = scalar_lea.vmem [#allocation2], %s231
        %p233 = scmp.lt.s32.totalorder %s19, 1
        %s234 = scalar_select %p233, %s19, 1
        %s235 = smul.addr %s234, 16
        %s236 = smul.addr %s235, 8
        %s237 = scalar_lea.vmem %s0, %s236
        %p238 = scmp.lt.s32.totalorder %s19, 1
        %s239 = scalar_select %p238, %s19, 1
        %s240 = smul.addr %s239, 2
        %s241 = smul.addr %s240, 8
        %s242 = scalar_lea.vmem %s1, %s241
        %v243 = vld [vmem:[%s237] sm:$0xff]
        %v244 = vld [vmem:[%s237 + $0x8] sm:$0xff]
        %v245 = vld [vmem:[%s237 + $0x10] sm:$0xff]
        %v246 = vld [vmem:[%s237 + $0x18] sm:$0xff]
        %v247 = vld [vmem:[%s237 + $0x20] sm:$0xff]
        %v248 = vld [vmem:[%s237 + $0x28] sm:$0xff]
        %v249 = vld [vmem:[%s237 + $0x30] sm:$0xff]
        %v250 = vld [vmem:[%s237 + $0x38] sm:$0xff]
        %v251 = vld [vmem:[%s237 + $0x40] sm:$0xff]
        %v252 = vld [vmem:[%s237 + $0x48] sm:$0xff]
        %v253 = vld [vmem:[%s237 + $0x50] sm:$0xff]
        %v254 = vld [vmem:[%s237 + $0x58] sm:$0xff]
        %v255 = vld [vmem:[%s237 + $0x60] sm:$0xff]
        %v256 = vld [vmem:[%s237 + $0x68] sm:$0xff]
        %v257 = vld [vmem:[%s237 + $0x70] sm:$0xff]
        %v258 = vld [vmem:[%s237 + $0x78] sm:$0xff]
        %v259 = vld [vmem:[%s4] sm:$0x1]
        %v261 = vlaneseq
        %v262 = vshrl.u32 %v261, 7
        %v263 = vsub.s32 0, %v262
        %v264 = vrot.slane %v259, %v263
        %v266 = vld [vmem:[%s2] sm:$0x1]
        %268 = vset.pattern.permute.xlu0 0
        %269 = vperm.xlu0 %268, %v243
        %v270 = vpop.permute.xlu0 %269
        %273 = vset.pattern.permute.xlu0 0
        %274 = vperm.xlu0 %273, %v244
        %v275 = vpop.permute.xlu0 %274
        %278 = vset.pattern.permute.xlu0 0
        %279 = vperm.xlu0 %278, %v245
        %v280 = vpop.permute.xlu0 %279
        %283 = vset.pattern.permute.xlu0 0
        %284 = vperm.xlu0 %283, %v246
        %v285 = vpop.permute.xlu0 %284
        %288 = vset.pattern.permute.xlu0 0
        %289 = vperm.xlu0 %288, %v247
        %v290 = vpop.permute.xlu0 %289
        %293 = vset.pattern.permute.xlu0 0
        %294 = vperm.xlu0 %293, %v248
        %v295 = vpop.permute.xlu0 %294
        %298 = vset.pattern.permute.xlu0 0
        %299 = vperm.xlu0 %298, %v249
        %v300 = vpop.permute.xlu0 %299
        %303 = vset.pattern.permute.xlu0 0
        %304 = vperm.xlu0 %303, %v250
        %v305 = vpop.permute.xlu0 %304
        %308 = vset.pattern.permute.xlu0 0
        %309 = vperm.xlu0 %308, %v251
        %v310 = vpop.permute.xlu0 %309
        %313 = vset.pattern.permute.xlu0 0
        %314 = vperm.xlu0 %313, %v252
        %v315 = vpop.permute.xlu0 %314
        %318 = vset.pattern.permute.xlu0 0
        %319 = vperm.xlu0 %318, %v253
        %v320 = vpop.permute.xlu0 %319
        %323 = vset.pattern.permute.xlu0 0
        %324 = vperm.xlu0 %323, %v254
        %v325 = vpop.permute.xlu0 %324
        %328 = vset.pattern.permute.xlu0 0
        %329 = vperm.xlu0 %328, %v255
        %v330 = vpop.permute.xlu0 %329
        %333 = vset.pattern.permute.xlu0 0
        %334 = vperm.xlu0 %333, %v256
        %v335 = vpop.permute.xlu0 %334
        %338 = vset.pattern.permute.xlu0 0
        %339 = vperm.xlu0 %338, %v257
        %v340 = vpop.permute.xlu0 %339
        %343 = vset.pattern.permute.xlu0 0
        %344 = vperm.xlu0 %343, %v258
        %v345 = vpop.permute.xlu0 %344
        %v347 = vlaneseq
        %v348 = vshrl.u32 %v347, 7
        %v349 = vsub.s32 0, %v348
        %v350 = vrot.slane %v266, %v349
        %v351 = vmul.f32 %v270, %v350
        %v352 = vmul.f32 %v275, %v350
        %v353 = vmul.f32 %v280, %v350
        %v354 = vmul.f32 %v285, %v350
        %v355 = vmul.f32 %v290, %v350
        %v356 = vmul.f32 %v295, %v350
        %v357 = vmul.f32 %v300, %v350
        %v358 = vmul.f32 %v305, %v350
        %v359 = vmul.f32 %v310, %v350
        %v360 = vmul.f32 %v315, %v350
        %v361 = vmul.f32 %v320, %v350
        %v362 = vmul.f32 %v325, %v350
        %v363 = vmul.f32 %v330, %v350
        %v364 = vmul.f32 %v335, %v350
        %v365 = vmul.f32 %v340, %v350
        %v366 = vmul.f32 %v345, %v350
        %v367 = vadd.f32 %v264, %v351
        %v368 = vadd.f32 %v264, %v352
        %v369 = vadd.f32 %v264, %v353
        %v370 = vadd.f32 %v264, %v354
        %v371 = vadd.f32 %v264, %v355
        %v372 = vadd.f32 %v264, %v356
        %v373 = vadd.f32 %v264, %v357
        %v374 = vadd.f32 %v264, %v358
        %v375 = vadd.f32 %v264, %v359
        %v376 = vadd.f32 %v264, %v360
        %v377 = vadd.f32 %v264, %v361
        %v378 = vadd.f32 %v264, %v362
        %v379 = vadd.f32 %v264, %v363
        %v380 = vadd.f32 %v264, %v364
        %v381 = vadd.f32 %v264, %v365
        %v382 = vadd.f32 %v264, %v366
        %v383 = vld [vmem:[%s2 + $0x1] sm:$0x1]
        %384 = vset.pattern.permute.xlu0 1
        %385 = vperm.xlu0 %384, %v243
        %v386 = vpop.permute.xlu0 %385
        %388 = vset.pattern.permute.xlu0 1
        %389 = vperm.xlu0 %388, %v244
        %v390 = vpop.permute.xlu0 %389
        %392 = vset.pattern.permute.xlu0 1
        %393 = vperm.xlu0 %392, %v245
        %v394 = vpop.permute.xlu0 %393
        %396 = vset.pattern.permute.xlu0 1
        %397 = vperm.xlu0 %396, %v246
        %v398 = vpop.permute.xlu0 %397
        %400 = vset.pattern.permute.xlu0 1
        %401 = vperm.xlu0 %400, %v247
        %v402 = vpop.permute.xlu0 %401
        %404 = vset.pattern.permute.xlu0 1
        %405 = vperm.xlu0 %404, %v248
        %v406 = vpop.permute.xlu0 %405
        %408 = vset.pattern.permute.xlu0 1
        %409 = vperm.xlu0 %408, %v249
        %v410 = vpop.permute.xlu0 %409
        %412 = vset.pattern.permute.xlu0 1
        %413 = vperm.xlu0 %412, %v250
        %v414 = vpop.permute.xlu0 %413
        %416 = vset.pattern.permute.xlu0 1
        %417 = vperm.xlu0 %416, %v251
        %v418 = vpop.permute.xlu0 %417
        %420 = vset.pattern.permute.xlu0 1
        %421 = vperm.xlu0 %420, %v252
        %v422 = vpop.permute.xlu0 %421
        %424 = vset.pattern.permute.xlu0 1
        %425 = vperm.xlu0 %424, %v253
        %v426 = vpop.permute.xlu0 %425
        %428 = vset.pattern.permute.xlu0 1
        %429 = vperm.xlu0 %428, %v254
        %v430 = vpop.permute.xlu0 %429
        %432 = vset.pattern.permute.xlu0 1
        %433 = vperm.xlu0 %432, %v255
        %v434 = vpop.permute.xlu0 %433
        %436 = vset.pattern.permute.xlu0 1
        %437 = vperm.xlu0 %436, %v256
        %v438 = vpop.permute.xlu0 %437
        %440 = vset.pattern.permute.xlu0 1
        %441 = vperm.xlu0 %440, %v257
        %v442 = vpop.permute.xlu0 %441
        %444 = vset.pattern.permute.xlu0 1
        %445 = vperm.xlu0 %444, %v258
        %v446 = vpop.permute.xlu0 %445
        %v448 = vlaneseq
        %v449 = vshrl.u32 %v448, 7
        %v450 = vsub.s32 0, %v449
        %v451 = vrot.slane %v383, %v450
        %v452 = vmul.f32 %v386, %v451
        %v453 = vmul.f32 %v390, %v451
        %v454 = vmul.f32 %v394, %v451
        %v455 = vmul.f32 %v398, %v451
        %v456 = vmul.f32 %v402, %v451
        %v457 = vmul.f32 %v406, %v451
        %v458 = vmul.f32 %v410, %v451
        %v459 = vmul.f32 %v414, %v451
        %v460 = vmul.f32 %v418, %v451
        %v461 = vmul.f32 %v422, %v451
        %v462 = vmul.f32 %v426, %v451
        %v463 = vmul.f32 %v430, %v451
        %v464 = vmul.f32 %v434, %v451
        %v465 = vmul.f32 %v438, %v451
        %v466 = vmul.f32 %v442, %v451
        %v467 = vmul.f32 %v446, %v451
        %v468 = vadd.f32 %v367, %v452
        %v469 = vadd.f32 %v368, %v453
        %v470 = vadd.f32 %v369, %v454
        %v471 = vadd.f32 %v370, %v455
        %v472 = vadd.f32 %v371, %v456
        %v473 = vadd.f32 %v372, %v457
        %v474 = vadd.f32 %v373, %v458
        %v475 = vadd.f32 %v374, %v459
        %v476 = vadd.f32 %v375, %v460
        %v477 = vadd.f32 %v376, %v461
        %v478 = vadd.f32 %v377, %v462
        %v479 = vadd.f32 %v378, %v463
        %v480 = vadd.f32 %v379, %v464
        %v481 = vadd.f32 %v380, %v465
        %v482 = vadd.f32 %v381, %v466
        %v483 = vadd.f32 %v382, %v467
        %v484 = vld [vmem:[%s2 + $0x2] sm:$0x1]
        %485 = vset.pattern.permute.xlu0 2
        %486 = vperm.xlu0 %485, %v243
        %v487 = vpop.permute.xlu0 %486
        %489 = vset.pattern.permute.xlu0 2
        %490 = vperm.xlu0 %489, %v244
        %v491 = vpop.permute.xlu0 %490
        %493 = vset.pattern.permute.xlu0 2
        %494 = vperm.xlu0 %493, %v245
        %v495 = vpop.permute.xlu0 %494
        %497 = vset.pattern.permute.xlu0 2
        %498 = vperm.xlu0 %497, %v246
        %v499 = vpop.permute.xlu0 %498
        %501 = vset.pattern.permute.xlu0 2
        %502 = vperm.xlu0 %501, %v247
        %v503 = vpop.permute.xlu0 %502
        %505 = vset.pattern.permute.xlu0 2
        %506 = vperm.xlu0 %505, %v248
        %v507 = vpop.permute.xlu0 %506
        %509 = vset.pattern.permute.xlu0 2
        %510 = vperm.xlu0 %509, %v249
        %v511 = vpop.permute.xlu0 %510
        %513 = vset.pattern.permute.xlu0 2
        %514 = vperm.xlu0 %513, %v250
        %v515 = vpop.permute.xlu0 %514
        %517 = vset.pattern.permute.xlu0 2
        %518 = vperm.xlu0 %517, %v251
        %v519 = vpop.permute.xlu0 %518
        %521 = vset.pattern.permute.xlu0 2
        %522 = vperm.xlu0 %521, %v252
        %v523 = vpop.permute.xlu0 %522
        %525 = vset.pattern.permute.xlu0 2
        %526 = vperm.xlu0 %525, %v253
        %v527 = vpop.permute.xlu0 %526
        %529 = vset.pattern.permute.xlu0 2
        %530 = vperm.xlu0 %529, %v254
        %v531 = vpop.permute.xlu0 %530
        %533 = vset.pattern.permute.xlu0 2
        %534 = vperm.xlu0 %533, %v255
        %v535 = vpop.permute.xlu0 %534
        %537 = vset.pattern.permute.xlu0 2
        %538 = vperm.xlu0 %537, %v256
        %v539 = vpop.permute.xlu0 %538
        %541 = vset.pattern.permute.xlu0 2
        %542 = vperm.xlu0 %541, %v257
        %v543 = vpop.permute.xlu0 %542
        %545 = vset.pattern.permute.xlu0 2
        %546 = vperm.xlu0 %545, %v258
        %v547 = vpop.permute.xlu0 %546
        %v549 = vlaneseq
        %v550 = vshrl.u32 %v549, 7
        %v551 = vsub.s32 0, %v550
        %v552 = vrot.slane %v484, %v551
        %v553 = vmul.f32 %v487, %v552
        %v554 = vmul.f32 %v491, %v552
        %v555 = vmul.f32 %v495, %v552
        %v556 = vmul.f32 %v499, %v552
        %v557 = vmul.f32 %v503, %v552
        %v558 = vmul.f32 %v507, %v552
        %v559 = vmul.f32 %v511, %v552
        %v560 = vmul.f32 %v515, %v552
        %v561 = vmul.f32 %v519, %v552
        %v562 = vmul.f32 %v523, %v552
        %v563 = vmul.f32 %v527, %v552
        %v564 = vmul.f32 %v531, %v552
        %v565 = vmul.f32 %v535, %v552
        %v566 = vmul.f32 %v539, %v552
        %v567 = vmul.f32 %v543, %v552
        %v568 = vmul.f32 %v547, %v552
        %v569 = vadd.f32 %v468, %v553
        %v570 = vadd.f32 %v469, %v554
        %v571 = vadd.f32 %v470, %v555
        %v572 = vadd.f32 %v471, %v556
        %v573 = vadd.f32 %v472, %v557
        %v574 = vadd.f32 %v473, %v558
        %v575 = vadd.f32 %v474, %v559
        %v576 = vadd.f32 %v475, %v560
        %v577 = vadd.f32 %v476, %v561
        %v578 = vadd.f32 %v477, %v562
        %v579 = vadd.f32 %v478, %v563
        %v580 = vadd.f32 %v479, %v564
        %v581 = vadd.f32 %v480, %v565
        %v582 = vadd.f32 %v481, %v566
        %v583 = vadd.f32 %v482, %v567
        %v584 = vadd.f32 %v483, %v568
        %v585 = vld [vmem:[%s2 + $0x3] sm:$0x1]
        %586 = vset.pattern.permute.xlu0 3
        %587 = vperm.xlu0 %586, %v243
        %v588 = vpop.permute.xlu0 %587
        %590 = vset.pattern.permute.xlu0 3
        %591 = vperm.xlu0 %590, %v244
        %v592 = vpop.permute.xlu0 %591
        %594 = vset.pattern.permute.xlu0 3
        %595 = vperm.xlu0 %594, %v245
        %v596 = vpop.permute.xlu0 %595
        %598 = vset.pattern.permute.xlu0 3
        %599 = vperm.xlu0 %598, %v246
        %v600 = vpop.permute.xlu0 %599
        %602 = vset.pattern.permute.xlu0 3
        %603 = vperm.xlu0 %602, %v247
        %v604 = vpop.permute.xlu0 %603
        %606 = vset.pattern.permute.xlu0 3
        %607 = vperm.xlu0 %606, %v248
        %v608 = vpop.permute.xlu0 %607
        %610 = vset.pattern.permute.xlu0 3
        %611 = vperm.xlu0 %610, %v249
        %v612 = vpop.permute.xlu0 %611
        %614 = vset.pattern.permute.xlu0 3
        %615 = vperm.xlu0 %614, %v250
        %v616 = vpop.permute.xlu0 %615
        %618 = vset.pattern.permute.xlu0 3
        %619 = vperm.xlu0 %618, %v251
        %v620 = vpop.permute.xlu0 %619
        %622 = vset.pattern.permute.xlu0 3
        %623 = vperm.xlu0 %622, %v252
        %v624 = vpop.permute.xlu0 %623
        %626 = vset.pattern.permute.xlu0 3
        %627 = vperm.xlu0 %626, %v253
        %v628 = vpop.permute.xlu0 %627
        %630 = vset.pattern.permute.xlu0 3
        %631 = vperm.xlu0 %630, %v254
        %v632 = vpop.permute.xlu0 %631
        %634 = vset.pattern.permute.xlu0 3
        %635 = vperm.xlu0 %634, %v255
        %v636 = vpop.permute.xlu0 %635
        %638 = vset.pattern.permute.xlu0 3
        %639 = vperm.xlu0 %638, %v256
        %v640 = vpop.permute.xlu0 %639
        %642 = vset.pattern.permute.xlu0 3
        %643 = vperm.xlu0 %642, %v257
        %v644 = vpop.permute.xlu0 %643
        %646 = vset.pattern.permute.xlu0 3
        %647 = vperm.xlu0 %646, %v258
        %v648 = vpop.permute.xlu0 %647
        %v650 = vlaneseq
        %v651 = vshrl.u32 %v650, 7
        %v652 = vsub.s32 0, %v651
        %v653 = vrot.slane %v585, %v652
        %v654 = vmul.f32 %v588, %v653
        %v655 = vmul.f32 %v592, %v653
        %v656 = vmul.f32 %v596, %v653
        %v657 = vmul.f32 %v600, %v653
        %v658 = vmul.f32 %v604, %v653
        %v659 = vmul.f32 %v608, %v653
        %v660 = vmul.f32 %v612, %v653
        %v661 = vmul.f32 %v616, %v653
        %v662 = vmul.f32 %v620, %v653
        %v663 = vmul.f32 %v624, %v653
        %v664 = vmul.f32 %v628, %v653
        %v665 = vmul.f32 %v632, %v653
        %v666 = vmul.f32 %v636, %v653
        %v667 = vmul.f32 %v640, %v653
        %v668 = vmul.f32 %v644, %v653
        %v669 = vmul.f32 %v648, %v653
        %v670 = vadd.f32 %v569, %v654
        %v671 = vadd.f32 %v570, %v655
        %v672 = vadd.f32 %v571, %v656
        %v673 = vadd.f32 %v572, %v657
        %v674 = vadd.f32 %v573, %v658
        %v675 = vadd.f32 %v574, %v659
        %v676 = vadd.f32 %v575, %v660
        %v677 = vadd.f32 %v576, %v661
        %v678 = vadd.f32 %v577, %v662
        %v679 = vadd.f32 %v578, %v663
        %v680 = vadd.f32 %v579, %v664
        %v681 = vadd.f32 %v580, %v665
        %v682 = vadd.f32 %v581, %v666
        %v683 = vadd.f32 %v582, %v667
        %v684 = vadd.f32 %v583, %v668
        %v685 = vadd.f32 %v584, %v669
        %v686 = vld [vmem:[%s3] sm:$0x1]
        %v687 = vld [vmem:[%s3 + $0x1] sm:$0x1]
        %v688 = vld [vmem:[%s3 + $0x2] sm:$0x1]
        %v689 = vlaneseq
        %v690 = vand.u32 %v689, 127
        %v691 = vcvt.s32.f32 %v690
        %v692 = vld [vmem:[%s242] sm:$0xff]
        %v693 = vld [vmem:[%s242 + $0x8] sm:$0xff]
        %695 = vset.pattern.permute.xlu0 0
        %696 = vperm.xlu0 %695, %v692
        %v697 = vpop.permute.xlu0 %696
        %700 = vset.pattern.permute.xlu0 0
        %701 = vperm.xlu0 %700, %v693
        %v702 = vpop.permute.xlu0 %701
        %v704 = vlaneseq
        %v705 = vshrl.u32 %v704, 7
        %v706 = vsub.s32 0, %v705
        %v707 = vrot.slane %v686, %v706
        %v708 = vmul.f32 %v697, %v707
        %v709 = vmul.f32 %v702, %v707
        %v710 = vadd.f32 %v670, %v708
        %v711 = vadd.f32 %v671, %v709
        %712 = vset.pattern.permute.xlu0 1
        %713 = vperm.xlu0 %712, %v692
        %v714 = vpop.permute.xlu0 %713
        %716 = vset.pattern.permute.xlu0 1
        %717 = vperm.xlu0 %716, %v693
        %v718 = vpop.permute.xlu0 %717
        %v720 = vlaneseq
        %v721 = vshrl.u32 %v720, 7
        %v722 = vsub.s32 0, %v721
        %v723 = vrot.slane %v687, %v722
        %v724 = vmul.f32 %v714, %v723
        %v725 = vmul.f32 %v718, %v723
        %v726 = vadd.f32 %v710, %v724
        %v727 = vadd.f32 %v711, %v725
        %728 = vset.pattern.permute.xlu0 2
        %729 = vperm.xlu0 %728, %v692
        %v730 = vpop.permute.xlu0 %729
        %732 = vset.pattern.permute.xlu0 2
        %733 = vperm.xlu0 %732, %v693
        %v734 = vpop.permute.xlu0 %733
        %v736 = vlaneseq
        %v737 = vshrl.u32 %v736, 7
        %v738 = vsub.s32 0, %v737
        %v739 = vrot.slane %v688, %v738
        %v740 = vmul.f32 %v730, %v739
        %v741 = vmul.f32 %v734, %v739
        %v742 = vadd.f32 %v726, %v740
        %v743 = vadd.f32 %v727, %v741
        %vm744 = vcmask 72704
        %v745 = vsel %vm744, %v742, -inf
        %746 = vmax.xlane.f32.xlu0 %v745
        %v747 = vpop.xlane.xlu0 %746
        %v748 = vsel %vm744, %v743, -inf
        %749 = vmax.xlane.f32.xlu0 %v748
        %v750 = vpop.xlane.xlu0 %749
        %v751 = vsub.f32 %v742, %v747
        %v752 = vsub.f32 %v743, %v750
        %v753 = vmul.f32 %v751, 1.442695
        %v754 = vpow.pop %v753
        %v755 = vmul.f32 %v752, 1.442695
        %v756 = vpow.pop %v755
        %v757 = vsel %vm744, %v754, 0.0
        %758 = vadd.xlane.f32.xlu0 %v757
        %v759 = vpop.xlane.xlu0 %758
        %v760 = vsel %vm744, %v756, 0.0
        %761 = vadd.xlane.f32.xlu0 %v760
        %v762 = vpop.xlane.xlu0 %761
        %v763 = vlog2.pop %v759
        %v764 = vmul.f32 %v763, 0.6931472
        %v765 = vlog2.pop %v762
        %v766 = vmul.f32 %v765, 0.6931472
        %v767 = vsub.f32 0.0, %v764
        %v768 = vsub.f32 0.0, %v766
        %vm769 = vcmp.ge.f32.partialorder %v742, %v747
        %vm770 = vcmp.ge.f32.partialorder %v743, %v750
        %v771 = vsel %vm769, %v691, 1e+09
        %v772 = vsel %vm770, %v691, 1e+09
        %v773 = vsel %vm744, %v771, inf
        %774 = vmin.xlane.f32.xlu0 %v773
        %v775 = vpop.xlane.xlu0 %774
        %v776 = vsel %vm744, %v772, inf
        %777 = vmin.xlane.f32.xlu0 %v776
        %v778 = vpop.xlane.xlu0 %777
        %v779 = vadd.f32 %v775, 8.0
        %v780 = vadd.f32 %v778, 8.0
        %783 = vrot.lane.b32.xlu0 %v742, 127
        %v784 = vpop.permute.xlu0 %783
        %785 = vrot.lane.b32.xlu0 %v743, 127
        %v786 = vpop.permute.xlu0 %785
        %v789 = vsub.f32 %v742, %v784
        %v790 = vsub.f32 %v743, %v786
        %v791 = vmul.f32 %v789, 1.442695
        %v792 = vpow.pop %v791
        %v793 = vmul.f32 %v790, 1.442695
        %v794 = vpow.pop %v793
        %v795 = vadd.f32 %v792, 1.0
        %v796 = vadd.f32 %v794, 1.0
        %v797 = vrcp.pop %v795
        %v798 = vmul.f32 1.0, %v797
        %v799 = vrcp.pop %v796
        %v800 = vmul.f32 1.0, %v799
        %v801 = vmul.f32 %v798, 1.442695
        %v802 = vpow.pop %v801
        %v803 = vmul.f32 %v800, 1.442695
        %v804 = vpow.pop %v803
        %vm805 = vcmask 80968
        %v806 = vsel %vm805, %v802, 0.0
        %v807 = vrot.slane %v806, 4
        %v808 = vadd.f32 %v806, %v807
        %v809 = vrot.slane %v808, 2
        %v810 = vadd.f32 %v808, %v809
        %v811 = vrot.slane %v810, 1
        %v812 = vadd.f32 %v810, %v811
        %v813 = vsel %vm805, %v804, 0.0
        %v814 = vrot.slane %v813, 4
        %v815 = vadd.f32 %v813, %v814
        %v816 = vrot.slane %v815, 2
        %v817 = vadd.f32 %v815, %v816
        %v818 = vrot.slane %v817, 1
        %v819 = vadd.f32 %v817, %v818
        %v820 = vrcp.pop %v812
        %v821 = vmul.f32 %v802, %v820
        %v822 = vrcp.pop %v819
        %v823 = vmul.f32 %v804, %v822
        %v824 = vmul.f32 %v243, 0.05
        %v825 = vmul.f32 %v244, 0.05
        %828 = vrot.lane.b32.xlu0 %v824, 127
        %v829 = vpop.permute.xlu0 %828
        %830 = vrot.lane.b32.xlu0 %v825, 127
        %v831 = vpop.permute.xlu0 %830
        %v834 = vadd.f32 %v692, %v829
        %v835 = vadd.f32 %v693, %v831
        %v836 = vsub.f32 %v834, 500.0
        %v837 = vsub.f32 %v835, 500.0
        %v838 = vmul.f32 %v836, %v836
        %v839 = vmul.f32 %v837, %v837
        %v840 = vadd.f32 %v838, 100.0
        %v841 = vadd.f32 %v839, 100.0
        %v842 = vrsqrt.pop %v840
        %v843 = vmul.f32 %v840, %v842
        %vm844 = vcmp.eq.f32.partialorder %v840, inf
        %v845 = vsel %vm844, %v840, %v843
        %vm846 = vcmp.eq.f32.partialorder %v840, 0.0
        %v847 = vand.u32 %v840, 2147483648
        %v848 = vsel %vm846, %v847, %v845
        %v849 = vrsqrt.pop %v841
        %v850 = vmul.f32 %v841, %v849
        %vm851 = vcmp.eq.f32.partialorder %v841, inf
        %v852 = vsel %vm851, %v841, %v850
        %vm853 = vcmp.eq.f32.partialorder %v841, 0.0
        %v854 = vand.u32 %v841, 2147483648
        %v855 = vsel %vm853, %v854, %v852
        %v856 = vmul.f32 %v821, 10.0
        %v857 = vmul.f32 %v823, 10.0
        %v858 = vmul.f32 %v243, 10000000.0
        %v859 = vmul.f32 %v244, 10000000.0
        %v860 = vmul.f32 %v848, %v848
        %v861 = vmul.f32 %v855, %v855
        %864 = vrot.lane.b32.xlu0 %v860, 127
        %v865 = vpop.permute.xlu0 %864
        %866 = vrot.lane.b32.xlu0 %v861, 127
        %v867 = vpop.permute.xlu0 %866
        %v870 = vrcp.pop %v865
        %v871 = vmul.f32 %v858, %v870
        %v872 = vrcp.pop %v867
        %v873 = vmul.f32 %v859, %v872
        %v874 = vadd.f32 %v871, 1.0
        %v875 = vadd.f32 %v873, 1.0
        %v876 = vlog2.pop %v874
        %v877 = vmul.f32 %v876, 0.6931472
        %v878 = vlog2.pop %v875
        %v879 = vmul.f32 %v878, 0.6931472
        %v880 = vmul.f32 %v877, 1.442695
        %v881 = vmul.f32 %v879, 1.442695
        %884 = vrot.lane.b32.xlu0 %v880, 9
        %v885 = vpop.permute.xlu0 %884
        %886 = vrot.lane.b32.xlu0 %v881, 9
        %v887 = vpop.permute.xlu0 %886
        %v890 = vmul.f32 %v856, %v885
        %v891 = vmul.f32 %v857, %v887
        %v892 = vmul.f32 %v779, 0.03125
        %v893 = vmul.f32 %v780, 0.03125
        %v894 = vrcp.pop %v890
        %v895 = vmul.f32 %v892, %v894
        %v896 = vrcp.pop %v891
        %v897 = vmul.f32 %v893, %v896
        %v898 = vadd.f32 %v895, 0.05
        %v899 = vadd.f32 %v897, 0.05
        %v900 = vsel %vm805, %v898, -inf
        %v901 = vrot.slane %v900, 4
        %v902 = vmax.f32 %v900, %v901
        %v903 = vrot.slane %v902, 2
        %v904 = vmax.f32 %v902, %v903
        %v905 = vrot.slane %v904, 1
        %v906 = vmax.f32 %v904, %v905
        %v907 = vsel %vm805, %v899, -inf
        %v908 = vrot.slane %v907, 4
        %v909 = vmax.f32 %v907, %v908
        %v910 = vrot.slane %v909, 2
        %v911 = vmax.f32 %v909, %v910
        %v912 = vrot.slane %v911, 1
        %v913 = vmax.f32 %v911, %v912
        %914 = vrot.lane.b32.xlu0 %v243, 7
        %v915 = vpop.permute.xlu0 %914
        %916 = vrot.lane.b32.xlu0 %v244, 7
        %v917 = vpop.permute.xlu0 %916
        %v920 = vmul.f32 %v906, %v915
        %v921 = vmul.f32 %v913, %v917
        %922 = vrot.lane.b32.xlu0 %v692, 8
        %v923 = vpop.permute.xlu0 %922
        %924 = vrot.lane.b32.xlu0 %v693, 8
        %v925 = vpop.permute.xlu0 %924
        %v928 = vadd.f32 %v920, %v923
        %v929 = vadd.f32 %v921, %v925
        %931 = vset.pattern.permute.xlu0 9
        %932 = vperm.xlu0 %931, %v906
        %v933 = vpop.permute.xlu0 %932
        %936 = vset.pattern.permute.xlu0 9
        %937 = vperm.xlu0 %936, %v913
        %v938 = vpop.permute.xlu0 %937
        %v940 = vmul.f32 %v933, %v707
        %v941 = vmul.f32 %v938, %v707
        %v942 = vadd.f32 %v672, %v940
        %v943 = vadd.f32 %v673, %v941
        %945 = vset.pattern.permute.xlu0 9
        %946 = vperm.xlu0 %945, %v928
        %v947 = vpop.permute.xlu0 %946
        %950 = vset.pattern.permute.xlu0 9
        %951 = vperm.xlu0 %950, %v929
        %v952 = vpop.permute.xlu0 %951
        %v954 = vmul.f32 %v947, %v723
        %v955 = vmul.f32 %v952, %v723
        %v956 = vadd.f32 %v942, %v954
        %v957 = vadd.f32 %v943, %v955
        %959 = vset.pattern.permute.xlu0 1
        %960 = vperm.xlu0 %959, %v848
        %v961 = vpop.permute.xlu0 %960
        %964 = vset.pattern.permute.xlu0 1
        %965 = vperm.xlu0 %964, %v855
        %v966 = vpop.permute.xlu0 %965
        %v968 = vmul.f32 %v961, %v739
        %v969 = vmul.f32 %v966, %v739
        %v970 = vadd.f32 %v956, %v968
        %v971 = vadd.f32 %v957, %v969
        %v972 = vsel %vm744, %v970, -inf
        %973 = vmax.xlane.f32.xlu0 %v972
        %v974 = vpop.xlane.xlu0 %973
        %v975 = vsel %vm744, %v971, -inf
        %976 = vmax.xlane.f32.xlu0 %v975
        %v977 = vpop.xlane.xlu0 %976
        %v978 = vsub.f32 %v970, %v974
        %v979 = vsub.f32 %v971, %v977
        %v980 = vmul.f32 %v978, 1.442695
        %v981 = vpow.pop %v980
        %v982 = vmul.f32 %v979, 1.442695
        %v983 = vpow.pop %v982
        %v984 = vsel %vm744, %v981, 0.0
        %985 = vadd.xlane.f32.xlu0 %v984
        %v986 = vpop.xlane.xlu0 %985
        %v987 = vsel %vm744, %v983, 0.0
        %988 = vadd.xlane.f32.xlu0 %v987
        %v989 = vpop.xlane.xlu0 %988
        %v990 = vlog2.pop %v986
        %v991 = vmul.f32 %v990, 0.6931472
        %v992 = vlog2.pop %v989
        %v993 = vmul.f32 %v992, 0.6931472
        %v994 = vsub.f32 0.0, %v991
        %v995 = vsub.f32 0.0, %v993
        %vm996 = vcmp.ge.f32.partialorder %v970, %v974
        %vm997 = vcmp.ge.f32.partialorder %v971, %v977
        %v998 = vsel %vm996, %v691, 1e+09
        %v999 = vsel %vm997, %v691, 1e+09
        %v1000 = vsel %vm744, %v998, inf
        %1001 = vmin.xlane.f32.xlu0 %v1000
        %v1002 = vpop.xlane.xlu0 %1001
        %v1003 = vsel %vm744, %v999, inf
        %1004 = vmin.xlane.f32.xlu0 %v1003
        %v1005 = vpop.xlane.xlu0 %1004
        %v1006 = vadd.f32 %v1002, 8.0
        %v1007 = vadd.f32 %v1005, 8.0
        %1010 = vrot.lane.b32.xlu0 %v970, 127
        %v1011 = vpop.permute.xlu0 %1010
        %1012 = vrot.lane.b32.xlu0 %v971, 127
        %v1013 = vpop.permute.xlu0 %1012
        %v1016 = vsub.f32 %v970, %v1011
        %v1017 = vsub.f32 %v971, %v1013
        %v1018 = vmul.f32 %v1016, 1.442695
        %v1019 = vpow.pop %v1018
        %v1020 = vmul.f32 %v1017, 1.442695
        %v1021 = vpow.pop %v1020
        %v1022 = vadd.f32 %v1019, 1.0
        %v1023 = vadd.f32 %v1021, 1.0
        %v1024 = vrcp.pop %v1022
        %v1025 = vmul.f32 1.0, %v1024
        %v1026 = vrcp.pop %v1023
        %v1027 = vmul.f32 1.0, %v1026
        %v1028 = vmul.f32 %v1025, 1.442695
        %v1029 = vpow.pop %v1028
        %v1030 = vmul.f32 %v1027, 1.442695
        %v1031 = vpow.pop %v1030
        %v1032 = vsel %vm805, %v1029, 0.0
        %v1033 = vrot.slane %v1032, 4
        %v1034 = vadd.f32 %v1032, %v1033
        %v1035 = vrot.slane %v1034, 2
        %v1036 = vadd.f32 %v1034, %v1035
        %v1037 = vrot.slane %v1036, 1
        %v1038 = vadd.f32 %v1036, %v1037
        %v1039 = vsel %vm805, %v1031, 0.0
        %v1040 = vrot.slane %v1039, 4
        %v1041 = vadd.f32 %v1039, %v1040
        %v1042 = vrot.slane %v1041, 2
        %v1043 = vadd.f32 %v1041, %v1042
        %v1044 = vrot.slane %v1043, 1
        %v1045 = vadd.f32 %v1043, %v1044
        %v1046 = vrcp.pop %v1038
        %v1047 = vmul.f32 %v1029, %v1046
        %v1048 = vrcp.pop %v1045
        %v1049 = vmul.f32 %v1031, %v1048
        %v1050 = vmul.f32 %v245, 0.05
        %v1051 = vmul.f32 %v246, 0.05
        %1054 = vrot.lane.b32.xlu0 %v1050, 7
        %v1055 = vpop.permute.xlu0 %1054
        %1056 = vrot.lane.b32.xlu0 %v1051, 7
        %v1057 = vpop.permute.xlu0 %1056
        %v1060 = vadd.f32 %v928, %v1055
        %v1061 = vadd.f32 %v929, %v1057
        %v1062 = vsub.f32 %v1060, 500.0
        %v1063 = vsub.f32 %v1061, 500.0
        %v1064 = vmul.f32 %v1062, %v1062
        %v1065 = vmul.f32 %v1063, %v1063
        %v1066 = vadd.f32 %v1064, 100.0
        %v1067 = vadd.f32 %v1065, 100.0
        %v1068 = vrsqrt.pop %v1066
        %v1069 = vmul.f32 %v1066, %v1068
        %vm1070 = vcmp.eq.f32.partialorder %v1066, inf
        %v1071 = vsel %vm1070, %v1066, %v1069
        %vm1072 = vcmp.eq.f32.partialorder %v1066, 0.0
        %v1073 = vand.u32 %v1066, 2147483648
        %v1074 = vsel %vm1072, %v1073, %v1071
        %v1075 = vrsqrt.pop %v1067
        %v1076 = vmul.f32 %v1067, %v1075
        %vm1077 = vcmp.eq.f32.partialorder %v1067, inf
        %v1078 = vsel %vm1077, %v1067, %v1076
        %vm1079 = vcmp.eq.f32.partialorder %v1067, 0.0
        %v1080 = vand.u32 %v1067, 2147483648
        %v1081 = vsel %vm1079, %v1080, %v1078
        %v1082 = vmul.f32 %v1047, 10.0
        %v1083 = vmul.f32 %v1049, 10.0
        %v1084 = vmul.f32 %v245, 10000000.0
        %v1085 = vmul.f32 %v246, 10000000.0
        %v1086 = vmul.f32 %v1074, %v1074
        %v1087 = vmul.f32 %v1081, %v1081
        %1090 = vrot.lane.b32.xlu0 %v1086, 119
        %v1091 = vpop.permute.xlu0 %1090
        %1092 = vrot.lane.b32.xlu0 %v1087, 119
        %v1093 = vpop.permute.xlu0 %1092
        %v1096 = vrcp.pop %v1091
        %v1097 = vmul.f32 %v1084, %v1096
        %v1098 = vrcp.pop %v1093
        %v1099 = vmul.f32 %v1085, %v1098
        %v1100 = vadd.f32 %v1097, 1.0
        %v1101 = vadd.f32 %v1099, 1.0
        %v1102 = vlog2.pop %v1100
        %v1103 = vmul.f32 %v1102, 0.6931472
        %v1104 = vlog2.pop %v1101
        %v1105 = vmul.f32 %v1104, 0.6931472
        %v1106 = vmul.f32 %v1103, 1.442695
        %v1107 = vmul.f32 %v1105, 1.442695
        %1110 = vrot.lane.b32.xlu0 %v1106, 9
        %v1111 = vpop.permute.xlu0 %1110
        %1112 = vrot.lane.b32.xlu0 %v1107, 9
        %v1113 = vpop.permute.xlu0 %1112
        %v1116 = vmul.f32 %v1082, %v1111
        %v1117 = vmul.f32 %v1083, %v1113
        %v1118 = vmul.f32 %v1006, 0.03125
        %v1119 = vmul.f32 %v1007, 0.03125
        %v1120 = vrcp.pop %v1116
        %v1121 = vmul.f32 %v1118, %v1120
        %v1122 = vrcp.pop %v1117
        %v1123 = vmul.f32 %v1119, %v1122
        %v1124 = vadd.f32 %v1121, 0.05
        %v1125 = vadd.f32 %v1123, 0.05
        %v1126 = vsel %vm805, %v1124, -inf
        %v1127 = vrot.slane %v1126, 4
        %v1128 = vmax.f32 %v1126, %v1127
        %v1129 = vrot.slane %v1128, 2
        %v1130 = vmax.f32 %v1128, %v1129
        %v1131 = vrot.slane %v1130, 1
        %v1132 = vmax.f32 %v1130, %v1131
        %v1133 = vsel %vm805, %v1125, -inf
        %v1134 = vrot.slane %v1133, 4
        %v1135 = vmax.f32 %v1133, %v1134
        %v1136 = vrot.slane %v1135, 2
        %v1137 = vmax.f32 %v1135, %v1136
        %v1138 = vrot.slane %v1137, 1
        %v1139 = vmax.f32 %v1137, %v1138
        %1140 = vrot.lane.b32.xlu0 %v245, 7
        %v1141 = vpop.permute.xlu0 %1140
        %1142 = vrot.lane.b32.xlu0 %v246, 7
        %v1143 = vpop.permute.xlu0 %1142
        %v1146 = vmul.f32 %v1132, %v1141
        %v1147 = vmul.f32 %v1139, %v1143
        %v1148 = vadd.f32 %v1146, %v928
        %v1149 = vadd.f32 %v1147, %v929
        %1151 = vset.pattern.permute.xlu0 9
        %1152 = vperm.xlu0 %1151, %v1132
        %v1153 = vpop.permute.xlu0 %1152
        %1156 = vset.pattern.permute.xlu0 9
        %1157 = vperm.xlu0 %1156, %v1139
        %v1158 = vpop.permute.xlu0 %1157
        %v1160 = vmul.f32 %v1153, %v707
        %v1161 = vmul.f32 %v1158, %v707
        %v1162 = vadd.f32 %v674, %v1160
        %v1163 = vadd.f32 %v675, %v1161
        %1165 = vset.pattern.permute.xlu0 9
        %1166 = vperm.xlu0 %1165, %v1148
        %v1167 = vpop.permute.xlu0 %1166
        %1170 = vset.pattern.permute.xlu0 9
        %1171 = vperm.xlu0 %1170, %v1149
        %v1172 = vpop.permute.xlu0 %1171
        %v1174 = vmul.f32 %v1167, %v723
        %v1175 = vmul.f32 %v1172, %v723
        %v1176 = vadd.f32 %v1162, %v1174
        %v1177 = vadd.f32 %v1163, %v1175
        %1179 = vset.pattern.permute.xlu0 9
        %1180 = vperm.xlu0 %1179, %v1074
        %v1181 = vpop.permute.xlu0 %1180
        %1184 = vset.pattern.permute.xlu0 9
        %1185 = vperm.xlu0 %1184, %v1081
        %v1186 = vpop.permute.xlu0 %1185
        %v1188 = vmul.f32 %v1181, %v739
        %v1189 = vmul.f32 %v1186, %v739
        %v1190 = vadd.f32 %v1176, %v1188
        %v1191 = vadd.f32 %v1177, %v1189
        %v1192 = vsel %vm744, %v1190, -inf
        %1193 = vmax.xlane.f32.xlu0 %v1192
        %v1194 = vpop.xlane.xlu0 %1193
        %v1195 = vsel %vm744, %v1191, -inf
        %1196 = vmax.xlane.f32.xlu0 %v1195
        %v1197 = vpop.xlane.xlu0 %1196
        %v1198 = vsub.f32 %v1190, %v1194
        %v1199 = vsub.f32 %v1191, %v1197
        %v1200 = vmul.f32 %v1198, 1.442695
        %v1201 = vpow.pop %v1200
        %v1202 = vmul.f32 %v1199, 1.442695
        %v1203 = vpow.pop %v1202
        %v1204 = vsel %vm744, %v1201, 0.0
        %1205 = vadd.xlane.f32.xlu0 %v1204
        %v1206 = vpop.xlane.xlu0 %1205
        %v1207 = vsel %vm744, %v1203, 0.0
        %1208 = vadd.xlane.f32.xlu0 %v1207
        %v1209 = vpop.xlane.xlu0 %1208
        %v1210 = vlog2.pop %v1206
        %v1211 = vmul.f32 %v1210, 0.6931472
        %v1212 = vlog2.pop %v1209
        %v1213 = vmul.f32 %v1212, 0.6931472
        %v1214 = vsub.f32 0.0, %v1211
        %v1215 = vsub.f32 0.0, %v1213
        %vm1216 = vcmp.ge.f32.partialorder %v1190, %v1194
        %vm1217 = vcmp.ge.f32.partialorder %v1191, %v1197
        %v1218 = vsel %vm1216, %v691, 1e+09
        %v1219 = vsel %vm1217, %v691, 1e+09
        %v1220 = vsel %vm744, %v1218, inf
        %1221 = vmin.xlane.f32.xlu0 %v1220
        %v1222 = vpop.xlane.xlu0 %1221
        %v1223 = vsel %vm744, %v1219, inf
        %1224 = vmin.xlane.f32.xlu0 %v1223
        %v1225 = vpop.xlane.xlu0 %1224
        %v1226 = vadd.f32 %v1222, 8.0
        %v1227 = vadd.f32 %v1225, 8.0
        %1230 = vrot.lane.b32.xlu0 %v1190, 127
        %v1231 = vpop.permute.xlu0 %1230
        %1232 = vrot.lane.b32.xlu0 %v1191, 127
        %v1233 = vpop.permute.xlu0 %1232
        %v1236 = vsub.f32 %v1190, %v1231
        %v1237 = vsub.f32 %v1191, %v1233
        %v1238 = vmul.f32 %v1236, 1.442695
        %v1239 = vpow.pop %v1238
        %v1240 = vmul.f32 %v1237, 1.442695
        %v1241 = vpow.pop %v1240
        %v1242 = vadd.f32 %v1239, 1.0
        %v1243 = vadd.f32 %v1241, 1.0
        %v1244 = vrcp.pop %v1242
        %v1245 = vmul.f32 1.0, %v1244
        %v1246 = vrcp.pop %v1243
        %v1247 = vmul.f32 1.0, %v1246
        %v1248 = vmul.f32 %v1245, 1.442695
        %v1249 = vpow.pop %v1248
        %v1250 = vmul.f32 %v1247, 1.442695
        %v1251 = vpow.pop %v1250
        %v1252 = vsel %vm805, %v1249, 0.0
        %v1253 = vrot.slane %v1252, 4
        %v1254 = vadd.f32 %v1252, %v1253
        %v1255 = vrot.slane %v1254, 2
        %v1256 = vadd.f32 %v1254, %v1255
        %v1257 = vrot.slane %v1256, 1
        %v1258 = vadd.f32 %v1256, %v1257
        %v1259 = vsel %vm805, %v1251, 0.0
        %v1260 = vrot.slane %v1259, 4
        %v1261 = vadd.f32 %v1259, %v1260
        %v1262 = vrot.slane %v1261, 2
        %v1263 = vadd.f32 %v1261, %v1262
        %v1264 = vrot.slane %v1263, 1
        %v1265 = vadd.f32 %v1263, %v1264
        %v1266 = vrcp.pop %v1258
        %v1267 = vmul.f32 %v1249, %v1266
        %v1268 = vrcp.pop %v1265
        %v1269 = vmul.f32 %v1251, %v1268
        %v1270 = vmul.f32 %v247, 0.05
        %v1271 = vmul.f32 %v248, 0.05
        %1274 = vrot.lane.b32.xlu0 %v1270, 7
        %v1275 = vpop.permute.xlu0 %1274
        %1276 = vrot.lane.b32.xlu0 %v1271, 7
        %v1277 = vpop.permute.xlu0 %1276
        %v1280 = vadd.f32 %v1148, %v1275
        %v1281 = vadd.f32 %v1149, %v1277
        %v1282 = vsub.f32 %v1280, 500.0
        %v1283 = vsub.f32 %v1281, 500.0
        %v1284 = vmul.f32 %v1282, %v1282
        %v1285 = vmul.f32 %v1283, %v1283
        %v1286 = vadd.f32 %v1284, 100.0
        %v1287 = vadd.f32 %v1285, 100.0
        %v1288 = vrsqrt.pop %v1286
        %v1289 = vmul.f32 %v1286, %v1288
        %vm1290 = vcmp.eq.f32.partialorder %v1286, inf
        %v1291 = vsel %vm1290, %v1286, %v1289
        %vm1292 = vcmp.eq.f32.partialorder %v1286, 0.0
        %v1293 = vand.u32 %v1286, 2147483648
        %v1294 = vsel %vm1292, %v1293, %v1291
        %v1295 = vrsqrt.pop %v1287
        %v1296 = vmul.f32 %v1287, %v1295
        %vm1297 = vcmp.eq.f32.partialorder %v1287, inf
        %v1298 = vsel %vm1297, %v1287, %v1296
        %vm1299 = vcmp.eq.f32.partialorder %v1287, 0.0
        %v1300 = vand.u32 %v1287, 2147483648
        %v1301 = vsel %vm1299, %v1300, %v1298
        %v1302 = vmul.f32 %v1267, 10.0
        %v1303 = vmul.f32 %v1269, 10.0
        %v1304 = vmul.f32 %v247, 10000000.0
        %v1305 = vmul.f32 %v248, 10000000.0
        %v1306 = vmul.f32 %v1294, %v1294
        %v1307 = vmul.f32 %v1301, %v1301
        %1310 = vrot.lane.b32.xlu0 %v1306, 119
        %v1311 = vpop.permute.xlu0 %1310
        %1312 = vrot.lane.b32.xlu0 %v1307, 119
        %v1313 = vpop.permute.xlu0 %1312
        %v1316 = vrcp.pop %v1311
        %v1317 = vmul.f32 %v1304, %v1316
        %v1318 = vrcp.pop %v1313
        %v1319 = vmul.f32 %v1305, %v1318
        %v1320 = vadd.f32 %v1317, 1.0
        %v1321 = vadd.f32 %v1319, 1.0
        %v1322 = vlog2.pop %v1320
        %v1323 = vmul.f32 %v1322, 0.6931472
        %v1324 = vlog2.pop %v1321
        %v1325 = vmul.f32 %v1324, 0.6931472
        %v1326 = vmul.f32 %v1323, 1.442695
        %v1327 = vmul.f32 %v1325, 1.442695
        %1330 = vrot.lane.b32.xlu0 %v1326, 9
        %v1331 = vpop.permute.xlu0 %1330
        %1332 = vrot.lane.b32.xlu0 %v1327, 9
        %v1333 = vpop.permute.xlu0 %1332
        %v1336 = vmul.f32 %v1302, %v1331
        %v1337 = vmul.f32 %v1303, %v1333
        %v1338 = vmul.f32 %v1226, 0.03125
        %v1339 = vmul.f32 %v1227, 0.03125
        %v1340 = vrcp.pop %v1336
        %v1341 = vmul.f32 %v1338, %v1340
        %v1342 = vrcp.pop %v1337
        %v1343 = vmul.f32 %v1339, %v1342
        %v1344 = vadd.f32 %v1341, 0.05
        %v1345 = vadd.f32 %v1343, 0.05
        %v1346 = vsel %vm805, %v1344, -inf
        %v1347 = vrot.slane %v1346, 4
        %v1348 = vmax.f32 %v1346, %v1347
        %v1349 = vrot.slane %v1348, 2
        %v1350 = vmax.f32 %v1348, %v1349
        %v1351 = vrot.slane %v1350, 1
        %v1352 = vmax.f32 %v1350, %v1351
        %v1353 = vsel %vm805, %v1345, -inf
        %v1354 = vrot.slane %v1353, 4
        %v1355 = vmax.f32 %v1353, %v1354
        %v1356 = vrot.slane %v1355, 2
        %v1357 = vmax.f32 %v1355, %v1356
        %v1358 = vrot.slane %v1357, 1
        %v1359 = vmax.f32 %v1357, %v1358
        %1360 = vrot.lane.b32.xlu0 %v247, 7
        %v1361 = vpop.permute.xlu0 %1360
        %1362 = vrot.lane.b32.xlu0 %v248, 7
        %v1363 = vpop.permute.xlu0 %1362
        %v1366 = vmul.f32 %v1352, %v1361
        %v1367 = vmul.f32 %v1359, %v1363
        %v1368 = vadd.f32 %v1366, %v1148
        %v1369 = vadd.f32 %v1367, %v1149
        %1371 = vset.pattern.permute.xlu0 9
        %1372 = vperm.xlu0 %1371, %v1352
        %v1373 = vpop.permute.xlu0 %1372
        %1376 = vset.pattern.permute.xlu0 9
        %1377 = vperm.xlu0 %1376, %v1359
        %v1378 = vpop.permute.xlu0 %1377
        %v1380 = vmul.f32 %v1373, %v707
        %v1381 = vmul.f32 %v1378, %v707
        %v1382 = vadd.f32 %v676, %v1380
        %v1383 = vadd.f32 %v677, %v1381
        %1385 = vset.pattern.permute.xlu0 9
        %1386 = vperm.xlu0 %1385, %v1368
        %v1387 = vpop.permute.xlu0 %1386
        %1390 = vset.pattern.permute.xlu0 9
        %1391 = vperm.xlu0 %1390, %v1369
        %v1392 = vpop.permute.xlu0 %1391
        %v1394 = vmul.f32 %v1387, %v723
        %v1395 = vmul.f32 %v1392, %v723
        %v1396 = vadd.f32 %v1382, %v1394
        %v1397 = vadd.f32 %v1383, %v1395
        %1399 = vset.pattern.permute.xlu0 9
        %1400 = vperm.xlu0 %1399, %v1294
        %v1401 = vpop.permute.xlu0 %1400
        %1404 = vset.pattern.permute.xlu0 9
        %1405 = vperm.xlu0 %1404, %v1301
        %v1406 = vpop.permute.xlu0 %1405
        %v1408 = vmul.f32 %v1401, %v739
        %v1409 = vmul.f32 %v1406, %v739
        %v1410 = vadd.f32 %v1396, %v1408
        %v1411 = vadd.f32 %v1397, %v1409
        %v1412 = vsel %vm744, %v1410, -inf
        %1413 = vmax.xlane.f32.xlu0 %v1412
        %v1414 = vpop.xlane.xlu0 %1413
        %v1415 = vsel %vm744, %v1411, -inf
        %1416 = vmax.xlane.f32.xlu0 %v1415
        %v1417 = vpop.xlane.xlu0 %1416
        %v1418 = vsub.f32 %v1410, %v1414
        %v1419 = vsub.f32 %v1411, %v1417
        %v1420 = vmul.f32 %v1418, 1.442695
        %v1421 = vpow.pop %v1420
        %v1422 = vmul.f32 %v1419, 1.442695
        %v1423 = vpow.pop %v1422
        %v1424 = vsel %vm744, %v1421, 0.0
        %1425 = vadd.xlane.f32.xlu0 %v1424
        %v1426 = vpop.xlane.xlu0 %1425
        %v1427 = vsel %vm744, %v1423, 0.0
        %1428 = vadd.xlane.f32.xlu0 %v1427
        %v1429 = vpop.xlane.xlu0 %1428
        %v1430 = vlog2.pop %v1426
        %v1431 = vmul.f32 %v1430, 0.6931472
        %v1432 = vlog2.pop %v1429
        %v1433 = vmul.f32 %v1432, 0.6931472
        %v1434 = vsub.f32 0.0, %v1431
        %v1435 = vsub.f32 0.0, %v1433
        %vm1436 = vcmp.ge.f32.partialorder %v1410, %v1414
        %vm1437 = vcmp.ge.f32.partialorder %v1411, %v1417
        %v1438 = vsel %vm1436, %v691, 1e+09
        %v1439 = vsel %vm1437, %v691, 1e+09
        %v1440 = vsel %vm744, %v1438, inf
        %1441 = vmin.xlane.f32.xlu0 %v1440
        %v1442 = vpop.xlane.xlu0 %1441
        %v1443 = vsel %vm744, %v1439, inf
        %1444 = vmin.xlane.f32.xlu0 %v1443
        %v1445 = vpop.xlane.xlu0 %1444
        %v1446 = vadd.f32 %v1442, 8.0
        %v1447 = vadd.f32 %v1445, 8.0
        %1450 = vrot.lane.b32.xlu0 %v1410, 127
        %v1451 = vpop.permute.xlu0 %1450
        %1452 = vrot.lane.b32.xlu0 %v1411, 127
        %v1453 = vpop.permute.xlu0 %1452
        %v1456 = vsub.f32 %v1410, %v1451
        %v1457 = vsub.f32 %v1411, %v1453
        %v1458 = vmul.f32 %v1456, 1.442695
        %v1459 = vpow.pop %v1458
        %v1460 = vmul.f32 %v1457, 1.442695
        %v1461 = vpow.pop %v1460
        %v1462 = vadd.f32 %v1459, 1.0
        %v1463 = vadd.f32 %v1461, 1.0
        %v1464 = vrcp.pop %v1462
        %v1465 = vmul.f32 1.0, %v1464
        %v1466 = vrcp.pop %v1463
        %v1467 = vmul.f32 1.0, %v1466
        %v1468 = vmul.f32 %v1465, 1.442695
        %v1469 = vpow.pop %v1468
        %v1470 = vmul.f32 %v1467, 1.442695
        %v1471 = vpow.pop %v1470
        %v1472 = vsel %vm805, %v1469, 0.0
        %v1473 = vrot.slane %v1472, 4
        %v1474 = vadd.f32 %v1472, %v1473
        %v1475 = vrot.slane %v1474, 2
        %v1476 = vadd.f32 %v1474, %v1475
        %v1477 = vrot.slane %v1476, 1
        %v1478 = vadd.f32 %v1476, %v1477
        %v1479 = vsel %vm805, %v1471, 0.0
        %v1480 = vrot.slane %v1479, 4
        %v1481 = vadd.f32 %v1479, %v1480
        %v1482 = vrot.slane %v1481, 2
        %v1483 = vadd.f32 %v1481, %v1482
        %v1484 = vrot.slane %v1483, 1
        %v1485 = vadd.f32 %v1483, %v1484
        %v1486 = vrcp.pop %v1478
        %v1487 = vmul.f32 %v1469, %v1486
        %v1488 = vrcp.pop %v1485
        %v1489 = vmul.f32 %v1471, %v1488
        %v1490 = vmul.f32 %v249, 0.05
        %v1491 = vmul.f32 %v250, 0.05
        %1494 = vrot.lane.b32.xlu0 %v1490, 7
        %v1495 = vpop.permute.xlu0 %1494
        %1496 = vrot.lane.b32.xlu0 %v1491, 7
        %v1497 = vpop.permute.xlu0 %1496
        %v1500 = vadd.f32 %v1368, %v1495
        %v1501 = vadd.f32 %v1369, %v1497
        %v1502 = vsub.f32 %v1500, 500.0
        %v1503 = vsub.f32 %v1501, 500.0
        %v1504 = vmul.f32 %v1502, %v1502
        %v1505 = vmul.f32 %v1503, %v1503
        %v1506 = vadd.f32 %v1504, 100.0
        %v1507 = vadd.f32 %v1505, 100.0
        %v1508 = vrsqrt.pop %v1506
        %v1509 = vmul.f32 %v1506, %v1508
        %vm1510 = vcmp.eq.f32.partialorder %v1506, inf
        %v1511 = vsel %vm1510, %v1506, %v1509
        %vm1512 = vcmp.eq.f32.partialorder %v1506, 0.0
        %v1513 = vand.u32 %v1506, 2147483648
        %v1514 = vsel %vm1512, %v1513, %v1511
        %v1515 = vrsqrt.pop %v1507
        %v1516 = vmul.f32 %v1507, %v1515
        %vm1517 = vcmp.eq.f32.partialorder %v1507, inf
        %v1518 = vsel %vm1517, %v1507, %v1516
        %vm1519 = vcmp.eq.f32.partialorder %v1507, 0.0
        %v1520 = vand.u32 %v1507, 2147483648
        %v1521 = vsel %vm1519, %v1520, %v1518
        %v1522 = vmul.f32 %v1487, 10.0
        %v1523 = vmul.f32 %v1489, 10.0
        %v1524 = vmul.f32 %v249, 10000000.0
        %v1525 = vmul.f32 %v250, 10000000.0
        %v1526 = vmul.f32 %v1514, %v1514
        %v1527 = vmul.f32 %v1521, %v1521
        %1530 = vrot.lane.b32.xlu0 %v1526, 119
        %v1531 = vpop.permute.xlu0 %1530
        %1532 = vrot.lane.b32.xlu0 %v1527, 119
        %v1533 = vpop.permute.xlu0 %1532
        %v1536 = vrcp.pop %v1531
        %v1537 = vmul.f32 %v1524, %v1536
        %v1538 = vrcp.pop %v1533
        %v1539 = vmul.f32 %v1525, %v1538
        %v1540 = vadd.f32 %v1537, 1.0
        %v1541 = vadd.f32 %v1539, 1.0
        %v1542 = vlog2.pop %v1540
        %v1543 = vmul.f32 %v1542, 0.6931472
        %v1544 = vlog2.pop %v1541
        %v1545 = vmul.f32 %v1544, 0.6931472
        %v1546 = vmul.f32 %v1543, 1.442695
        %v1547 = vmul.f32 %v1545, 1.442695
        %1550 = vrot.lane.b32.xlu0 %v1546, 9
        %v1551 = vpop.permute.xlu0 %1550
        %1552 = vrot.lane.b32.xlu0 %v1547, 9
        %v1553 = vpop.permute.xlu0 %1552
        %v1556 = vmul.f32 %v1522, %v1551
        %v1557 = vmul.f32 %v1523, %v1553
        %v1558 = vmul.f32 %v1446, 0.03125
        %v1559 = vmul.f32 %v1447, 0.03125
        %v1560 = vrcp.pop %v1556
        %v1561 = vmul.f32 %v1558, %v1560
        %v1562 = vrcp.pop %v1557
        %v1563 = vmul.f32 %v1559, %v1562
        %v1564 = vadd.f32 %v1561, 0.05
        %v1565 = vadd.f32 %v1563, 0.05
        %v1566 = vsel %vm805, %v1564, -inf
        %v1567 = vrot.slane %v1566, 4
        %v1568 = vmax.f32 %v1566, %v1567
        %v1569 = vrot.slane %v1568, 2
        %v1570 = vmax.f32 %v1568, %v1569
        %v1571 = vrot.slane %v1570, 1
        %v1572 = vmax.f32 %v1570, %v1571
        %v1573 = vsel %vm805, %v1565, -inf
        %v1574 = vrot.slane %v1573, 4
        %v1575 = vmax.f32 %v1573, %v1574
        %v1576 = vrot.slane %v1575, 2
        %v1577 = vmax.f32 %v1575, %v1576
        %v1578 = vrot.slane %v1577, 1
        %v1579 = vmax.f32 %v1577, %v1578
        %1580 = vrot.lane.b32.xlu0 %v249, 7
        %v1581 = vpop.permute.xlu0 %1580
        %1582 = vrot.lane.b32.xlu0 %v250, 7
        %v1583 = vpop.permute.xlu0 %1582
        %v1586 = vmul.f32 %v1572, %v1581
        %v1587 = vmul.f32 %v1579, %v1583
        %v1588 = vadd.f32 %v1586, %v1368
        %v1589 = vadd.f32 %v1587, %v1369
        %1591 = vset.pattern.permute.xlu0 9
        %1592 = vperm.xlu0 %1591, %v1572
        %v1593 = vpop.permute.xlu0 %1592
        %1596 = vset.pattern.permute.xlu0 9
        %1597 = vperm.xlu0 %1596, %v1579
        %v1598 = vpop.permute.xlu0 %1597
        %v1600 = vmul.f32 %v1593, %v707
        %v1601 = vmul.f32 %v1598, %v707
        %v1602 = vadd.f32 %v678, %v1600
        %v1603 = vadd.f32 %v679, %v1601
        %1605 = vset.pattern.permute.xlu0 9
        %1606 = vperm.xlu0 %1605, %v1588
        %v1607 = vpop.permute.xlu0 %1606
        %1610 = vset.pattern.permute.xlu0 9
        %1611 = vperm.xlu0 %1610, %v1589
        %v1612 = vpop.permute.xlu0 %1611
        %v1614 = vmul.f32 %v1607, %v723
        %v1615 = vmul.f32 %v1612, %v723
        %v1616 = vadd.f32 %v1602, %v1614
        %v1617 = vadd.f32 %v1603, %v1615
        %1619 = vset.pattern.permute.xlu0 9
        %1620 = vperm.xlu0 %1619, %v1514
        %v1621 = vpop.permute.xlu0 %1620
        %1624 = vset.pattern.permute.xlu0 9
        %1625 = vperm.xlu0 %1624, %v1521
        %v1626 = vpop.permute.xlu0 %1625
        %v1628 = vmul.f32 %v1621, %v739
        %v1629 = vmul.f32 %v1626, %v739
        %v1630 = vadd.f32 %v1616, %v1628
        %v1631 = vadd.f32 %v1617, %v1629
        %v1632 = vsel %vm744, %v1630, -inf
        %1633 = vmax.xlane.f32.xlu0 %v1632
        %v1634 = vpop.xlane.xlu0 %1633
        %v1635 = vsel %vm744, %v1631, -inf
        %1636 = vmax.xlane.f32.xlu0 %v1635
        %v1637 = vpop.xlane.xlu0 %1636
        %v1638 = vsub.f32 %v1630, %v1634
        %v1639 = vsub.f32 %v1631, %v1637
        %v1640 = vmul.f32 %v1638, 1.442695
        %v1641 = vpow.pop %v1640
        %v1642 = vmul.f32 %v1639, 1.442695
        %v1643 = vpow.pop %v1642
        %v1644 = vsel %vm744, %v1641, 0.0
        %1645 = vadd.xlane.f32.xlu0 %v1644
        %v1646 = vpop.xlane.xlu0 %1645
        %v1647 = vsel %vm744, %v1643, 0.0
        %1648 = vadd.xlane.f32.xlu0 %v1647
        %v1649 = vpop.xlane.xlu0 %1648
        %v1650 = vlog2.pop %v1646
        %v1651 = vmul.f32 %v1650, 0.6931472
        %v1652 = vlog2.pop %v1649
        %v1653 = vmul.f32 %v1652, 0.6931472
        %v1654 = vsub.f32 0.0, %v1651
        %v1655 = vsub.f32 0.0, %v1653
        %vm1656 = vcmp.ge.f32.partialorder %v1630, %v1634
        %vm1657 = vcmp.ge.f32.partialorder %v1631, %v1637
        %v1658 = vsel %vm1656, %v691, 1e+09
        %v1659 = vsel %vm1657, %v691, 1e+09
        %v1660 = vsel %vm744, %v1658, inf
        %1661 = vmin.xlane.f32.xlu0 %v1660
        %v1662 = vpop.xlane.xlu0 %1661
        %v1663 = vsel %vm744, %v1659, inf
        %1664 = vmin.xlane.f32.xlu0 %v1663
        %v1665 = vpop.xlane.xlu0 %1664
        %v1666 = vadd.f32 %v1662, 8.0
        %v1667 = vadd.f32 %v1665, 8.0
        %1670 = vrot.lane.b32.xlu0 %v1630, 127
        %v1671 = vpop.permute.xlu0 %1670
        %1672 = vrot.lane.b32.xlu0 %v1631, 127
        %v1673 = vpop.permute.xlu0 %1672
        %v1676 = vsub.f32 %v1630, %v1671
        %v1677 = vsub.f32 %v1631, %v1673
        %v1678 = vmul.f32 %v1676, 1.442695
        %v1679 = vpow.pop %v1678
        %v1680 = vmul.f32 %v1677, 1.442695
        %v1681 = vpow.pop %v1680
        %v1682 = vadd.f32 %v1679, 1.0
        %v1683 = vadd.f32 %v1681, 1.0
        %v1684 = vrcp.pop %v1682
        %v1685 = vmul.f32 1.0, %v1684
        %v1686 = vrcp.pop %v1683
        %v1687 = vmul.f32 1.0, %v1686
        %v1688 = vmul.f32 %v1685, 1.442695
        %v1689 = vpow.pop %v1688
        %v1690 = vmul.f32 %v1687, 1.442695
        %v1691 = vpow.pop %v1690
        %v1692 = vsel %vm805, %v1689, 0.0
        %v1693 = vrot.slane %v1692, 4
        %v1694 = vadd.f32 %v1692, %v1693
        %v1695 = vrot.slane %v1694, 2
        %v1696 = vadd.f32 %v1694, %v1695
        %v1697 = vrot.slane %v1696, 1
        %v1698 = vadd.f32 %v1696, %v1697
        %v1699 = vsel %vm805, %v1691, 0.0
        %v1700 = vrot.slane %v1699, 4
        %v1701 = vadd.f32 %v1699, %v1700
        %v1702 = vrot.slane %v1701, 2
        %v1703 = vadd.f32 %v1701, %v1702
        %v1704 = vrot.slane %v1703, 1
        %v1705 = vadd.f32 %v1703, %v1704
        %v1706 = vrcp.pop %v1698
        %v1707 = vmul.f32 %v1689, %v1706
        %v1708 = vrcp.pop %v1705
        %v1709 = vmul.f32 %v1691, %v1708
        %v1710 = vmul.f32 %v251, 0.05
        %v1711 = vmul.f32 %v252, 0.05
        %1714 = vrot.lane.b32.xlu0 %v1710, 7
        %v1715 = vpop.permute.xlu0 %1714
        %1716 = vrot.lane.b32.xlu0 %v1711, 7
        %v1717 = vpop.permute.xlu0 %1716
        %v1720 = vadd.f32 %v1588, %v1715
        %v1721 = vadd.f32 %v1589, %v1717
        %v1722 = vsub.f32 %v1720, 500.0
        %v1723 = vsub.f32 %v1721, 500.0
        %v1724 = vmul.f32 %v1722, %v1722
        %v1725 = vmul.f32 %v1723, %v1723
        %v1726 = vadd.f32 %v1724, 100.0
        %v1727 = vadd.f32 %v1725, 100.0
        %v1728 = vrsqrt.pop %v1726
        %v1729 = vmul.f32 %v1726, %v1728
        %vm1730 = vcmp.eq.f32.partialorder %v1726, inf
        %v1731 = vsel %vm1730, %v1726, %v1729
        %vm1732 = vcmp.eq.f32.partialorder %v1726, 0.0
        %v1733 = vand.u32 %v1726, 2147483648
        %v1734 = vsel %vm1732, %v1733, %v1731
        %v1735 = vrsqrt.pop %v1727
        %v1736 = vmul.f32 %v1727, %v1735
        %vm1737 = vcmp.eq.f32.partialorder %v1727, inf
        %v1738 = vsel %vm1737, %v1727, %v1736
        %vm1739 = vcmp.eq.f32.partialorder %v1727, 0.0
        %v1740 = vand.u32 %v1727, 2147483648
        %v1741 = vsel %vm1739, %v1740, %v1738
        %v1742 = vmul.f32 %v1707, 10.0
        %v1743 = vmul.f32 %v1709, 10.0
        %v1744 = vmul.f32 %v251, 10000000.0
        %v1745 = vmul.f32 %v252, 10000000.0
        %v1746 = vmul.f32 %v1734, %v1734
        %v1747 = vmul.f32 %v1741, %v1741
        %1750 = vrot.lane.b32.xlu0 %v1746, 119
        %v1751 = vpop.permute.xlu0 %1750
        %1752 = vrot.lane.b32.xlu0 %v1747, 119
        %v1753 = vpop.permute.xlu0 %1752
        %v1756 = vrcp.pop %v1751
        %v1757 = vmul.f32 %v1744, %v1756
        %v1758 = vrcp.pop %v1753
        %v1759 = vmul.f32 %v1745, %v1758
        %v1760 = vadd.f32 %v1757, 1.0
        %v1761 = vadd.f32 %v1759, 1.0
        %v1762 = vlog2.pop %v1760
        %v1763 = vmul.f32 %v1762, 0.6931472
        %v1764 = vlog2.pop %v1761
        %v1765 = vmul.f32 %v1764, 0.6931472
        %v1766 = vmul.f32 %v1763, 1.442695
        %v1767 = vmul.f32 %v1765, 1.442695
        %1770 = vrot.lane.b32.xlu0 %v1766, 9
        %v1771 = vpop.permute.xlu0 %1770
        %1772 = vrot.lane.b32.xlu0 %v1767, 9
        %v1773 = vpop.permute.xlu0 %1772
        %v1776 = vmul.f32 %v1742, %v1771
        %v1777 = vmul.f32 %v1743, %v1773
        %v1778 = vmul.f32 %v1666, 0.03125
        %v1779 = vmul.f32 %v1667, 0.03125
        %v1780 = vrcp.pop %v1776
        %v1781 = vmul.f32 %v1778, %v1780
        %v1782 = vrcp.pop %v1777
        %v1783 = vmul.f32 %v1779, %v1782
        %v1784 = vadd.f32 %v1781, 0.05
        %v1785 = vadd.f32 %v1783, 0.05
        %v1786 = vsel %vm805, %v1784, -inf
        %v1787 = vrot.slane %v1786, 4
        %v1788 = vmax.f32 %v1786, %v1787
        %v1789 = vrot.slane %v1788, 2
        %v1790 = vmax.f32 %v1788, %v1789
        %v1791 = vrot.slane %v1790, 1
        %v1792 = vmax.f32 %v1790, %v1791
        %v1793 = vsel %vm805, %v1785, -inf
        %v1794 = vrot.slane %v1793, 4
        %v1795 = vmax.f32 %v1793, %v1794
        %v1796 = vrot.slane %v1795, 2
        %v1797 = vmax.f32 %v1795, %v1796
        %v1798 = vrot.slane %v1797, 1
        %v1799 = vmax.f32 %v1797, %v1798
        %1800 = vrot.lane.b32.xlu0 %v251, 7
        %v1801 = vpop.permute.xlu0 %1800
        %1802 = vrot.lane.b32.xlu0 %v252, 7
        %v1803 = vpop.permute.xlu0 %1802
        %v1806 = vmul.f32 %v1792, %v1801
        %v1807 = vmul.f32 %v1799, %v1803
        %v1808 = vadd.f32 %v1806, %v1588
        %v1809 = vadd.f32 %v1807, %v1589
        %1811 = vset.pattern.permute.xlu0 9
        %1812 = vperm.xlu0 %1811, %v1792
        %v1813 = vpop.permute.xlu0 %1812
        %1816 = vset.pattern.permute.xlu0 9
        %1817 = vperm.xlu0 %1816, %v1799
        %v1818 = vpop.permute.xlu0 %1817
        %v1820 = vmul.f32 %v1813, %v707
        %v1821 = vmul.f32 %v1818, %v707
        %v1822 = vadd.f32 %v680, %v1820
        %v1823 = vadd.f32 %v681, %v1821
        %1825 = vset.pattern.permute.xlu0 9
        %1826 = vperm.xlu0 %1825, %v1808
        %v1827 = vpop.permute.xlu0 %1826
        %1830 = vset.pattern.permute.xlu0 9
        %1831 = vperm.xlu0 %1830, %v1809
        %v1832 = vpop.permute.xlu0 %1831
        %v1834 = vmul.f32 %v1827, %v723
        %v1835 = vmul.f32 %v1832, %v723
        %v1836 = vadd.f32 %v1822, %v1834
        %v1837 = vadd.f32 %v1823, %v1835
        %1839 = vset.pattern.permute.xlu0 9
        %1840 = vperm.xlu0 %1839, %v1734
        %v1841 = vpop.permute.xlu0 %1840
        %1844 = vset.pattern.permute.xlu0 9
        %1845 = vperm.xlu0 %1844, %v1741
        %v1846 = vpop.permute.xlu0 %1845
        %v1848 = vmul.f32 %v1841, %v739
        %v1849 = vmul.f32 %v1846, %v739
        %v1850 = vadd.f32 %v1836, %v1848
        %v1851 = vadd.f32 %v1837, %v1849
        %v1852 = vsel %vm744, %v1850, -inf
        %1853 = vmax.xlane.f32.xlu0 %v1852
        %v1854 = vpop.xlane.xlu0 %1853
        %v1855 = vsel %vm744, %v1851, -inf
        %1856 = vmax.xlane.f32.xlu0 %v1855
        %v1857 = vpop.xlane.xlu0 %1856
        %v1858 = vsub.f32 %v1850, %v1854
        %v1859 = vsub.f32 %v1851, %v1857
        %v1860 = vmul.f32 %v1858, 1.442695
        %v1861 = vpow.pop %v1860
        %v1862 = vmul.f32 %v1859, 1.442695
        %v1863 = vpow.pop %v1862
        %v1864 = vsel %vm744, %v1861, 0.0
        %1865 = vadd.xlane.f32.xlu0 %v1864
        %v1866 = vpop.xlane.xlu0 %1865
        %v1867 = vsel %vm744, %v1863, 0.0
        %1868 = vadd.xlane.f32.xlu0 %v1867
        %v1869 = vpop.xlane.xlu0 %1868
        %v1870 = vlog2.pop %v1866
        %v1871 = vmul.f32 %v1870, 0.6931472
        %v1872 = vlog2.pop %v1869
        %v1873 = vmul.f32 %v1872, 0.6931472
        %v1874 = vsub.f32 0.0, %v1871
        %v1875 = vsub.f32 0.0, %v1873
        %vm1876 = vcmp.ge.f32.partialorder %v1850, %v1854
        %vm1877 = vcmp.ge.f32.partialorder %v1851, %v1857
        %v1878 = vsel %vm1876, %v691, 1e+09
        %v1879 = vsel %vm1877, %v691, 1e+09
        %v1880 = vsel %vm744, %v1878, inf
        %1881 = vmin.xlane.f32.xlu0 %v1880
        %v1882 = vpop.xlane.xlu0 %1881
        %v1883 = vsel %vm744, %v1879, inf
        %1884 = vmin.xlane.f32.xlu0 %v1883
        %v1885 = vpop.xlane.xlu0 %1884
        %v1886 = vadd.f32 %v1882, 8.0
        %v1887 = vadd.f32 %v1885, 8.0
        %1890 = vrot.lane.b32.xlu0 %v1850, 127
        %v1891 = vpop.permute.xlu0 %1890
        %1892 = vrot.lane.b32.xlu0 %v1851, 127
        %v1893 = vpop.permute.xlu0 %1892
        %v1896 = vsub.f32 %v1850, %v1891
        %v1897 = vsub.f32 %v1851, %v1893
        %v1898 = vmul.f32 %v1896, 1.442695
        %v1899 = vpow.pop %v1898
        %v1900 = vmul.f32 %v1897, 1.442695
        %v1901 = vpow.pop %v1900
        %v1902 = vadd.f32 %v1899, 1.0
        %v1903 = vadd.f32 %v1901, 1.0
        %v1904 = vrcp.pop %v1902
        %v1905 = vmul.f32 1.0, %v1904
        %v1906 = vrcp.pop %v1903
        %v1907 = vmul.f32 1.0, %v1906
        %v1908 = vmul.f32 %v1905, 1.442695
        %v1909 = vpow.pop %v1908
        %v1910 = vmul.f32 %v1907, 1.442695
        %v1911 = vpow.pop %v1910
        %v1912 = vsel %vm805, %v1909, 0.0
        %v1913 = vrot.slane %v1912, 4
        %v1914 = vadd.f32 %v1912, %v1913
        %v1915 = vrot.slane %v1914, 2
        %v1916 = vadd.f32 %v1914, %v1915
        %v1917 = vrot.slane %v1916, 1
        %v1918 = vadd.f32 %v1916, %v1917
        %v1919 = vsel %vm805, %v1911, 0.0
        %v1920 = vrot.slane %v1919, 4
        %v1921 = vadd.f32 %v1919, %v1920
        %v1922 = vrot.slane %v1921, 2
        %v1923 = vadd.f32 %v1921, %v1922
        %v1924 = vrot.slane %v1923, 1
        %v1925 = vadd.f32 %v1923, %v1924
        %v1926 = vrcp.pop %v1918
        %v1927 = vmul.f32 %v1909, %v1926
        %v1928 = vrcp.pop %v1925
        %v1929 = vmul.f32 %v1911, %v1928
        %v1930 = vmul.f32 %v253, 0.05
        %v1931 = vmul.f32 %v254, 0.05
        %1934 = vrot.lane.b32.xlu0 %v1930, 7
        %v1935 = vpop.permute.xlu0 %1934
        %1936 = vrot.lane.b32.xlu0 %v1931, 7
        %v1937 = vpop.permute.xlu0 %1936
        %v1940 = vadd.f32 %v1808, %v1935
        %v1941 = vadd.f32 %v1809, %v1937
        %v1942 = vsub.f32 %v1940, 500.0
        %v1943 = vsub.f32 %v1941, 500.0
        %v1944 = vmul.f32 %v1942, %v1942
        %v1945 = vmul.f32 %v1943, %v1943
        %v1946 = vadd.f32 %v1944, 100.0
        %v1947 = vadd.f32 %v1945, 100.0
        %v1948 = vrsqrt.pop %v1946
        %v1949 = vmul.f32 %v1946, %v1948
        %vm1950 = vcmp.eq.f32.partialorder %v1946, inf
        %v1951 = vsel %vm1950, %v1946, %v1949
        %vm1952 = vcmp.eq.f32.partialorder %v1946, 0.0
        %v1953 = vand.u32 %v1946, 2147483648
        %v1954 = vsel %vm1952, %v1953, %v1951
        %v1955 = vrsqrt.pop %v1947
        %v1956 = vmul.f32 %v1947, %v1955
        %vm1957 = vcmp.eq.f32.partialorder %v1947, inf
        %v1958 = vsel %vm1957, %v1947, %v1956
        %vm1959 = vcmp.eq.f32.partialorder %v1947, 0.0
        %v1960 = vand.u32 %v1947, 2147483648
        %v1961 = vsel %vm1959, %v1960, %v1958
        %v1962 = vmul.f32 %v1927, 10.0
        %v1963 = vmul.f32 %v1929, 10.0
        %v1964 = vmul.f32 %v253, 10000000.0
        %v1965 = vmul.f32 %v254, 10000000.0
        %v1966 = vmul.f32 %v1954, %v1954
        %v1967 = vmul.f32 %v1961, %v1961
        %1970 = vrot.lane.b32.xlu0 %v1966, 119
        %v1971 = vpop.permute.xlu0 %1970
        %1972 = vrot.lane.b32.xlu0 %v1967, 119
        %v1973 = vpop.permute.xlu0 %1972
        %v1976 = vrcp.pop %v1971
        %v1977 = vmul.f32 %v1964, %v1976
        %v1978 = vrcp.pop %v1973
        %v1979 = vmul.f32 %v1965, %v1978
        %v1980 = vadd.f32 %v1977, 1.0
        %v1981 = vadd.f32 %v1979, 1.0
        %v1982 = vlog2.pop %v1980
        %v1983 = vmul.f32 %v1982, 0.6931472
        %v1984 = vlog2.pop %v1981
        %v1985 = vmul.f32 %v1984, 0.6931472
        %v1986 = vmul.f32 %v1983, 1.442695
        %v1987 = vmul.f32 %v1985, 1.442695
        %1990 = vrot.lane.b32.xlu0 %v1986, 9
        %v1991 = vpop.permute.xlu0 %1990
        %1992 = vrot.lane.b32.xlu0 %v1987, 9
        %v1993 = vpop.permute.xlu0 %1992
        %v1996 = vmul.f32 %v1962, %v1991
        %v1997 = vmul.f32 %v1963, %v1993
        %v1998 = vmul.f32 %v1886, 0.03125
        %v1999 = vmul.f32 %v1887, 0.03125
        %v2000 = vrcp.pop %v1996
        %v2001 = vmul.f32 %v1998, %v2000
        %v2002 = vrcp.pop %v1997
        %v2003 = vmul.f32 %v1999, %v2002
        %v2004 = vadd.f32 %v2001, 0.05
        %v2005 = vadd.f32 %v2003, 0.05
        %v2006 = vsel %vm805, %v2004, -inf
        %v2007 = vrot.slane %v2006, 4
        %v2008 = vmax.f32 %v2006, %v2007
        %v2009 = vrot.slane %v2008, 2
        %v2010 = vmax.f32 %v2008, %v2009
        %v2011 = vrot.slane %v2010, 1
        %v2012 = vmax.f32 %v2010, %v2011
        %v2013 = vsel %vm805, %v2005, -inf
        %v2014 = vrot.slane %v2013, 4
        %v2015 = vmax.f32 %v2013, %v2014
        %v2016 = vrot.slane %v2015, 2
        %v2017 = vmax.f32 %v2015, %v2016
        %v2018 = vrot.slane %v2017, 1
        %v2019 = vmax.f32 %v2017, %v2018
        %2020 = vrot.lane.b32.xlu0 %v253, 7
        %v2021 = vpop.permute.xlu0 %2020
        %2022 = vrot.lane.b32.xlu0 %v254, 7
        %v2023 = vpop.permute.xlu0 %2022
        %v2026 = vmul.f32 %v2012, %v2021
        %v2027 = vmul.f32 %v2019, %v2023
        %v2028 = vadd.f32 %v2026, %v1808
        %v2029 = vadd.f32 %v2027, %v1809
        %2031 = vset.pattern.permute.xlu0 9
        %2032 = vperm.xlu0 %2031, %v2012
        %v2033 = vpop.permute.xlu0 %2032
        %2036 = vset.pattern.permute.xlu0 9
        %2037 = vperm.xlu0 %2036, %v2019
        %v2038 = vpop.permute.xlu0 %2037
        %v2040 = vmul.f32 %v2033, %v707
        %v2041 = vmul.f32 %v2038, %v707
        %v2042 = vadd.f32 %v682, %v2040
        %v2043 = vadd.f32 %v683, %v2041
        %2045 = vset.pattern.permute.xlu0 9
        %2046 = vperm.xlu0 %2045, %v2028
        %v2047 = vpop.permute.xlu0 %2046
        %2050 = vset.pattern.permute.xlu0 9
        %2051 = vperm.xlu0 %2050, %v2029
        %v2052 = vpop.permute.xlu0 %2051
        %v2054 = vmul.f32 %v2047, %v723
        %v2055 = vmul.f32 %v2052, %v723
        %v2056 = vadd.f32 %v2042, %v2054
        %v2057 = vadd.f32 %v2043, %v2055
        %2059 = vset.pattern.permute.xlu0 9
        %2060 = vperm.xlu0 %2059, %v1954
        %v2061 = vpop.permute.xlu0 %2060
        %2064 = vset.pattern.permute.xlu0 9
        %2065 = vperm.xlu0 %2064, %v1961
        %v2066 = vpop.permute.xlu0 %2065
        %v2068 = vmul.f32 %v2061, %v739
        %v2069 = vmul.f32 %v2066, %v739
        %v2070 = vadd.f32 %v2056, %v2068
        %v2071 = vadd.f32 %v2057, %v2069
        %v2072 = vsel %vm744, %v2070, -inf
        %2073 = vmax.xlane.f32.xlu0 %v2072
        %v2074 = vpop.xlane.xlu0 %2073
        %v2075 = vsel %vm744, %v2071, -inf
        %2076 = vmax.xlane.f32.xlu0 %v2075
        %v2077 = vpop.xlane.xlu0 %2076
        %v2078 = vsub.f32 %v2070, %v2074
        %v2079 = vsub.f32 %v2071, %v2077
        %v2080 = vmul.f32 %v2078, 1.442695
        %v2081 = vpow.pop %v2080
        %v2082 = vmul.f32 %v2079, 1.442695
        %v2083 = vpow.pop %v2082
        %v2084 = vsel %vm744, %v2081, 0.0
        %2085 = vadd.xlane.f32.xlu0 %v2084
        %v2086 = vpop.xlane.xlu0 %2085
        %v2087 = vsel %vm744, %v2083, 0.0
        %2088 = vadd.xlane.f32.xlu0 %v2087
        %v2089 = vpop.xlane.xlu0 %2088
        %v2090 = vlog2.pop %v2086
        %v2091 = vmul.f32 %v2090, 0.6931472
        %v2092 = vlog2.pop %v2089
        %v2093 = vmul.f32 %v2092, 0.6931472
        %v2094 = vsub.f32 0.0, %v2091
        %v2095 = vsub.f32 0.0, %v2093
        %vm2096 = vcmp.ge.f32.partialorder %v2070, %v2074
        %vm2097 = vcmp.ge.f32.partialorder %v2071, %v2077
        %v2098 = vsel %vm2096, %v691, 1e+09
        %v2099 = vsel %vm2097, %v691, 1e+09
        %v2100 = vsel %vm744, %v2098, inf
        %2101 = vmin.xlane.f32.xlu0 %v2100
        %v2102 = vpop.xlane.xlu0 %2101
        %v2103 = vsel %vm744, %v2099, inf
        %2104 = vmin.xlane.f32.xlu0 %v2103
        %v2105 = vpop.xlane.xlu0 %2104
        %v2106 = vadd.f32 %v2102, 8.0
        %v2107 = vadd.f32 %v2105, 8.0
        %2110 = vrot.lane.b32.xlu0 %v2070, 127
        %v2111 = vpop.permute.xlu0 %2110
        %2112 = vrot.lane.b32.xlu0 %v2071, 127
        %v2113 = vpop.permute.xlu0 %2112
        %v2116 = vsub.f32 %v2070, %v2111
        %v2117 = vsub.f32 %v2071, %v2113
        %v2118 = vmul.f32 %v2116, 1.442695
        %v2119 = vpow.pop %v2118
        %v2120 = vmul.f32 %v2117, 1.442695
        %v2121 = vpow.pop %v2120
        %v2122 = vadd.f32 %v2119, 1.0
        %v2123 = vadd.f32 %v2121, 1.0
        %v2124 = vrcp.pop %v2122
        %v2125 = vmul.f32 1.0, %v2124
        %v2126 = vrcp.pop %v2123
        %v2127 = vmul.f32 1.0, %v2126
        %v2128 = vmul.f32 %v2125, 1.442695
        %v2129 = vpow.pop %v2128
        %v2130 = vmul.f32 %v2127, 1.442695
        %v2131 = vpow.pop %v2130
        %v2132 = vsel %vm805, %v2129, 0.0
        %v2133 = vrot.slane %v2132, 4
        %v2134 = vadd.f32 %v2132, %v2133
        %v2135 = vrot.slane %v2134, 2
        %v2136 = vadd.f32 %v2134, %v2135
        %v2137 = vrot.slane %v2136, 1
        %v2138 = vadd.f32 %v2136, %v2137
        %v2139 = vsel %vm805, %v2131, 0.0
        %v2140 = vrot.slane %v2139, 4
        %v2141 = vadd.f32 %v2139, %v2140
        %v2142 = vrot.slane %v2141, 2
        %v2143 = vadd.f32 %v2141, %v2142
        %v2144 = vrot.slane %v2143, 1
        %v2145 = vadd.f32 %v2143, %v2144
        %v2146 = vrcp.pop %v2138
        %v2147 = vmul.f32 %v2129, %v2146
        %v2148 = vrcp.pop %v2145
        %v2149 = vmul.f32 %v2131, %v2148
        %v2150 = vmul.f32 %v255, 0.05
        %v2151 = vmul.f32 %v256, 0.05
        %2154 = vrot.lane.b32.xlu0 %v2150, 7
        %v2155 = vpop.permute.xlu0 %2154
        %2156 = vrot.lane.b32.xlu0 %v2151, 7
        %v2157 = vpop.permute.xlu0 %2156
        %v2160 = vadd.f32 %v2028, %v2155
        %v2161 = vadd.f32 %v2029, %v2157
        %v2162 = vsub.f32 %v2160, 500.0
        %v2163 = vsub.f32 %v2161, 500.0
        %v2164 = vmul.f32 %v2162, %v2162
        %v2165 = vmul.f32 %v2163, %v2163
        %v2166 = vadd.f32 %v2164, 100.0
        %v2167 = vadd.f32 %v2165, 100.0
        %v2168 = vrsqrt.pop %v2166
        %v2169 = vmul.f32 %v2166, %v2168
        %vm2170 = vcmp.eq.f32.partialorder %v2166, inf
        %v2171 = vsel %vm2170, %v2166, %v2169
        %vm2172 = vcmp.eq.f32.partialorder %v2166, 0.0
        %v2173 = vand.u32 %v2166, 2147483648
        %v2174 = vsel %vm2172, %v2173, %v2171
        %v2175 = vrsqrt.pop %v2167
        %v2176 = vmul.f32 %v2167, %v2175
        %vm2177 = vcmp.eq.f32.partialorder %v2167, inf
        %v2178 = vsel %vm2177, %v2167, %v2176
        %vm2179 = vcmp.eq.f32.partialorder %v2167, 0.0
        %v2180 = vand.u32 %v2167, 2147483648
        %v2181 = vsel %vm2179, %v2180, %v2178
        %v2182 = vmul.f32 %v2147, 10.0
        %v2183 = vmul.f32 %v2149, 10.0
        %v2184 = vmul.f32 %v255, 10000000.0
        %v2185 = vmul.f32 %v256, 10000000.0
        %v2186 = vmul.f32 %v2174, %v2174
        %v2187 = vmul.f32 %v2181, %v2181
        %2190 = vrot.lane.b32.xlu0 %v2186, 119
        %v2191 = vpop.permute.xlu0 %2190
        %2192 = vrot.lane.b32.xlu0 %v2187, 119
        %v2193 = vpop.permute.xlu0 %2192
        %v2196 = vrcp.pop %v2191
        %v2197 = vmul.f32 %v2184, %v2196
        %v2198 = vrcp.pop %v2193
        %v2199 = vmul.f32 %v2185, %v2198
        %v2200 = vadd.f32 %v2197, 1.0
        %v2201 = vadd.f32 %v2199, 1.0
        %v2202 = vlog2.pop %v2200
        %v2203 = vmul.f32 %v2202, 0.6931472
        %v2204 = vlog2.pop %v2201
        %v2205 = vmul.f32 %v2204, 0.6931472
        %v2206 = vmul.f32 %v2203, 1.442695
        %v2207 = vmul.f32 %v2205, 1.442695
        %2210 = vrot.lane.b32.xlu0 %v2206, 9
        %v2211 = vpop.permute.xlu0 %2210
        %2212 = vrot.lane.b32.xlu0 %v2207, 9
        %v2213 = vpop.permute.xlu0 %2212
        %v2216 = vmul.f32 %v2182, %v2211
        %v2217 = vmul.f32 %v2183, %v2213
        %v2218 = vmul.f32 %v2106, 0.03125
        %v2219 = vmul.f32 %v2107, 0.03125
        %v2220 = vrcp.pop %v2216
        %v2221 = vmul.f32 %v2218, %v2220
        %v2222 = vrcp.pop %v2217
        %v2223 = vmul.f32 %v2219, %v2222
        %v2224 = vadd.f32 %v2221, 0.05
        %v2225 = vadd.f32 %v2223, 0.05
        %v2226 = vsel %vm805, %v2224, -inf
        %v2227 = vrot.slane %v2226, 4
        %v2228 = vmax.f32 %v2226, %v2227
        %v2229 = vrot.slane %v2228, 2
        %v2230 = vmax.f32 %v2228, %v2229
        %v2231 = vrot.slane %v2230, 1
        %v2232 = vmax.f32 %v2230, %v2231
        %v2233 = vsel %vm805, %v2225, -inf
        %v2234 = vrot.slane %v2233, 4
        %v2235 = vmax.f32 %v2233, %v2234
        %v2236 = vrot.slane %v2235, 2
        %v2237 = vmax.f32 %v2235, %v2236
        %v2238 = vrot.slane %v2237, 1
        %v2239 = vmax.f32 %v2237, %v2238
        %2240 = vrot.lane.b32.xlu0 %v255, 7
        %v2241 = vpop.permute.xlu0 %2240
        %2242 = vrot.lane.b32.xlu0 %v256, 7
        %v2243 = vpop.permute.xlu0 %2242
        %v2246 = vmul.f32 %v2232, %v2241
        %v2247 = vmul.f32 %v2239, %v2243
        %v2248 = vadd.f32 %v2246, %v2028
        %v2249 = vadd.f32 %v2247, %v2029
        %2251 = vset.pattern.permute.xlu0 9
        %2252 = vperm.xlu0 %2251, %v2232
        %v2253 = vpop.permute.xlu0 %2252
        %2256 = vset.pattern.permute.xlu0 9
        %2257 = vperm.xlu0 %2256, %v2239
        %v2258 = vpop.permute.xlu0 %2257
        %v2260 = vmul.f32 %v2253, %v707
        %v2261 = vmul.f32 %v2258, %v707
        %v2262 = vadd.f32 %v684, %v2260
        %v2263 = vadd.f32 %v685, %v2261
        %2265 = vset.pattern.permute.xlu0 9
        %2266 = vperm.xlu0 %2265, %v2248
        %v2267 = vpop.permute.xlu0 %2266
        %2270 = vset.pattern.permute.xlu0 9
        %2271 = vperm.xlu0 %2270, %v2249
        %v2272 = vpop.permute.xlu0 %2271
        %v2274 = vmul.f32 %v2267, %v723
        %v2275 = vmul.f32 %v2272, %v723
        %v2276 = vadd.f32 %v2262, %v2274
        %v2277 = vadd.f32 %v2263, %v2275
        %2279 = vset.pattern.permute.xlu0 9
        %2280 = vperm.xlu0 %2279, %v2174
        %v2281 = vpop.permute.xlu0 %2280
        %2284 = vset.pattern.permute.xlu0 9
        %2285 = vperm.xlu0 %2284, %v2181
        %v2286 = vpop.permute.xlu0 %2285
        %v2288 = vmul.f32 %v2281, %v739
        %v2289 = vmul.f32 %v2286, %v739
        %v2290 = vadd.f32 %v2276, %v2288
        %v2291 = vadd.f32 %v2277, %v2289
        %v2292 = vsel %vm744, %v2290, -inf
        %2293 = vmax.xlane.f32.xlu0 %v2292
        %v2294 = vpop.xlane.xlu0 %2293
        %v2295 = vsel %vm744, %v2291, -inf
        %2296 = vmax.xlane.f32.xlu0 %v2295
        %v2297 = vpop.xlane.xlu0 %2296
        %v2298 = vsub.f32 %v2290, %v2294
        %v2299 = vsub.f32 %v2291, %v2297
        %v2300 = vmul.f32 %v2298, 1.442695
        %v2301 = vpow.pop %v2300
        %v2302 = vmul.f32 %v2299, 1.442695
        %v2303 = vpow.pop %v2302
        %v2304 = vsel %vm744, %v2301, 0.0
        %2305 = vadd.xlane.f32.xlu0 %v2304
        %v2306 = vpop.xlane.xlu0 %2305
        %v2307 = vsel %vm744, %v2303, 0.0
        %2308 = vadd.xlane.f32.xlu0 %v2307
        %v2309 = vpop.xlane.xlu0 %2308
        %v2310 = vlog2.pop %v2306
        %v2311 = vmul.f32 %v2310, 0.6931472
        %v2312 = vlog2.pop %v2309
        %v2313 = vmul.f32 %v2312, 0.6931472
        %v2314 = vsub.f32 0.0, %v2311
        %v2315 = vsub.f32 0.0, %v2313
        %vm2316 = vcmp.ge.f32.partialorder %v2290, %v2294
        %vm2317 = vcmp.ge.f32.partialorder %v2291, %v2297
        %v2318 = vsel %vm2316, %v691, 1e+09
        %v2319 = vsel %vm2317, %v691, 1e+09
        %v2320 = vsel %vm744, %v2318, inf
        %2321 = vmin.xlane.f32.xlu0 %v2320
        %v2322 = vpop.xlane.xlu0 %2321
        %v2323 = vsel %vm744, %v2319, inf
        %2324 = vmin.xlane.f32.xlu0 %v2323
        %v2325 = vpop.xlane.xlu0 %2324
        %v2326 = vadd.f32 %v2322, 8.0
        %v2327 = vadd.f32 %v2325, 8.0
        %2330 = vrot.lane.b32.xlu0 %v2290, 127
        %v2331 = vpop.permute.xlu0 %2330
        %2332 = vrot.lane.b32.xlu0 %v2291, 127
        %v2333 = vpop.permute.xlu0 %2332
        %v2336 = vsub.f32 %v2290, %v2331
        %v2337 = vsub.f32 %v2291, %v2333
        %v2338 = vmul.f32 %v2336, 1.442695
        %v2339 = vpow.pop %v2338
        %v2340 = vmul.f32 %v2337, 1.442695
        %v2341 = vpow.pop %v2340
        %v2342 = vadd.f32 %v2339, 1.0
        %v2343 = vadd.f32 %v2341, 1.0
        %v2344 = vrcp.pop %v2342
        %v2345 = vmul.f32 1.0, %v2344
        %v2346 = vrcp.pop %v2343
        %v2347 = vmul.f32 1.0, %v2346
        %v2348 = vmul.f32 %v2345, 1.442695
        %v2349 = vpow.pop %v2348
        %v2350 = vmul.f32 %v2347, 1.442695
        %v2351 = vpow.pop %v2350
        %v2352 = vsel %vm805, %v2349, 0.0
        %v2353 = vrot.slane %v2352, 4
        %v2354 = vadd.f32 %v2352, %v2353
        %v2355 = vrot.slane %v2354, 2
        %v2356 = vadd.f32 %v2354, %v2355
        %v2357 = vrot.slane %v2356, 1
        %v2358 = vadd.f32 %v2356, %v2357
        %v2359 = vsel %vm805, %v2351, 0.0
        %v2360 = vrot.slane %v2359, 4
        %v2361 = vadd.f32 %v2359, %v2360
        %v2362 = vrot.slane %v2361, 2
        %v2363 = vadd.f32 %v2361, %v2362
        %v2364 = vrot.slane %v2363, 1
        %v2365 = vadd.f32 %v2363, %v2364
        %v2366 = vrcp.pop %v2358
        %v2367 = vmul.f32 %v2349, %v2366
        %v2368 = vrcp.pop %v2365
        %v2369 = vmul.f32 %v2351, %v2368
        %2372 = vrot.lane.b32.xlu0 %v821, 127
        %v2373 = vpop.permute.xlu0 %2372
        %2374 = vrot.lane.b32.xlu0 %v823, 127
        %v2375 = vpop.permute.xlu0 %2374
        %2380 = vrot.lane.b32.xlu0 %v1267, 1
        %v2381 = vpop.permute.xlu0 %2380
        %2382 = vrot.lane.b32.xlu0 %v1269, 1
        %v2383 = vpop.permute.xlu0 %2382
        %2388 = vrot.lane.b32.xlu0 %v1487, 2
        %v2389 = vpop.permute.xlu0 %2388
        %2390 = vrot.lane.b32.xlu0 %v1489, 2
        %v2391 = vpop.permute.xlu0 %2390
        %2396 = vrot.lane.b32.xlu0 %v1707, 3
        %v2397 = vpop.permute.xlu0 %2396
        %2398 = vrot.lane.b32.xlu0 %v1709, 3
        %v2399 = vpop.permute.xlu0 %2398
        %2404 = vrot.lane.b32.xlu0 %v1927, 4
        %v2405 = vpop.permute.xlu0 %2404
        %2406 = vrot.lane.b32.xlu0 %v1929, 4
        %v2407 = vpop.permute.xlu0 %2406
        %2412 = vrot.lane.b32.xlu0 %v2147, 5
        %v2413 = vpop.permute.xlu0 %2412
        %2414 = vrot.lane.b32.xlu0 %v2149, 5
        %v2415 = vpop.permute.xlu0 %2414
        %2420 = vrot.lane.b32.xlu0 %v2367, 6
        %v2421 = vpop.permute.xlu0 %2420
        %2422 = vrot.lane.b32.xlu0 %v2369, 6
        %v2423 = vpop.permute.xlu0 %2422
        %vm2426 = vcmask 7168
        %v2427 = vsel %vm2426, %v779, %v1006
        %v2428 = vsel %vm2426, %v780, %v1007
        %vm2429 = vcmask 15360
        %v2430 = vsel %vm2429, %v2427, %v1226
        %v2431 = vsel %vm2429, %v2428, %v1227
        %vm2432 = vcmask 23552
        %v2433 = vsel %vm2432, %v2430, %v1446
        %v2434 = vsel %vm2432, %v2431, %v1447
        %vm2435 = vcmask 31744
        %v2436 = vsel %vm2435, %v2433, %v1666
        %v2437 = vsel %vm2435, %v2434, %v1667
        %vm2438 = vcmask 39936
        %v2439 = vsel %vm2438, %v2436, %v1886
        %v2440 = vsel %vm2438, %v2437, %v1887
        %vm2441 = vcmask 48128
        %v2442 = vsel %vm2441, %v2439, %v2106
        %v2443 = vsel %vm2441, %v2440, %v2107
        %vm2444 = vcmask 56320
        %v2445 = vsel %vm2444, %v2442, %v2326
        %v2446 = vsel %vm2444, %v2443, %v2327
        %vm2447 = vcmask 64512
        %v2448 = vsel %vm2447, %v2445, %v2373
        %v2449 = vsel %vm2447, %v2446, %v2375
        %v2450 = vsel %vm744, %v2448, %v1047
        %v2451 = vsel %vm744, %v2449, %v1049
        %vm2452 = vcmask 80896
        %v2453 = vsel %vm2452, %v2450, %v2381
        %v2454 = vsel %vm2452, %v2451, %v2383
        %vm2455 = vcmask 89088
        %v2456 = vsel %vm2455, %v2453, %v2389
        %v2457 = vsel %vm2455, %v2454, %v2391
        %vm2458 = vcmask 97280
        %v2459 = vsel %vm2458, %v2456, %v2397
        %v2460 = vsel %vm2458, %v2457, %v2399
        %vm2461 = vcmask 105472
        %v2462 = vsel %vm2461, %v2459, %v2405
        %v2463 = vsel %vm2461, %v2460, %v2407
        %vm2464 = vcmask 113664
        %v2465 = vsel %vm2464, %v2462, %v2413
        %v2466 = vsel %vm2464, %v2463, %v2415
        %vm2467 = vcmask 121856
        %v2468 = vsel %vm2467, %v2465, %v2421
        %v2469 = vsel %vm2467, %v2466, %v2423
        %v2470 = vsel %vm2426, %v767, %v994
        %v2471 = vsel %vm2426, %v768, %v995
        %v2472 = vsel %vm2429, %v2470, %v1214
        %v2473 = vsel %vm2429, %v2471, %v1215
        %v2474 = vsel %vm2432, %v2472, %v1434
        %v2475 = vsel %vm2432, %v2473, %v1435
        %v2476 = vsel %vm2435, %v2474, %v1654
        %v2477 = vsel %vm2435, %v2475, %v1655
        %v2478 = vsel %vm2438, %v2476, %v1874
        %v2479 = vsel %vm2438, %v2477, %v1875
        %v2480 = vsel %vm2441, %v2478, %v2094
        %v2481 = vsel %vm2441, %v2479, %v2095
        %v2482 = vsel %vm2444, %v2480, %v2314
        %v2483 = vsel %vm2444, %v2481, %v2315
        %2486 = vrot.lane.b32.xlu0 %v2482, 16
        %v2487 = vpop.permute.xlu0 %2486
        %2488 = vrot.lane.b32.xlu0 %v2483, 16
        %v2489 = vpop.permute.xlu0 %2488
        %vm2492 = vcmask 130048
        %v2493 = vsel %vm2492, %v2468, %v2487
        %v2494 = vsel %vm2492, %v2469, %v2489
        %vm2495 = vcmask 195584
        %2496 = vst.msk [vmem:[%s232] sm:$0xff] %vm2495, %v2493
        %2497 = vst.msk [vmem:[%s232 + $0x8] sm:$0xff] %vm2495, %v2494
        %s2498 = sand.u32 %s142, 1
        %s2499 = scalar_lea.sflag [#allocation3], %s2498
        %s2500 = sand.u32 %s142, 1
        %s2501 = smul.addr %s2500, 16
        %s2502 = scalar_lea.vmem [#allocation2], %s2501
        // Predicated region
        $region41: #{tpu_custom_call.1} parent=39 // pred_check
          %p2503 = pneg %p152
        $region42: #{tpu_custom_call.1} parent=39 // pred_check_branch
          %2505 = sbr.rel (%p2503) target = $region44
        $region43: #{tpu_custom_call.1} parent=39 // pred_region
          %s2507 = ssub.s32 256, 256
          %2508 = vsyncadd %s2499, %s2507
          %s2509 = smul.addr %s19, 2
          %s2510 = smul.addr %s2509, 128
          %s2511 = scalar_lea.hbm %s5, %s2510
          %s2512 = sshll.u32 %s2502, 4
          %s2513 = int_to_ptr.vmem [resolvable:$true] %s2512
          %2518 = dma.vmem_to_hbm [thread:$0]  %s2513, 256, %s2511, %s2499, 128, 128, 8
        $region44: #{tpu_custom_call.1} parent=39 // pred_fallthru
          _
      $region40: #{tpu_custom_call.1} parent=5 // pred_fallthru
        _
      %p2519 = scmp.le.s32.totalorder 2, %s14
      // Predicated region
      $region45: #{tpu_custom_call.1} parent=5 // pred_check
        %p2520 = pneg %p2519
      $region46: #{tpu_custom_call.1} parent=5 // pred_check_branch
        %2522 = sbr.rel (%p2520) target = $region48
      $region47: #{tpu_custom_call.1} parent=5 // pred_region
        %s2523 = ssub.s32 %s14, 2
        // Predicated region
        $region49: #{tpu_custom_call.1} parent=47 // pred_check
          %p2524 = pneg %p158
        $region50: #{tpu_custom_call.1} parent=47 // pred_check_branch
          %2526 = sbr.rel (%p2524) target = $region52
        $region51: #{tpu_custom_call.1} parent=47 // pred_region
          %s2527 = sand.u32 %s143, 1
          %s2528 = scalar_lea.sflag [#allocation3], %s2527
          %s2529 = sand.u32 %s143, 1
          %s2530 = smul.addr %s2529, 16
          %s2531 = scalar_lea.vmem [#allocation2], %s2530
          %2532 = dma.done %s2528, 256
        $region52: #{tpu_custom_call.1} parent=47 // pred_fallthru
          _
      $region48: #{tpu_custom_call.1} parent=5 // pred_fallthru
        _
    $region6: #{tpu_custom_call.1} parent=1 // loop_footer
      %s18 = sadd.s32 1, %s14
    $region7: #{tpu_custom_call.1} parent=1 // loop_footer_branch
      %13 = sbr.rel target = $region3
    $region8: #{tpu_custom_call.1} parent=1 // loop_exit
      _
    %2533 = vsyncpa [#allocation3], 1
    %s2534 = scalar_lea.sflag [#allocation3], 1
    %2535 = vsyncpa %s2534, 1

</llo_original>
